<compile_context>
chip_gen: v6e
topology: v6e:2x2x1
jax: 0.10.0
libtpu: 0.0.40
codegen_flags: <defaults>
</compile_context>

<pallas_src>
import functools
import math

import jax
import jax.numpy as jnp
from jax import lax
from jax.experimental import pallas as pl
from jax.experimental.pallas import tpu as pltpu

PI = 3.141592          # matches the constant used by the PyTorch reference
EPS = 1e-06

N_DIMS = 784           # 1 * 28 * 28
HID1, HID2, N_OUT = 500, 300, 10
H1P = 512              # 500 padded
DP = 384               # 300 / 301 padded (multiple of 128)
OUTP = 128             # 10 padded to one full lane group


def _round_up(a, b):
    return ((a + b - 1) // b) * b


def _pick_tile(n, tile_n):
    """Batch-tile size: shrink for small batches, >=2 steps for n>=64 (v7x)."""
    n = max(int(n), 1)
    steps = max(1, -(-n // tile_n))
    if n >= 64:
        steps = max(steps, 2)          # let both v7x TensorCores get work
    return _round_up(-(-n // steps), 8)


def spheric_fnn_kernel(x_ref, w1_ref, b1_ref, w2_ref, b2_ref,
                       w_phi_ref, w3_ref, out_ref, *, ang_scale, ang_bias):
    x = x_ref[...].astype(jnp.bfloat16)                               # (T, 784)

    # fc1 + relu (bf16 MXU, f32 accumulate)
    h1 = jnp.dot(x, w1_ref[...], preferred_element_type=jnp.float32) + b1_ref[...]
    h1 = jnp.maximum(h1, 0.0)                                         # (T, 512)

    # fc2 — 0.5 * scaling already folded into w2/b2; padded cols are exactly 0
    z = jnp.dot(h1.astype(jnp.bfloat16), w2_ref[...],
                preferred_element_type=jnp.float32) + b2_ref[...]     # (T, 384)

    # ----- Spherization (n_dims = 300, padded to 384) -----
    # sigmoid(s) == 0.5*(tanh(s/2) + 1); the /2 is folded into z, the affine
    # (PI/2 - phi_L)*(.) + phi_L is folded into ang_scale / ang_bias.
    ang = ang_scale * jnp.tanh(z) + ang_bias                          # (T, 384)

    log_sin = jnp.log(jnp.abs(jnp.sin(ang)) + EPS)
    log_cos = jnp.log(jnp.abs(jnp.cos(ang)) + EPS)

    # b_phi handling: the host-built W_phi keeps [299, 300] = 1, so the
    # reference's log|cos(ang_299 - pi/2)| == log|sin(ang_299)| contribution to
    # column 300 comes from the matmul; the additive log_cos term for that
    # column must therefore be zero.  Cheap lane-mask select, no broadcast.
    lane = lax.broadcasted_iota(jnp.int32, log_cos.shape, 1)
    log_cos = jnp.where(lane == HID2, 0.0, log_cos)

    # Strict-upper-triangular W_phi accumulation.  W_phi entries are exactly
    # 0/1 (exact in bf16); use an exact bf16 hi/lo split of log_sin with f32
    # accumulation: two single-pass bf16 MXU dots ~= f32 accuracy.
    w_phi = w_phi_ref[...]
    ls_hi = log_sin.astype(jnp.bfloat16)
    ls_lo = (log_sin - ls_hi.astype(jnp.float32)).astype(jnp.bfloat16)
    sph = jnp.dot(ls_hi, w_phi, preferred_element_type=jnp.float32)
    sph = sph + jnp.dot(ls_lo, w_phi, preferred_element_type=jnp.float32)
    sph = jnp.exp(sph + log_cos)                                      # (T, 384)

    # fc3 (SphericLinear.layer, bias=False); radius folded into w3,
    # padded rows/cols of w3 are zero so junk lanes never reach real outputs.
    out_ref[...] = jnp.dot(sph.astype(jnp.bfloat16), w3_ref[...],
                           preferred_element_type=jnp.float32)        # (T, 128)


def init_raw_params(key, delta=1e-6, scaling=1.0, radius=1.0):
    """Raw f32 parameters, matching PyTorch nn.Linear default init."""
    k1, k2, k3, k4, k5 = jax.random.split(key, 5)

    def unif(k, shape, fan_in):
        bound = 1.0 / math.sqrt(fan_in)
        return jax.random.uniform(k, shape, jnp.float32, -bound, bound)

    # PyTorch Linear weights (out, in) stored transposed as (in, out)
    w1 = unif(k1, (N_DIMS, HID1), N_DIMS)
    b1 = unif(k2, (HID1,), N_DIMS)
    w2 = unif(k3, (HID1, HID2), HID1)
    b2 = unif(k4, (HID2,), HID1)
    w3 = unif(k5, (HID2 + 1, N_OUT), HID2 + 1)      # Linear(301, 10, bias=False)

    L = 0.01
    upper_bound = PI / 2.0 * (1.0 - L)
    phi_l = math.asin(delta ** (1.0 / HID2))
    phi_l = phi_l if phi_l < upper_bound else upper_bound

    return dict(w1=w1, b1=b1, w2=w2, b2=b2, w3=w3,
                phi_l=float(phi_l), scaling=float(scaling), radius=float(radius))


def pack_params(raw):
    """Pad/fold raw params into kernel-ready (bf16 matmul operands) layout."""
    w1, b1, w2, b2, w3 = raw["w1"], raw["b1"], raw["w2"], raw["b2"], raw["w3"]
    scaling, radius, phi_l = raw["scaling"], raw["radius"], raw["phi_l"]

    # W_phi: strict upper-triangular ones over (301, 301).  NOTE: [299, 300]
    # is deliberately kept at 1 (the reference zeroes it and instead adds the
    # b_phi-shifted cos term; we fold that into the matmul and zero the
    # additive log_cos column 300 inside the kernel).  Entries are 0/1 => bf16
    # storage is exact.
    w_phi = jnp.triu(jnp.ones((HID2 + 1, HID2 + 1), jnp.float32), k=1)

    w1p = jnp.zeros((N_DIMS, H1P), jnp.float32).at[:, :HID1].set(w1).astype(jnp.bfloat16)
    b1p = jnp.zeros((1, H1P), jnp.float32).at[0, :HID1].set(b1)
    # fold 0.5 * scaling (for the sigmoid->tanh rewrite) into fc2
    w2p = jnp.zeros((H1P, DP), jnp.float32).at[:HID1, :HID2].set(
        0.5 * scaling * w2).astype(jnp.bfloat16)
    b2p = jnp.zeros((1, DP), jnp.float32).at[0, :HID2].set(0.5 * scaling * b2)
    w_phi_p = jnp.zeros((DP, DP), jnp.float32).at[:HID2 + 1, :HID2 + 1].set(
        w_phi).astype(jnp.bfloat16)
    # fold radius into fc3
    w3p = jnp.zeros((DP, OUTP), jnp.float32).at[:HID2 + 1, :N_OUT].set(
        radius * w3).astype(jnp.bfloat16)

    return (w1p, b1p, w2p, b2p, w_phi_p, w3p, phi_l)


def spheric_fnn(x, params, tile_n=512, vmem_limit_bytes=None):
    """Forward pass.  x: (..., 784) or (N, C, H, W) flattened to 784 features."""
    # mirrors `if x.dim() > 2: x = x.view(-1, n_dims)`
    if x.ndim > 2:
        x = x.reshape(-1, N_DIMS)
    n = x.shape[0]

    tile = _pick_tile(n, tile_n)
    n_pad = _round_up(n, tile)
    if n_pad != n:
        x = jnp.pad(x, ((0, n_pad - n), (0, 0)))   # only a small batch tail

    w1, b1, w2, b2, w_phi, w3, phi_l = params
    ang_scale = 0.5 * (PI / 2.0 - phi_l)
    ang_bias = ang_scale + phi_l
    kernel = functools.partial(spheric_fnn_kernel,
                               ang_scale=float(ang_scale),
                               ang_bias=float(ang_bias))

    cp_kwargs = dict(dimension_semantics=("parallel",))
    if vmem_limit_bytes is not None:
        # e.g. for tile_n=1024 on v6e; default scoped limits suffice at 512.
        cp_kwargs["vmem_limit_bytes"] = int(vmem_limit_bytes)

    out = pl.pallas_call(
        kernel,
        out_shape=jax.ShapeDtypeStruct((n_pad, OUTP), jnp.float32),
        grid=(n_pad // tile,),
        in_specs=[
            pl.BlockSpec((tile, N_DIMS), lambda i: (i, 0)),        # x tile (pipelined)
            pl.BlockSpec((N_DIMS, H1P), lambda i: (0, 0)),         # w1 (resident)
            pl.BlockSpec((1, H1P), lambda i: (0, 0)),              # b1
            pl.BlockSpec((H1P, DP), lambda i: (0, 0)),             # w2 (0.5*scaling folded)
            pl.BlockSpec((1, DP), lambda i: (0, 0)),               # b2
            pl.BlockSpec((DP, DP), lambda i: (0, 0)),              # W_phi (bf16, 0/1)
            pl.BlockSpec((DP, OUTP), lambda i: (0, 0)),            # w3 (radius folded)
        ],
        out_specs=pl.BlockSpec((tile, OUTP), lambda i: (i, 0)),
        compiler_params=pltpu.CompilerParams(**cp_kwargs),
    )(x, w1, b1, w2, b2, w_phi, w3)

    return out[:n, :N_OUT]


def spheric_fnn_reference(x, raw):
    """Pure-JAX f32 reference mirroring the PyTorch module exactly."""
    if x.ndim > 2:
        x = x.reshape(-1, N_DIMS)
    h1 = jnp.maximum(x @ raw["w1"] + raw["b1"], 0.0)
    h2 = h1 @ raw["w2"] + raw["b2"]
    s = raw["scaling"] * h2
    ang = (PI / 2.0 - raw["phi_l"]) * jax.nn.sigmoid(s) + raw["phi_l"]
    xt = jnp.concatenate([ang, ang[:, -1:]], axis=1)            # x @ W_theta.T
    b_phi = jnp.zeros((HID2 + 1,), jnp.float32).at[-1].set(-PI / 2.0)
    v_sin = jnp.sin(xt)
    v_cos = jnp.cos(xt + b_phi)
    w_phi = jnp.triu(jnp.ones((HID2 + 1, HID2 + 1), jnp.float32), k=1)
    w_phi = w_phi.at[-2, -1].set(0.0)
    sph = jnp.log(jnp.abs(v_sin) + EPS) @ w_phi + jnp.log(jnp.abs(v_cos) + EPS)
    sph = raw["radius"] * jnp.exp(sph)
    return sph @ raw["w3"]


if __name__ == "__main__":
    key = jax.random.PRNGKey(0)
    kx, kp = jax.random.split(key)

    # small MNIST-like batch: (N, C, H, W) = (8, 1, 28, 28) -> flattened to 784
    x = jax.random.normal(kx, (8, 1, 28, 28), dtype=jnp.float32)
    raw = init_raw_params(kp)
    params = pack_params(raw)

    out = spheric_fnn(x, params)
    out = jax.block_until_ready(out)

    assert out.shape == (8, 10) and out.dtype == jnp.float32
    assert bool(jnp.all(jnp.isfinite(out)))

    # correctness vs. pure-JAX reference (bf16 matmuls in the kernel -> loose tol)
    ref = jax.block_until_ready(spheric_fnn_reference(x, raw))
    rel_err = float(jnp.max(jnp.abs(out - ref))) / (float(jnp.max(jnp.abs(ref))) + 1e-6)
    assert rel_err < 0.05, f"max relative error vs reference: {rel_err}"

    print("KERNEL_OK")
</pallas_src>

<mosaic_0001>
module attributes {stable_mosaic.version = 11 : i64} {
  func.func @spheric_fnn_kernel(%arg0: i32, %arg1: memref<8x784xf32, #tpu.memory_space<vmem>>, %arg2: memref<784x512xbf16, #tpu.memory_space<vmem>>, %arg3: memref<1x512xf32, #tpu.memory_space<vmem>>, %arg4: memref<512x384xbf16, #tpu.memory_space<vmem>>, %arg5: memref<1x384xf32, #tpu.memory_space<vmem>>, %arg6: memref<384x384xbf16, #tpu.memory_space<vmem>>, %arg7: memref<384x128xbf16, #tpu.memory_space<vmem>>, %arg8: memref<8x128xf32, #tpu.memory_space<vmem>>) attributes {dimension_semantics = [#tpu.dimension_semantics<parallel>], iteration_bounds = array<i64: 1>, scalar_prefetch = 0 : i64, scratch_operands = 0 : i64, tpu.core_type = #tpu.core_type<tc>, window_params = [{transform_indices = @transform_0, window_bounds = array<i64: 8, 784>}, {pipeline_mode = #tpu.pipeline_mode<synchronous>, transform_indices = @transform_1, window_bounds = array<i64: 784, 512>}, {pipeline_mode = #tpu.pipeline_mode<synchronous>, transform_indices = @transform_2, window_bounds = array<i64: 1, 512>}, {pipeline_mode = #tpu.pipeline_mode<synchronous>, transform_indices = @transform_3, window_bounds = array<i64: 512, 384>}, {pipeline_mode = #tpu.pipeline_mode<synchronous>, transform_indices = @transform_4, window_bounds = array<i64: 1, 384>}, {pipeline_mode = #tpu.pipeline_mode<synchronous>, transform_indices = @transform_5, window_bounds = array<i64: 384, 384>}, {pipeline_mode = #tpu.pipeline_mode<synchronous>, transform_indices = @transform_6, window_bounds = array<i64: 384, 128>}, {transform_indices = @transform_7, window_bounds = array<i64: 8, 128>}]} {
    %c0 = arith.constant 0 : index
    %c0_0 = arith.constant 0 : index
    %0 = vector.load %arg1[%c0, %c0_0] : memref<8x784xf32, #tpu.memory_space<vmem>>, vector<8x784xf32>
    %1 = arith.truncf %0 : vector<8x784xf32> to vector<8x784xbf16>
    %c0_1 = arith.constant 0 : index
    %c0_2 = arith.constant 0 : index
    %2 = vector.load %arg2[%c0_1, %c0_2] : memref<784x512xbf16, #tpu.memory_space<vmem>>, vector<784x512xbf16>
    %cst = arith.constant dense<0.000000e+00> : vector<8x512xf32>
    %3 = tpu.matmul %1, %2, %cst {dimension_numbers = #tpu.dot_dimension_numbers<[1], [0], [0], [1], [0, 0, 1, 1], [], []>} : vector<8x784xbf16>, vector<784x512xbf16>, vector<8x512xf32> -> vector<8x512xf32>
    %c0_3 = arith.constant 0 : index
    %c0_4 = arith.constant 0 : index
    %4 = vector.load %arg3[%c0_3, %c0_4] : memref<1x512xf32, #tpu.memory_space<vmem>>, vector<1x512xf32>
    %5 = vector.broadcast %4 : vector<1x512xf32> to vector<8x512xf32>
    %6 = arith.addf %3, %5 : vector<8x512xf32>
    %cst_5 = arith.constant 0.000000e+00 : f32
    %7 = vector.broadcast %cst_5 : f32 to vector<8x512xf32>
    %8 = arith.maximumf %6, %7 : vector<8x512xf32>
    %9 = arith.truncf %8 : vector<8x512xf32> to vector<8x512xbf16>
    %c0_6 = arith.constant 0 : index
    %c0_7 = arith.constant 0 : index
    %10 = vector.load %arg4[%c0_6, %c0_7] : memref<512x384xbf16, #tpu.memory_space<vmem>>, vector<512x384xbf16>
    %cst_8 = arith.constant dense<0.000000e+00> : vector<8x384xf32>
    %11 = tpu.matmul %9, %10, %cst_8 {dimension_numbers = #tpu.dot_dimension_numbers<[1], [0], [0], [1], [0, 0, 1, 1], [], []>} : vector<8x512xbf16>, vector<512x384xbf16>, vector<8x384xf32> -> vector<8x384xf32>
    %c0_9 = arith.constant 0 : index
    %c0_10 = arith.constant 0 : index
    %12 = vector.load %arg5[%c0_9, %c0_10] : memref<1x384xf32, #tpu.memory_space<vmem>>, vector<1x384xf32>
    %13 = vector.broadcast %12 : vector<1x384xf32> to vector<8x384xf32>
    %14 = arith.addf %11, %13 : vector<8x384xf32>
    %15 = math.tanh %14 : vector<8x384xf32>
    %cst_11 = arith.constant 0.1505806 : f32
    %16 = vector.broadcast %cst_11 : f32 to vector<8x384xf32>
    %17 = arith.mulf %16, %15 : vector<8x384xf32>
    %cst_12 = arith.constant 1.42021537 : f32
    %18 = vector.broadcast %cst_12 : f32 to vector<8x384xf32>
    %19 = arith.addf %17, %18 : vector<8x384xf32>
    %20 = math.sin %19 : vector<8x384xf32>
    %21 = math.absf %20 : vector<8x384xf32>
    %cst_13 = arith.constant 9.99999997E-7 : f32
    %22 = vector.broadcast %cst_13 : f32 to vector<8x384xf32>
    %23 = arith.addf %21, %22 : vector<8x384xf32>
    %24 = math.log %23 : vector<8x384xf32>
    %25 = math.cos %19 : vector<8x384xf32>
    %26 = math.absf %25 : vector<8x384xf32>
    %cst_14 = arith.constant 9.99999997E-7 : f32
    %27 = vector.broadcast %cst_14 : f32 to vector<8x384xf32>
    %28 = arith.addf %26, %27 : vector<8x384xf32>
    %29 = math.log %28 : vector<8x384xf32>
    %30 = tpu.iota {dimensions = array<i32: 1>} : vector<8x384xi32>
    %c300_i32 = arith.constant 300 : i32
    %31 = vector.broadcast %c300_i32 : i32 to vector<8x384xi32>
    %32 = arith.cmpi eq, %30, %31 : vector<8x384xi32>
    %cst_15 = arith.constant 0.000000e+00 : f32
    %33 = vector.broadcast %cst_15 : f32 to vector<8x384xf32>
    %34 = arith.select %32, %33, %29 : vector<8x384xi1>, vector<8x384xf32>
    %c0_16 = arith.constant 0 : index
    %c0_17 = arith.constant 0 : index
    %35 = vector.load %arg6[%c0_16, %c0_17] : memref<384x384xbf16, #tpu.memory_space<vmem>>, vector<384x384xbf16>
    %36 = arith.truncf %24 : vector<8x384xf32> to vector<8x384xbf16>
    %37 = arith.extf %36 : vector<8x384xbf16> to vector<8x384xf32>
    %38 = arith.subf %24, %37 : vector<8x384xf32>
    %39 = arith.truncf %38 : vector<8x384xf32> to vector<8x384xbf16>
    %cst_18 = arith.constant dense<0.000000e+00> : vector<8x384xf32>
    %40 = tpu.matmul %36, %35, %cst_18 {dimension_numbers = #tpu.dot_dimension_numbers<[1], [0], [0], [1], [0, 0, 1, 1], [], []>} : vector<8x384xbf16>, vector<384x384xbf16>, vector<8x384xf32> -> vector<8x384xf32>
    %cst_19 = arith.constant dense<0.000000e+00> : vector<8x384xf32>
    %41 = tpu.matmul %39, %35, %cst_19 {dimension_numbers = #tpu.dot_dimension_numbers<[1], [0], [0], [1], [0, 0, 1, 1], [], []>} : vector<8x384xbf16>, vector<384x384xbf16>, vector<8x384xf32> -> vector<8x384xf32>
    %42 = arith.addf %40, %41 : vector<8x384xf32>
    %43 = arith.addf %42, %34 : vector<8x384xf32>
    %44 = math.exp %43 : vector<8x384xf32>
    %45 = arith.truncf %44 : vector<8x384xf32> to vector<8x384xbf16>
    %c0_20 = arith.constant 0 : index
    %c0_21 = arith.constant 0 : index
    %46 = vector.load %arg7[%c0_20, %c0_21] : memref<384x128xbf16, #tpu.memory_space<vmem>>, vector<384x128xbf16>
    %cst_22 = arith.constant dense<0.000000e+00> : vector<8x128xf32>
    %47 = tpu.matmul %45, %46, %cst_22 {dimension_numbers = #tpu.dot_dimension_numbers<[1], [0], [0], [1], [0, 0, 1, 1], [], []>} : vector<8x384xbf16>, vector<384x128xbf16>, vector<8x128xf32> -> vector<8x128xf32>
    %c0_23 = arith.constant 0 : index
    %c0_24 = arith.constant 0 : index
    %48 = vector.load %arg8[%c0_23, %c0_24] : memref<8x128xf32, #tpu.memory_space<vmem>>, vector<8x128xf32>
    tpu.vector_store %arg8[%c0_23, %c0_24], %47 {strides = array<i32>} : memref<8x128xf32, #tpu.memory_space<vmem>>, vector<8x128xf32>,
    return
  }
  func.func @transform_0(%arg0: i32) -> (i32, i32) {
    %c0_i32 = arith.constant 0 : i32
    %c0_i32_0 = arith.constant 0 : i32
    return %arg0, %c0_i32 : i32, i32
  }
  func.func @transform_1(%arg0: i32) -> (i32, i32) {
    %c0_i32 = arith.constant 0 : i32
    %c0_i32_0 = arith.constant 0 : i32
    %c0_i32_1 = arith.constant 0 : i32
    return %c0_i32, %c0_i32_0 : i32, i32
  }
  func.func @transform_2(%arg0: i32) -> (i32, i32) {
    %c0_i32 = arith.constant 0 : i32
    %c0_i32_0 = arith.constant 0 : i32
    %c0_i32_1 = arith.constant 0 : i32
    return %c0_i32, %c0_i32_0 : i32, i32
  }
  func.func @transform_3(%arg0: i32) -> (i32, i32) {
    %c0_i32 = arith.constant 0 : i32
    %c0_i32_0 = arith.constant 0 : i32
    %c0_i32_1 = arith.constant 0 : i32
    return %c0_i32, %c0_i32_0 : i32, i32
  }
  func.func @transform_4(%arg0: i32) -> (i32, i32) {
    %c0_i32 = arith.constant 0 : i32
    %c0_i32_0 = arith.constant 0 : i32
    %c0_i32_1 = arith.constant 0 : i32
    return %c0_i32, %c0_i32_0 : i32, i32
  }
  func.func @transform_5(%arg0: i32) -> (i32, i32) {
    %c0_i32 = arith.constant 0 : i32
    %c0_i32_0 = arith.constant 0 : i32
    %c0_i32_1 = arith.constant 0 : i32
    return %c0_i32, %c0_i32_0 : i32, i32
  }
  func.func @transform_6(%arg0: i32) -> (i32, i32) {
    %c0_i32 = arith.constant 0 : i32
    %c0_i32_0 = arith.constant 0 : i32
    %c0_i32_1 = arith.constant 0 : i32
    return %c0_i32, %c0_i32_0 : i32, i32
  }
  func.func @transform_7(%arg0: i32) -> (i32, i32) {
    %c0_i32 = arith.constant 0 : i32
    %c0_i32_0 = arith.constant 0 : i32
    return %arg0, %c0_i32 : i32, i32
  }
}

</mosaic_0001>

<llo_original>
// kernel: tpu_custom_call.1
$region0: #{tpu_custom_call.1}
  #allocation0 [shape = 'u32[]', space=smem, size = 0x4, offset = 0x4, fixed_abs, tag = 'smem constant byte address 0x4 - core index']
  #allocation1 [shape = 'u32[144,128]{1,0:T(1,128)}', space=vmem, size = 0x12000, scoped, tag = 'internal scratch']
  %s0 = inlined_call_operand.hbm [shape: f32[8,784], index: 0, kind: input, shape index: {}]
  %s1 = inlined_call_operand.hbm [shape: bf16[784,512], index: 1, kind: input, shape index: {}]
  %s2 = inlined_call_operand.hbm [shape: f32[1,512], index: 2, kind: input, shape index: {}]
  %s3 = inlined_call_operand.hbm [shape: bf16[512,384], index: 3, kind: input, shape index: {}]
  %s4 = inlined_call_operand.vmem [shape: f32[1,384], index: 4, kind: input, shape index: {}]
  %s5 = inlined_call_operand.hbm [shape: bf16[384,384], index: 5, kind: input, shape index: {}]
  %s6 = inlined_call_operand.hbm [shape: bf16[384,128], index: 6, kind: input, shape index: {}]
  %s7 = inlined_call_operand.hbm [shape: f32[8,128], index: 7, kind: output, shape index: {}]
  %s8 = sld [smem:[#allocation0]]
  $region62: #{tpu_custom_call.1} parent=0
    _
  %s10 = ssub.s32 1, %s8
  %s11 = scalar_select 0, %s10, %s8
  $region1: #{tpu_custom_call.1} parent=0
    #allocation2 [shape = 'u8[28672]{0}', space=vmem, size = 0x7000, scoped, tag = 'input window, operand 0, single buffered']
    #allocation3 [shape = 's32[1]{0}', space=sflag, size = 0x4, scoped, tag = 'scoped memory for tpu_custom_call.1']
    #allocation4 [shape = 's32[1]{0}', space=sflag, size = 0x4, scoped, tag = 'scoped memory for tpu_custom_call.1']
    #allocation5 [shape = 'u8[802816]{0}', space=vmem, size = 0xc4000, scoped, tag = 'input window, operand 1, single buffered']
    #allocation6 [shape = 's32[1]{0}', space=sflag, size = 0x4, scoped, tag = 'scoped memory for tpu_custom_call.1']
    #allocation7 [shape = 'u8[2048]{0}', space=vmem, size = 0x800, scoped, tag = 'input window, operand 2, single buffered']
    #allocation8 [shape = 'u8[393216]{0}', space=vmem, size = 0x60000, scoped, tag = 'input window, operand 3, single buffered']
    #allocation9 [shape = 's32[1]{0}', space=sflag, size = 0x4, scoped, tag = 'scoped memory for tpu_custom_call.1']
    #allocation10 [shape = 'u8[294912]{0}', space=vmem, size = 0x48000, scoped, tag = 'input window, operand 5, single buffered']
    #allocation11 [shape = 'u8[98304]{0}', space=vmem, size = 0x18000, scoped, tag = 'input window, operand 6, single buffered']
    #allocation12 [shape = 's32[1]{0}', space=sflag, size = 0x4, scoped, tag = 'scoped memory for tpu_custom_call.1']
    #allocation13 [shape = 'u8[4096]{0}', space=vmem, size = 0x1000, scoped, tag = 'output window, operand 0, single buffered']
    %12 = vsyncpa [#allocation3], 0
    %13 = vsyncpa [#allocation6], 0
    %14 = vsyncpa [#allocation9], 0
    %15 = vsyncpa [#allocation12], 0
    %16 = vsyncpa [#allocation4], 0
    // Predicated region
    $region2: #{tpu_custom_call.1} parent=1 // pred_check
      _
    $region3: #{tpu_custom_call.1} parent=1 // pred_check_branch
      %18 = sbr.rel (0) target = $region5
    $region4: #{tpu_custom_call.1} parent=1 // pred_region
      %s20 = ssub.s32 896, 896
      %21 = vsyncadd [#allocation3], %s20
      %s23 = sshll.u32 [#allocation2], 4
      %s24 = int_to_ptr.vmem [resolvable:$true] %s23
      %26 = dma.hbm_to_vmem [thread:$0]  %s0, 896, %s24, [#allocation3]
    $region5: #{tpu_custom_call.1} parent=1 // pred_fallthru
      _
    // Predicated region
    $region6: #{tpu_custom_call.1} parent=1 // pred_check
      _
    $region7: #{tpu_custom_call.1} parent=1 // pred_check_branch
      %28 = sbr.rel (0) target = $region9
    $region8: #{tpu_custom_call.1} parent=1 // pred_region
      %s30 = ssub.s32 25088, 25088
      %31 = vsyncadd [#allocation6], %s30
      %s32 = sshll.u32 [#allocation5], 4
      %s33 = int_to_ptr.vmem [resolvable:$true] %s32
      %38 = dma.hbm_to_vmem [thread:$0]  %s1, 25088, %s33, [#allocation6], 256, 256, 16
    $region9: #{tpu_custom_call.1} parent=1 // pred_fallthru
      _
    // Predicated region
    $region10: #{tpu_custom_call.1} parent=1 // pred_check
      _
    $region11: #{tpu_custom_call.1} parent=1 // pred_check_branch
      %40 = sbr.rel (0) target = $region13
    $region12: #{tpu_custom_call.1} parent=1 // pred_region
      %s42 = ssub.s32 64, 64
      %43 = vsyncadd [#allocation6], %s42
      %s45 = sshll.u32 [#allocation7], 4
      %s46 = int_to_ptr.vmem [resolvable:$true] %s45
      %48 = dma.hbm_to_vmem [thread:$0]  %s2, 64, %s46, [#allocation6]
    $region13: #{tpu_custom_call.1} parent=1 // pred_fallthru
      _
    // Predicated region
    $region14: #{tpu_custom_call.1} parent=1 // pred_check
      _
    $region15: #{tpu_custom_call.1} parent=1 // pred_check_branch
      %50 = sbr.rel (0) target = $region17
    $region16: #{tpu_custom_call.1} parent=1 // pred_region
      %s52 = ssub.s32 12288, 12288
      %53 = vsyncadd [#allocation9], %s52
      %s54 = sshll.u32 [#allocation8], 4
      %s55 = int_to_ptr.vmem [resolvable:$true] %s54
      %60 = dma.hbm_to_vmem [thread:$0]  %s3, 12288, %s55, [#allocation9], 192, 192, 12
    $region17: #{tpu_custom_call.1} parent=1 // pred_fallthru
      _
    // Predicated region
    $region18: #{tpu_custom_call.1} parent=1 // pred_check
      _
    $region19: #{tpu_custom_call.1} parent=1 // pred_check_branch
      %62 = sbr.rel (0) target = $region21
    $region20: #{tpu_custom_call.1} parent=1 // pred_region
      _
    $region21: #{tpu_custom_call.1} parent=1 // pred_fallthru
      _
    // Predicated region
    $region22: #{tpu_custom_call.1} parent=1 // pred_check
      _
    $region23: #{tpu_custom_call.1} parent=1 // pred_check_branch
      %64 = sbr.rel (0) target = $region25
    $region24: #{tpu_custom_call.1} parent=1 // pred_region
      %s66 = ssub.s32 9216, 9216
      %67 = vsyncadd [#allocation9], %s66
      %s68 = sshll.u32 [#allocation10], 4
      %s69 = int_to_ptr.vmem [resolvable:$true] %s68
      %74 = dma.hbm_to_vmem [thread:$0]  %s5, 9216, %s69, [#allocation9], 192, 192, 12
    $region25: #{tpu_custom_call.1} parent=1 // pred_fallthru
      _
    // Predicated region
    $region26: #{tpu_custom_call.1} parent=1 // pred_check
      _
    $region27: #{tpu_custom_call.1} parent=1 // pred_check_branch
      %76 = sbr.rel (0) target = $region29
    $region28: #{tpu_custom_call.1} parent=1 // pred_region
      %s78 = ssub.s32 3072, 3072
      %79 = vsyncadd [#allocation12], %s78
      %s80 = sshll.u32 [#allocation11], 4
      %s81 = int_to_ptr.vmem [resolvable:$true] %s80
      %86 = dma.hbm_to_vmem [thread:$0]  %s6, 3072, %s81, [#allocation12], 64, 64, 4
    $region29: #{tpu_custom_call.1} parent=1 // pred_fallthru
      _
    // Predicated region
    $region30: #{tpu_custom_call.1} parent=1 // pred_check
      _
    $region31: #{tpu_custom_call.1} parent=1 // pred_check_branch
      %88 = sbr.rel (0) target = $region33
    $region32: #{tpu_custom_call.1} parent=1 // pred_region
      %89 = dma.done [#allocation3], 896
    $region33: #{tpu_custom_call.1} parent=1 // pred_fallthru
      _
    // Predicated region
    $region34: #{tpu_custom_call.1} parent=1 // pred_check
      _
    $region35: #{tpu_custom_call.1} parent=1 // pred_check_branch
      %91 = sbr.rel (0) target = $region37
    $region36: #{tpu_custom_call.1} parent=1 // pred_region
      %92 = dma.done [#allocation6], 25088
    $region37: #{tpu_custom_call.1} parent=1 // pred_fallthru
      _
    // Predicated region
    $region38: #{tpu_custom_call.1} parent=1 // pred_check
      _
    $region39: #{tpu_custom_call.1} parent=1 // pred_check_branch
      %94 = sbr.rel (0) target = $region41
    $region40: #{tpu_custom_call.1} parent=1 // pred_region
      %95 = dma.done [#allocation6], 64
    $region41: #{tpu_custom_call.1} parent=1 // pred_fallthru
      _
    // Predicated region
    $region42: #{tpu_custom_call.1} parent=1 // pred_check
      _
    $region43: #{tpu_custom_call.1} parent=1 // pred_check_branch
      %97 = sbr.rel (0) target = $region45
    $region44: #{tpu_custom_call.1} parent=1 // pred_region
      %98 = dma.done [#allocation9], 12288
    $region45: #{tpu_custom_call.1} parent=1 // pred_fallthru
      _
    // Predicated region
    $region46: #{tpu_custom_call.1} parent=1 // pred_check
      _
    $region47: #{tpu_custom_call.1} parent=1 // pred_check_branch
      %100 = sbr.rel (0) target = $region49
    $region48: #{tpu_custom_call.1} parent=1 // pred_region
      %101 = dma.done [#allocation9], 9216
    $region49: #{tpu_custom_call.1} parent=1 // pred_fallthru
      _
    // Predicated region
    $region50: #{tpu_custom_call.1} parent=1 // pred_check
      _
    $region51: #{tpu_custom_call.1} parent=1 // pred_check_branch
      %103 = sbr.rel (0) target = $region53
    $region52: #{tpu_custom_call.1} parent=1 // pred_region
      %104 = dma.done [#allocation12], 3072
    $region53: #{tpu_custom_call.1} parent=1 // pred_fallthru
      _
    %v106 = vld [vmem:[#allocation2] sm:$0xff]
    %v107 = vld [vmem:[#allocation2 + $0x8] sm:$0xff]
    %v108 = vld [vmem:[#allocation2 + $0x10] sm:$0xff]
    %v109 = vld [vmem:[#allocation2 + $0x18] sm:$0xff]
    %v110 = vld [vmem:[#allocation2 + $0x20] sm:$0xff]
    %v111 = vld [vmem:[#allocation2 + $0x28] sm:$0xff]
    %v112 = vld [vmem:[#allocation2 + $0x30] sm:$0xff]
    %v113 = vpack.c.bf16 %v106, %v106
    %v114 = vpack.c.bf16 %v107, %v107
    %v115 = vpack.c.bf16 %v108, %v108
    %v116 = vpack.c.bf16 %v109, %v109
    %v117 = vpack.c.bf16 %v110, %v110
    %v118 = vpack.c.bf16 %v111, %v111
    %v119 = vpack.c.bf16 %v112, %v112
    %v120 = vld [vmem:[#allocation5] sm:$0xff]
    %v121 = vld [vmem:[#allocation5 + $0x8] sm:$0xff]
    %v122 = vld [vmem:[#allocation5 + $0x10] sm:$0xff]
    %v123 = vld [vmem:[#allocation5 + $0x18] sm:$0xff]
    %v124 = vld [vmem:[#allocation5 + $0x20] sm:$0xff]
    %v125 = vld [vmem:[#allocation5 + $0x28] sm:$0xff]
    %v126 = vld [vmem:[#allocation5 + $0x30] sm:$0xff]
    %v127 = vld [vmem:[#allocation5 + $0x38] sm:$0xff]
    %v128 = vld [vmem:[#allocation5 + $0x40] sm:$0xff]
    %v129 = vld [vmem:[#allocation5 + $0x48] sm:$0xff]
    %v130 = vld [vmem:[#allocation5 + $0x50] sm:$0xff]
    %v131 = vld [vmem:[#allocation5 + $0x58] sm:$0xff]
    %v132 = vld [vmem:[#allocation5 + $0x60] sm:$0xff]
    %v133 = vld [vmem:[#allocation5 + $0x68] sm:$0xff]
    %v134 = vld [vmem:[#allocation5 + $0x70] sm:$0xff]
    %v135 = vld [vmem:[#allocation5 + $0x78] sm:$0xff]
    %v136 = vld [vmem:[#allocation5 + $0x80] sm:$0xff]
    %v137 = vld [vmem:[#allocation5 + $0x88] sm:$0xff]
    %v138 = vld [vmem:[#allocation5 + $0x90] sm:$0xff]
    %v139 = vld [vmem:[#allocation5 + $0x98] sm:$0xff]
    %v140 = vld [vmem:[#allocation5 + $0xa0] sm:$0xff]
    %v141 = vld [vmem:[#allocation5 + $0xa8] sm:$0xff]
    %v142 = vld [vmem:[#allocation5 + $0xb0] sm:$0xff]
    %v143 = vld [vmem:[#allocation5 + $0xb8] sm:$0xff]
    %v144 = vld [vmem:[#allocation5 + $0xc0] sm:$0xff]
    %v145 = vld [vmem:[#allocation5 + $0xc8] sm:$0xff]
    %v146 = vld [vmem:[#allocation5 + $0xd0] sm:$0xff]
    %v147 = vld [vmem:[#allocation5 + $0xd8] sm:$0xff]
    %v148 = vld [vmem:[#allocation5 + $0xe0] sm:$0xff]
    %v149 = vld [vmem:[#allocation5 + $0xe8] sm:$0xff]
    %v150 = vld [vmem:[#allocation5 + $0xf0] sm:$0xff]
    %v151 = vld [vmem:[#allocation5 + $0xf8] sm:$0xff]
    %v152 = vld [vmem:[#allocation5 + $0x100] sm:$0xff]
    %v153 = vld [vmem:[#allocation5 + $0x108] sm:$0xff]
    %v154 = vld [vmem:[#allocation5 + $0x110] sm:$0xff]
    %v155 = vld [vmem:[#allocation5 + $0x118] sm:$0xff]
    %v156 = vld [vmem:[#allocation5 + $0x120] sm:$0xff]
    %v157 = vld [vmem:[#allocation5 + $0x128] sm:$0xff]
    %v158 = vld [vmem:[#allocation5 + $0x130] sm:$0xff]
    %v159 = vld [vmem:[#allocation5 + $0x138] sm:$0xff]
    %v160 = vld [vmem:[#allocation5 + $0x140] sm:$0xff]
    %v161 = vld [vmem:[#allocation5 + $0x148] sm:$0xff]
    %v162 = vld [vmem:[#allocation5 + $0x150] sm:$0xff]
    %v163 = vld [vmem:[#allocation5 + $0x158] sm:$0xff]
    %v164 = vld [vmem:[#allocation5 + $0x160] sm:$0xff]
    %v165 = vld [vmem:[#allocation5 + $0x168] sm:$0xff]
    %v166 = vld [vmem:[#allocation5 + $0x170] sm:$0xff]
    %v167 = vld [vmem:[#allocation5 + $0x178] sm:$0xff]
    %v168 = vld [vmem:[#allocation5 + $0x180] sm:$0xff]
    %v169 = vld [vmem:[#allocation5 + $0x188] sm:$0xff]
    %v170 = vld [vmem:[#allocation5 + $0x190] sm:$0xff]
    %v171 = vld [vmem:[#allocation5 + $0x198] sm:$0xff]
    %v172 = vld [vmem:[#allocation5 + $0x1a0] sm:$0xff]
    %v173 = vld [vmem:[#allocation5 + $0x1a8] sm:$0xff]
    %v174 = vld [vmem:[#allocation5 + $0x1b0] sm:$0xff]
    %v175 = vld [vmem:[#allocation5 + $0x1b8] sm:$0xff]
    %v176 = vld [vmem:[#allocation5 + $0x1c0] sm:$0xff]
    %v177 = vld [vmem:[#allocation5 + $0x1c8] sm:$0xff]
    %v178 = vld [vmem:[#allocation5 + $0x1d0] sm:$0xff]
    %v179 = vld [vmem:[#allocation5 + $0x1d8] sm:$0xff]
    %v180 = vld [vmem:[#allocation5 + $0x1e0] sm:$0xff]
    %v181 = vld [vmem:[#allocation5 + $0x1e8] sm:$0xff]
    %v182 = vld [vmem:[#allocation5 + $0x1f0] sm:$0xff]
    %v183 = vld [vmem:[#allocation5 + $0x1f8] sm:$0xff]
    %v184 = vld [vmem:[#allocation5 + $0x200] sm:$0xff]
    %v185 = vld [vmem:[#allocation5 + $0x208] sm:$0xff]
    %v186 = vld [vmem:[#allocation5 + $0x210] sm:$0xff]
    %v187 = vld [vmem:[#allocation5 + $0x218] sm:$0xff]
    %v188 = vld [vmem:[#allocation5 + $0x220] sm:$0xff]
    %v189 = vld [vmem:[#allocation5 + $0x228] sm:$0xff]
    %v190 = vld [vmem:[#allocation5 + $0x230] sm:$0xff]
    %v191 = vld [vmem:[#allocation5 + $0x238] sm:$0xff]
    %v192 = vld [vmem:[#allocation5 + $0x240] sm:$0xff]
    %v193 = vld [vmem:[#allocation5 + $0x248] sm:$0xff]
    %v194 = vld [vmem:[#allocation5 + $0x250] sm:$0xff]
    %v195 = vld [vmem:[#allocation5 + $0x258] sm:$0xff]
    %v196 = vld [vmem:[#allocation5 + $0x260] sm:$0xff]
    %v197 = vld [vmem:[#allocation5 + $0x268] sm:$0xff]
    %v198 = vld [vmem:[#allocation5 + $0x270] sm:$0xff]
    %v199 = vld [vmem:[#allocation5 + $0x278] sm:$0xff]
    %v200 = vld [vmem:[#allocation5 + $0x280] sm:$0xff]
    %v201 = vld [vmem:[#allocation5 + $0x288] sm:$0xff]
    %v202 = vld [vmem:[#allocation5 + $0x290] sm:$0xff]
    %v203 = vld [vmem:[#allocation5 + $0x298] sm:$0xff]
    %v204 = vld [vmem:[#allocation5 + $0x2a0] sm:$0xff]
    %v205 = vld [vmem:[#allocation5 + $0x2a8] sm:$0xff]
    %v206 = vld [vmem:[#allocation5 + $0x2b0] sm:$0xff]
    %v207 = vld [vmem:[#allocation5 + $0x2b8] sm:$0xff]
    %v208 = vld [vmem:[#allocation5 + $0x2c0] sm:$0xff]
    %v209 = vld [vmem:[#allocation5 + $0x2c8] sm:$0xff]
    %v210 = vld [vmem:[#allocation5 + $0x2d0] sm:$0xff]
    %v211 = vld [vmem:[#allocation5 + $0x2d8] sm:$0xff]
    %v212 = vld [vmem:[#allocation5 + $0x2e0] sm:$0xff]
    %v213 = vld [vmem:[#allocation5 + $0x2e8] sm:$0xff]
    %v214 = vld [vmem:[#allocation5 + $0x2f0] sm:$0xff]
    %v215 = vld [vmem:[#allocation5 + $0x2f8] sm:$0xff]
    %v216 = vld [vmem:[#allocation5 + $0x300] sm:$0xff]
    %v217 = vld [vmem:[#allocation5 + $0x308] sm:$0xff]
    %v218 = vld [vmem:[#allocation5 + $0x310] sm:$0xff]
    %v219 = vld [vmem:[#allocation5 + $0x318] sm:$0xff]
    %v220 = vld [vmem:[#allocation5 + $0x320] sm:$0xff]
    %v221 = vld [vmem:[#allocation5 + $0x328] sm:$0xff]
    %v222 = vld [vmem:[#allocation5 + $0x330] sm:$0xff]
    %v223 = vld [vmem:[#allocation5 + $0x338] sm:$0xff]
    %v224 = vld [vmem:[#allocation5 + $0x340] sm:$0xff]
    %v225 = vld [vmem:[#allocation5 + $0x348] sm:$0xff]
    %v226 = vld [vmem:[#allocation5 + $0x350] sm:$0xff]
    %v227 = vld [vmem:[#allocation5 + $0x358] sm:$0xff]
    %v228 = vld [vmem:[#allocation5 + $0x360] sm:$0xff]
    %v229 = vld [vmem:[#allocation5 + $0x368] sm:$0xff]
    %v230 = vld [vmem:[#allocation5 + $0x370] sm:$0xff]
    %v231 = vld [vmem:[#allocation5 + $0x378] sm:$0xff]
    %v232 = vld [vmem:[#allocation5 + $0x380] sm:$0xff]
    %v233 = vld [vmem:[#allocation5 + $0x388] sm:$0xff]
    %v234 = vld [vmem:[#allocation5 + $0x390] sm:$0xff]
    %v235 = vld [vmem:[#allocation5 + $0x398] sm:$0xff]
    %v236 = vld [vmem:[#allocation5 + $0x3a0] sm:$0xff]
    %v237 = vld [vmem:[#allocation5 + $0x3a8] sm:$0xff]
    %v238 = vld [vmem:[#allocation5 + $0x3b0] sm:$0xff]
    %v239 = vld [vmem:[#allocation5 + $0x3b8] sm:$0xff]
    %v240 = vld [vmem:[#allocation5 + $0x3c0] sm:$0xff]
    %v241 = vld [vmem:[#allocation5 + $0x3c8] sm:$0xff]
    %v242 = vld [vmem:[#allocation5 + $0x3d0] sm:$0xff]
    %v243 = vld [vmem:[#allocation5 + $0x3d8] sm:$0xff]
    %v244 = vld [vmem:[#allocation5 + $0x3e0] sm:$0xff]
    %v245 = vld [vmem:[#allocation5 + $0x3e8] sm:$0xff]
    %v246 = vld [vmem:[#allocation5 + $0x3f0] sm:$0xff]
    %v247 = vld [vmem:[#allocation5 + $0x3f8] sm:$0xff]
    %v248 = vld [vmem:[#allocation5 + $0x400] sm:$0xff]
    %v249 = vld [vmem:[#allocation5 + $0x408] sm:$0xff]
    %v250 = vld [vmem:[#allocation5 + $0x410] sm:$0xff]
    %v251 = vld [vmem:[#allocation5 + $0x418] sm:$0xff]
    %v252 = vld [vmem:[#allocation5 + $0x420] sm:$0xff]
    %v253 = vld [vmem:[#allocation5 + $0x428] sm:$0xff]
    %v254 = vld [vmem:[#allocation5 + $0x430] sm:$0xff]
    %v255 = vld [vmem:[#allocation5 + $0x438] sm:$0xff]
    %v256 = vld [vmem:[#allocation5 + $0x440] sm:$0xff]
    %v257 = vld [vmem:[#allocation5 + $0x448] sm:$0xff]
    %v258 = vld [vmem:[#allocation5 + $0x450] sm:$0xff]
    %v259 = vld [vmem:[#allocation5 + $0x458] sm:$0xff]
    %v260 = vld [vmem:[#allocation5 + $0x460] sm:$0xff]
    %v261 = vld [vmem:[#allocation5 + $0x468] sm:$0xff]
    %v262 = vld [vmem:[#allocation5 + $0x470] sm:$0xff]
    %v263 = vld [vmem:[#allocation5 + $0x478] sm:$0xff]
    %v264 = vld [vmem:[#allocation5 + $0x480] sm:$0xff]
    %v265 = vld [vmem:[#allocation5 + $0x488] sm:$0xff]
    %v266 = vld [vmem:[#allocation5 + $0x490] sm:$0xff]
    %v267 = vld [vmem:[#allocation5 + $0x498] sm:$0xff]
    %v268 = vld [vmem:[#allocation5 + $0x4a0] sm:$0xff]
    %v269 = vld [vmem:[#allocation5 + $0x4a8] sm:$0xff]
    %v270 = vld [vmem:[#allocation5 + $0x4b0] sm:$0xff]
    %v271 = vld [vmem:[#allocation5 + $0x4b8] sm:$0xff]
    %v272 = vld [vmem:[#allocation5 + $0x4c0] sm:$0xff]
    %v273 = vld [vmem:[#allocation5 + $0x4c8] sm:$0xff]
    %v274 = vld [vmem:[#allocation5 + $0x4d0] sm:$0xff]
    %v275 = vld [vmem:[#allocation5 + $0x4d8] sm:$0xff]
    %v276 = vld [vmem:[#allocation5 + $0x4e0] sm:$0xff]
    %v277 = vld [vmem:[#allocation5 + $0x4e8] sm:$0xff]
    %v278 = vld [vmem:[#allocation5 + $0x4f0] sm:$0xff]
    %v279 = vld [vmem:[#allocation5 + $0x4f8] sm:$0xff]
    %v280 = vld [vmem:[#allocation5 + $0x500] sm:$0xff]
    %v281 = vld [vmem:[#allocation5 + $0x508] sm:$0xff]
    %v282 = vld [vmem:[#allocation5 + $0x510] sm:$0xff]
    %v283 = vld [vmem:[#allocation5 + $0x518] sm:$0xff]
    %v284 = vld [vmem:[#allocation5 + $0x520] sm:$0xff]
    %v285 = vld [vmem:[#allocation5 + $0x528] sm:$0xff]
    %v286 = vld [vmem:[#allocation5 + $0x530] sm:$0xff]
    %v287 = vld [vmem:[#allocation5 + $0x538] sm:$0xff]
    %v288 = vld [vmem:[#allocation5 + $0x540] sm:$0xff]
    %v289 = vld [vmem:[#allocation5 + $0x548] sm:$0xff]
    %v290 = vld [vmem:[#allocation5 + $0x550] sm:$0xff]
    %v291 = vld [vmem:[#allocation5 + $0x558] sm:$0xff]
    %v292 = vld [vmem:[#allocation5 + $0x560] sm:$0xff]
    %v293 = vld [vmem:[#allocation5 + $0x568] sm:$0xff]
    %v294 = vld [vmem:[#allocation5 + $0x570] sm:$0xff]
    %v295 = vld [vmem:[#allocation5 + $0x578] sm:$0xff]
    %v296 = vld [vmem:[#allocation5 + $0x580] sm:$0xff]
    %v297 = vld [vmem:[#allocation5 + $0x588] sm:$0xff]
    %v298 = vld [vmem:[#allocation5 + $0x590] sm:$0xff]
    %v299 = vld [vmem:[#allocation5 + $0x598] sm:$0xff]
    %v300 = vld [vmem:[#allocation5 + $0x5a0] sm:$0xff]
    %v301 = vld [vmem:[#allocation5 + $0x5a8] sm:$0xff]
    %v302 = vld [vmem:[#allocation5 + $0x5b0] sm:$0xff]
    %v303 = vld [vmem:[#allocation5 + $0x5b8] sm:$0xff]
    %v304 = vld [vmem:[#allocation5 + $0x5c0] sm:$0xff]
    %v305 = vld [vmem:[#allocation5 + $0x5c8] sm:$0xff]
    %v306 = vld [vmem:[#allocation5 + $0x5d0] sm:$0xff]
    %v307 = vld [vmem:[#allocation5 + $0x5d8] sm:$0xff]
    %v308 = vld [vmem:[#allocation5 + $0x5e0] sm:$0xff]
    %v309 = vld [vmem:[#allocation5 + $0x5e8] sm:$0xff]
    %v310 = vld [vmem:[#allocation5 + $0x5f0] sm:$0xff]
    %v311 = vld [vmem:[#allocation5 + $0x5f8] sm:$0xff]
    %v312 = vld [vmem:[#allocation5 + $0x600] sm:$0xff]
    %v313 = vld [vmem:[#allocation5 + $0x608] sm:$0xff]
    %v314 = vld [vmem:[#allocation5 + $0x610] sm:$0xff]
    %v315 = vld [vmem:[#allocation5 + $0x618] sm:$0xff]
    %v316 = vld [vmem:[#allocation7] sm:$0xf]
    %v318 = vlaneseq
    %v319 = vshrl.u32 %v318, 7
    %v320 = vsub.s32 0, %v319
    %v321 = vrot.slane %v316, %v320
    %v322 = vlaneseq
    %v323 = vshrl.u32 %v322, 7
    %v324 = vsub.s32 1, %v323
    %v325 = vrot.slane %v316, %v324
    %v326 = vlaneseq
    %v327 = vshrl.u32 %v326, 7
    %v328 = vsub.s32 2, %v327
    %v329 = vrot.slane %v316, %v328
    %v330 = vlaneseq
    %v331 = vshrl.u32 %v330, 7
    %v332 = vsub.s32 3, %v331
    %v333 = vrot.slane %v316, %v332
    %v534 = vunpack.c.l.b16 %v120
    %v535 = vunpack.c.h.b16 %v120
    %v536 = vunpack.c.l.b16 %v121
    %v537 = vunpack.c.h.b16 %v121
    %v538 = vunpack.c.l.b16 %v122
    %v539 = vunpack.c.h.b16 %v122
    %v540 = vunpack.c.l.b16 %v123
    %v541 = vunpack.c.h.b16 %v123
    %v542 = vunpack.c.l.b16 %v124
    %v543 = vunpack.c.h.b16 %v124
    %v544 = vunpack.c.l.b16 %v125
    %v545 = vunpack.c.h.b16 %v125
    %v546 = vunpack.c.l.b16 %v126
    %v547 = vunpack.c.h.b16 %v126
    %v548 = vunpack.c.l.b16 %v127
    %v549 = vunpack.c.h.b16 %v127
    %v550 = vunpack.c.l.b16 %v128
    %v551 = vunpack.c.h.b16 %v128
    %v552 = vunpack.c.l.b16 %v129
    %v553 = vunpack.c.h.b16 %v129
    %v554 = vunpack.c.l.b16 %v130
    %v555 = vunpack.c.h.b16 %v130
    %v556 = vunpack.c.l.b16 %v131
    %v557 = vunpack.c.h.b16 %v131
    %v558 = vunpack.c.l.b16 %v132
    %v559 = vunpack.c.h.b16 %v132
    %v560 = vunpack.c.l.b16 %v133
    %v561 = vunpack.c.h.b16 %v133
    %v562 = vunpack.c.l.b16 %v134
    %v563 = vunpack.c.h.b16 %v134
    %v564 = vunpack.c.l.b16 %v135
    %v565 = vunpack.c.h.b16 %v135
    %v566 = vunpack.c.l.b16 %v136
    %v567 = vunpack.c.h.b16 %v136
    %v568 = vunpack.c.l.b16 %v137
    %v569 = vunpack.c.h.b16 %v137
    %v570 = vunpack.c.l.b16 %v138
    %v571 = vunpack.c.h.b16 %v138
    %v572 = vunpack.c.l.b16 %v139
    %v573 = vunpack.c.h.b16 %v139
    %v574 = vunpack.c.l.b16 %v140
    %v575 = vunpack.c.h.b16 %v140
    %v576 = vunpack.c.l.b16 %v141
    %v577 = vunpack.c.h.b16 %v141
    %v578 = vunpack.c.l.b16 %v142
    %v579 = vunpack.c.h.b16 %v142
    %v580 = vunpack.c.l.b16 %v143
    %v581 = vunpack.c.h.b16 %v143
    %v582 = vunpack.c.l.b16 %v144
    %v583 = vunpack.c.h.b16 %v144
    %v584 = vunpack.c.l.b16 %v145
    %v585 = vunpack.c.h.b16 %v145
    %v586 = vunpack.c.l.b16 %v146
    %v587 = vunpack.c.h.b16 %v146
    %v588 = vunpack.c.l.b16 %v147
    %v589 = vunpack.c.h.b16 %v147
    %v590 = vunpack.c.l.b16 %v148
    %v591 = vunpack.c.h.b16 %v148
    %v592 = vunpack.c.l.b16 %v149
    %v593 = vunpack.c.h.b16 %v149
    %v594 = vunpack.c.l.b16 %v150
    %v595 = vunpack.c.h.b16 %v150
    %v596 = vunpack.c.l.b16 %v151
    %v597 = vunpack.c.h.b16 %v151
    %v598 = vunpack.c.l.b16 %v152
    %v599 = vunpack.c.h.b16 %v152
    %v600 = vunpack.c.l.b16 %v153
    %v601 = vunpack.c.h.b16 %v153
    %v602 = vunpack.c.l.b16 %v154
    %v603 = vunpack.c.h.b16 %v154
    %v604 = vunpack.c.l.b16 %v155
    %v605 = vunpack.c.h.b16 %v155
    %v606 = vunpack.c.l.b16 %v156
    %v607 = vunpack.c.h.b16 %v156
    %v608 = vunpack.c.l.b16 %v157
    %v609 = vunpack.c.h.b16 %v157
    %v610 = vunpack.c.l.b16 %v158
    %v611 = vunpack.c.h.b16 %v158
    %v612 = vunpack.c.l.b16 %v159
    %v613 = vunpack.c.h.b16 %v159
    %v614 = vunpack.c.l.b16 %v160
    %v615 = vunpack.c.h.b16 %v160
    %v616 = vunpack.c.l.b16 %v161
    %v617 = vunpack.c.h.b16 %v161
    %v618 = vunpack.c.l.b16 %v162
    %v619 = vunpack.c.h.b16 %v162
    %v620 = vunpack.c.l.b16 %v163
    %v621 = vunpack.c.h.b16 %v163
    %v622 = vunpack.c.l.b16 %v164
    %v623 = vunpack.c.h.b16 %v164
    %v624 = vunpack.c.l.b16 %v165
    %v625 = vunpack.c.h.b16 %v165
    %v626 = vunpack.c.l.b16 %v166
    %v627 = vunpack.c.h.b16 %v166
    %v628 = vunpack.c.l.b16 %v167
    %v629 = vunpack.c.h.b16 %v167
    %v630 = vunpack.c.l.b16 %v168
    %v631 = vunpack.c.h.b16 %v168
    %v632 = vunpack.c.l.b16 %v169
    %v633 = vunpack.c.h.b16 %v169
    %v634 = vunpack.c.l.b16 %v170
    %v635 = vunpack.c.h.b16 %v170
    %v636 = vunpack.c.l.b16 %v171
    %v637 = vunpack.c.h.b16 %v171
    %v638 = vunpack.c.l.b16 %v172
    %v639 = vunpack.c.h.b16 %v172
    %v640 = vunpack.c.l.b16 %v173
    %v641 = vunpack.c.h.b16 %v173
    %v642 = vunpack.c.l.b16 %v174
    %v643 = vunpack.c.h.b16 %v174
    %v644 = vunpack.c.l.b16 %v175
    %v645 = vunpack.c.h.b16 %v175
    %v646 = vunpack.c.l.b16 %v176
    %v647 = vunpack.c.h.b16 %v176
    %v648 = vunpack.c.l.b16 %v177
    %v649 = vunpack.c.h.b16 %v177
    %v650 = vunpack.c.l.b16 %v178
    %v651 = vunpack.c.h.b16 %v178
    %v652 = vunpack.c.l.b16 %v179
    %v653 = vunpack.c.h.b16 %v179
    %v654 = vunpack.c.l.b16 %v180
    %v655 = vunpack.c.h.b16 %v180
    %v656 = vunpack.c.l.b16 %v181
    %v657 = vunpack.c.h.b16 %v181
    %v658 = vunpack.c.l.b16 %v182
    %v659 = vunpack.c.h.b16 %v182
    %v660 = vunpack.c.l.b16 %v183
    %v661 = vunpack.c.h.b16 %v183
    %v662 = vunpack.c.l.b16 %v184
    %v663 = vunpack.c.h.b16 %v184
    %v664 = vunpack.c.l.b16 %v185
    %v665 = vunpack.c.h.b16 %v185
    %v666 = vunpack.c.l.b16 %v186
    %v667 = vunpack.c.h.b16 %v186
    %v668 = vunpack.c.l.b16 %v187
    %v669 = vunpack.c.h.b16 %v187
    %v670 = vunpack.c.l.b16 %v188
    %v671 = vunpack.c.h.b16 %v188
    %v672 = vunpack.c.l.b16 %v189
    %v673 = vunpack.c.h.b16 %v189
    %v674 = vunpack.c.l.b16 %v190
    %v675 = vunpack.c.h.b16 %v190
    %v676 = vunpack.c.l.b16 %v191
    %v677 = vunpack.c.h.b16 %v191
    %v678 = vunpack.c.l.b16 %v192
    %v679 = vunpack.c.h.b16 %v192
    %v680 = vunpack.c.l.b16 %v193
    %v681 = vunpack.c.h.b16 %v193
    %v682 = vunpack.c.l.b16 %v194
    %v683 = vunpack.c.h.b16 %v194
    %v684 = vunpack.c.l.b16 %v195
    %v685 = vunpack.c.h.b16 %v195
    %v686 = vunpack.c.l.b16 %v196
    %v687 = vunpack.c.h.b16 %v196
    %v688 = vunpack.c.l.b16 %v197
    %v689 = vunpack.c.h.b16 %v197
    %v690 = vunpack.c.l.b16 %v198
    %v691 = vunpack.c.h.b16 %v198
    %v692 = vunpack.c.l.b16 %v199
    %v693 = vunpack.c.h.b16 %v199
    %v694 = vunpack.c.l.b16 %v200
    %v695 = vunpack.c.h.b16 %v200
    %v696 = vunpack.c.l.b16 %v201
    %v697 = vunpack.c.h.b16 %v201
    %v698 = vunpack.c.l.b16 %v202
    %v699 = vunpack.c.h.b16 %v202
    %v700 = vunpack.c.l.b16 %v203
    %v701 = vunpack.c.h.b16 %v203
    %v702 = vunpack.c.l.b16 %v204
    %v703 = vunpack.c.h.b16 %v204
    %v704 = vunpack.c.l.b16 %v205
    %v705 = vunpack.c.h.b16 %v205
    %v706 = vunpack.c.l.b16 %v206
    %v707 = vunpack.c.h.b16 %v206
    %v708 = vunpack.c.l.b16 %v207
    %v709 = vunpack.c.h.b16 %v207
    %v710 = vunpack.c.l.b16 %v208
    %v711 = vunpack.c.h.b16 %v208
    %v712 = vunpack.c.l.b16 %v209
    %v713 = vunpack.c.h.b16 %v209
    %v714 = vunpack.c.l.b16 %v210
    %v715 = vunpack.c.h.b16 %v210
    %v716 = vunpack.c.l.b16 %v211
    %v717 = vunpack.c.h.b16 %v211
    %v718 = vunpack.c.l.b16 %v212
    %v719 = vunpack.c.h.b16 %v212
    %v720 = vunpack.c.l.b16 %v213
    %v721 = vunpack.c.h.b16 %v213
    %v722 = vunpack.c.l.b16 %v214
    %v723 = vunpack.c.h.b16 %v214
    %v724 = vunpack.c.l.b16 %v215
    %v725 = vunpack.c.h.b16 %v215
    %v726 = vunpack.c.l.b16 %v216
    %v727 = vunpack.c.h.b16 %v216
    %v728 = vunpack.c.l.b16 %v217
    %v729 = vunpack.c.h.b16 %v217
    %v730 = vunpack.c.l.b16 %v218
    %v731 = vunpack.c.h.b16 %v218
    %v732 = vunpack.c.l.b16 %v219
    %v733 = vunpack.c.h.b16 %v219
    %v734 = vunpack.c.l.b16 %v220
    %v735 = vunpack.c.h.b16 %v220
    %v736 = vunpack.c.l.b16 %v221
    %v737 = vunpack.c.h.b16 %v221
    %v738 = vunpack.c.l.b16 %v222
    %v739 = vunpack.c.h.b16 %v222
    %v740 = vunpack.c.l.b16 %v223
    %v741 = vunpack.c.h.b16 %v223
    %v742 = vunpack.c.l.b16 %v224
    %v743 = vunpack.c.h.b16 %v224
    %v744 = vunpack.c.l.b16 %v225
    %v745 = vunpack.c.h.b16 %v225
    %v746 = vunpack.c.l.b16 %v226
    %v747 = vunpack.c.h.b16 %v226
    %v748 = vunpack.c.l.b16 %v227
    %v749 = vunpack.c.h.b16 %v227
    %v750 = vunpack.c.l.b16 %v228
    %v751 = vunpack.c.h.b16 %v228
    %v752 = vunpack.c.l.b16 %v229
    %v753 = vunpack.c.h.b16 %v229
    %v754 = vunpack.c.l.b16 %v230
    %v755 = vunpack.c.h.b16 %v230
    %v756 = vunpack.c.l.b16 %v231
    %v757 = vunpack.c.h.b16 %v231
    %v758 = vunpack.c.l.b16 %v232
    %v759 = vunpack.c.h.b16 %v232
    %v760 = vunpack.c.l.b16 %v233
    %v761 = vunpack.c.h.b16 %v233
    %v762 = vunpack.c.l.b16 %v234
    %v763 = vunpack.c.h.b16 %v234
    %v764 = vunpack.c.l.b16 %v235
    %v765 = vunpack.c.h.b16 %v235
    %v766 = vunpack.c.l.b16 %v236
    %v767 = vunpack.c.h.b16 %v236
    %v768 = vunpack.c.l.b16 %v237
    %v769 = vunpack.c.h.b16 %v237
    %v770 = vunpack.c.l.b16 %v238
    %v771 = vunpack.c.h.b16 %v238
    %v772 = vunpack.c.l.b16 %v239
    %v773 = vunpack.c.h.b16 %v239
    %v774 = vunpack.c.l.b16 %v240
    %v775 = vunpack.c.h.b16 %v240
    %v776 = vunpack.c.l.b16 %v241
    %v777 = vunpack.c.h.b16 %v241
    %v778 = vunpack.c.l.b16 %v242
    %v779 = vunpack.c.h.b16 %v242
    %v780 = vunpack.c.l.b16 %v243
    %v781 = vunpack.c.h.b16 %v243
    %v782 = vunpack.c.l.b16 %v244
    %v783 = vunpack.c.h.b16 %v244
    %v784 = vunpack.c.l.b16 %v245
    %v785 = vunpack.c.h.b16 %v245
    %v786 = vunpack.c.l.b16 %v246
    %v787 = vunpack.c.h.b16 %v246
    %v788 = vunpack.c.l.b16 %v247
    %v789 = vunpack.c.h.b16 %v247
    %v790 = vunpack.c.l.b16 %v248
    %v791 = vunpack.c.h.b16 %v248
    %v792 = vunpack.c.l.b16 %v249
    %v793 = vunpack.c.h.b16 %v249
    %v794 = vunpack.c.l.b16 %v250
    %v795 = vunpack.c.h.b16 %v250
    %v796 = vunpack.c.l.b16 %v251
    %v797 = vunpack.c.h.b16 %v251
    %v798 = vunpack.c.l.b16 %v252
    %v799 = vunpack.c.h.b16 %v252
    %v800 = vunpack.c.l.b16 %v253
    %v801 = vunpack.c.h.b16 %v253
    %v802 = vunpack.c.l.b16 %v254
    %v803 = vunpack.c.h.b16 %v254
    %v804 = vunpack.c.l.b16 %v255
    %v805 = vunpack.c.h.b16 %v255
    %v806 = vunpack.c.l.b16 %v256
    %v807 = vunpack.c.h.b16 %v256
    %v808 = vunpack.c.l.b16 %v257
    %v809 = vunpack.c.h.b16 %v257
    %v810 = vunpack.c.l.b16 %v258
    %v811 = vunpack.c.h.b16 %v258
    %v812 = vunpack.c.l.b16 %v259
    %v813 = vunpack.c.h.b16 %v259
    %v814 = vunpack.c.l.b16 %v260
    %v815 = vunpack.c.h.b16 %v260
    %v816 = vunpack.c.l.b16 %v261
    %v817 = vunpack.c.h.b16 %v261
    %v818 = vunpack.c.l.b16 %v262
    %v819 = vunpack.c.h.b16 %v262
    %v820 = vunpack.c.l.b16 %v263
    %v821 = vunpack.c.h.b16 %v263
    %v822 = vunpack.c.l.b16 %v264
    %v823 = vunpack.c.h.b16 %v264
    %v824 = vunpack.c.l.b16 %v265
    %v825 = vunpack.c.h.b16 %v265
    %v826 = vunpack.c.l.b16 %v266
    %v827 = vunpack.c.h.b16 %v266
    %v828 = vunpack.c.l.b16 %v267
    %v829 = vunpack.c.h.b16 %v267
    %v830 = vunpack.c.l.b16 %v268
    %v831 = vunpack.c.h.b16 %v268
    %v832 = vunpack.c.l.b16 %v269
    %v833 = vunpack.c.h.b16 %v269
    %v834 = vunpack.c.l.b16 %v270
    %v835 = vunpack.c.h.b16 %v270
    %v836 = vunpack.c.l.b16 %v271
    %v837 = vunpack.c.h.b16 %v271
    %v838 = vunpack.c.l.b16 %v272
    %v839 = vunpack.c.h.b16 %v272
    %v840 = vunpack.c.l.b16 %v273
    %v841 = vunpack.c.h.b16 %v273
    %v842 = vunpack.c.l.b16 %v274
    %v843 = vunpack.c.h.b16 %v274
    %v844 = vunpack.c.l.b16 %v275
    %v845 = vunpack.c.h.b16 %v275
    %v846 = vunpack.c.l.b16 %v276
    %v847 = vunpack.c.h.b16 %v276
    %v848 = vunpack.c.l.b16 %v277
    %v849 = vunpack.c.h.b16 %v277
    %v850 = vunpack.c.l.b16 %v278
    %v851 = vunpack.c.h.b16 %v278
    %v852 = vunpack.c.l.b16 %v279
    %v853 = vunpack.c.h.b16 %v279
    %v854 = vunpack.c.l.b16 %v280
    %v855 = vunpack.c.h.b16 %v280
    %v856 = vunpack.c.l.b16 %v281
    %v857 = vunpack.c.h.b16 %v281
    %v858 = vunpack.c.l.b16 %v282
    %v859 = vunpack.c.h.b16 %v282
    %v860 = vunpack.c.l.b16 %v283
    %v861 = vunpack.c.h.b16 %v283
    %v862 = vunpack.c.l.b16 %v284
    %v863 = vunpack.c.h.b16 %v284
    %v864 = vunpack.c.l.b16 %v285
    %v865 = vunpack.c.h.b16 %v285
    %v866 = vunpack.c.l.b16 %v286
    %v867 = vunpack.c.h.b16 %v286
    %v868 = vunpack.c.l.b16 %v287
    %v869 = vunpack.c.h.b16 %v287
    %v870 = vunpack.c.l.b16 %v288
    %v871 = vunpack.c.h.b16 %v288
    %v872 = vunpack.c.l.b16 %v289
    %v873 = vunpack.c.h.b16 %v289
    %v874 = vunpack.c.l.b16 %v290
    %v875 = vunpack.c.h.b16 %v290
    %v876 = vunpack.c.l.b16 %v291
    %v877 = vunpack.c.h.b16 %v291
    %v878 = vunpack.c.l.b16 %v292
    %v879 = vunpack.c.h.b16 %v292
    %v880 = vunpack.c.l.b16 %v293
    %v881 = vunpack.c.h.b16 %v293
    %v882 = vunpack.c.l.b16 %v294
    %v883 = vunpack.c.h.b16 %v294
    %v884 = vunpack.c.l.b16 %v295
    %v885 = vunpack.c.h.b16 %v295
    %v886 = vunpack.c.l.b16 %v296
    %v887 = vunpack.c.h.b16 %v296
    %v888 = vunpack.c.l.b16 %v297
    %v889 = vunpack.c.h.b16 %v297
    %v890 = vunpack.c.l.b16 %v298
    %v891 = vunpack.c.h.b16 %v298
    %v892 = vunpack.c.l.b16 %v299
    %v893 = vunpack.c.h.b16 %v299
    %v894 = vunpack.c.l.b16 %v300
    %v895 = vunpack.c.h.b16 %v300
    %v896 = vunpack.c.l.b16 %v301
    %v897 = vunpack.c.h.b16 %v301
    %v898 = vunpack.c.l.b16 %v302
    %v899 = vunpack.c.h.b16 %v302
    %v900 = vunpack.c.l.b16 %v303
    %v901 = vunpack.c.h.b16 %v303
    %v902 = vunpack.c.l.b16 %v304
    %v903 = vunpack.c.h.b16 %v304
    %v904 = vunpack.c.l.b16 %v305
    %v905 = vunpack.c.h.b16 %v305
    %v906 = vunpack.c.l.b16 %v306
    %v907 = vunpack.c.h.b16 %v306
    %v908 = vunpack.c.l.b16 %v307
    %v909 = vunpack.c.h.b16 %v307
    %v910 = vunpack.c.l.b16 %v308
    %v911 = vunpack.c.h.b16 %v308
    %v912 = vunpack.c.l.b16 %v309
    %v913 = vunpack.c.h.b16 %v309
    %v914 = vunpack.c.l.b16 %v310
    %v915 = vunpack.c.h.b16 %v310
    %v916 = vunpack.c.l.b16 %v311
    %v917 = vunpack.c.h.b16 %v311
    %v918 = vunpack.c.l.b16 %v312
    %v919 = vunpack.c.h.b16 %v312
    %v920 = vunpack.c.l.b16 %v313
    %v921 = vunpack.c.h.b16 %v313
    %v922 = vunpack.c.l.b16 %v314
    %v923 = vunpack.c.h.b16 %v314
    %v924 = vunpack.c.l.b16 %v315
    %v925 = vunpack.c.h.b16 %v315
    %v926 = vpack.c.b16 %v538, %v534
    %v927 = vpack.c.b16 %v539, %v535
    %v928 = vpack.c.b16 %v540, %v536
    %v929 = vpack.c.b16 %v541, %v537
    %v930 = vpack.c.b16 %v546, %v542
    %v931 = vpack.c.b16 %v547, %v543
    %v932 = vpack.c.b16 %v548, %v544
    %v933 = vpack.c.b16 %v549, %v545
    %v934 = vpack.c.b16 %v554, %v550
    %v935 = vpack.c.b16 %v555, %v551
    %v936 = vpack.c.b16 %v556, %v552
    %v937 = vpack.c.b16 %v557, %v553
    %v938 = vpack.c.b16 %v562, %v558
    %v939 = vpack.c.b16 %v563, %v559
    %v940 = vpack.c.b16 %v564, %v560
    %v941 = vpack.c.b16 %v565, %v561
    %v942 = vpack.c.b16 %v570, %v566
    %v943 = vpack.c.b16 %v571, %v567
    %v944 = vpack.c.b16 %v572, %v568
    %v945 = vpack.c.b16 %v573, %v569
    %v946 = vpack.c.b16 %v578, %v574
    %v947 = vpack.c.b16 %v579, %v575
    %v948 = vpack.c.b16 %v580, %v576
    %v949 = vpack.c.b16 %v581, %v577
    %v950 = vpack.c.b16 %v586, %v582
    %v951 = vpack.c.b16 %v587, %v583
    %v952 = vpack.c.b16 %v588, %v584
    %v953 = vpack.c.b16 %v589, %v585
    %v954 = vpack.c.b16 %v594, %v590
    %v955 = vpack.c.b16 %v595, %v591
    %v956 = vpack.c.b16 %v596, %v592
    %v957 = vpack.c.b16 %v597, %v593
    %v958 = vpack.c.b16 %v602, %v598
    %v959 = vpack.c.b16 %v603, %v599
    %v960 = vpack.c.b16 %v604, %v600
    %v961 = vpack.c.b16 %v605, %v601
    %v962 = vpack.c.b16 %v610, %v606
    %v963 = vpack.c.b16 %v611, %v607
    %v964 = vpack.c.b16 %v612, %v608
    %v965 = vpack.c.b16 %v613, %v609
    %v966 = vpack.c.b16 %v618, %v614
    %v967 = vpack.c.b16 %v619, %v615
    %v968 = vpack.c.b16 %v620, %v616
    %v969 = vpack.c.b16 %v621, %v617
    %v970 = vpack.c.b16 %v626, %v622
    %v971 = vpack.c.b16 %v627, %v623
    %v972 = vpack.c.b16 %v628, %v624
    %v973 = vpack.c.b16 %v629, %v625
    %v974 = vpack.c.b16 %v634, %v630
    %v975 = vpack.c.b16 %v635, %v631
    %v976 = vpack.c.b16 %v636, %v632
    %v977 = vpack.c.b16 %v637, %v633
    %v978 = vpack.c.b16 %v642, %v638
    %v979 = vpack.c.b16 %v643, %v639
    %v980 = vpack.c.b16 %v644, %v640
    %v981 = vpack.c.b16 %v645, %v641
    %v982 = vpack.c.b16 %v650, %v646
    %v983 = vpack.c.b16 %v651, %v647
    %v984 = vpack.c.b16 %v652, %v648
    %v985 = vpack.c.b16 %v653, %v649
    %v986 = vpack.c.b16 %v658, %v654
    %v987 = vpack.c.b16 %v659, %v655
    %v988 = vpack.c.b16 %v660, %v656
    %v989 = vpack.c.b16 %v661, %v657
    %v990 = vpack.c.b16 %v666, %v662
    %v991 = vpack.c.b16 %v667, %v663
    %v992 = vpack.c.b16 %v668, %v664
    %v993 = vpack.c.b16 %v669, %v665
    %v994 = vpack.c.b16 %v674, %v670
    %v995 = vpack.c.b16 %v675, %v671
    %v996 = vpack.c.b16 %v676, %v672
    %v997 = vpack.c.b16 %v677, %v673
    %v998 = vpack.c.b16 %v682, %v678
    %v999 = vpack.c.b16 %v683, %v679
    %v1000 = vpack.c.b16 %v684, %v680
    %v1001 = vpack.c.b16 %v685, %v681
    %v1002 = vpack.c.b16 %v690, %v686
    %v1003 = vpack.c.b16 %v691, %v687
    %v1004 = vpack.c.b16 %v692, %v688
    %v1005 = vpack.c.b16 %v693, %v689
    %v1006 = vpack.c.b16 %v698, %v694
    %v1007 = vpack.c.b16 %v699, %v695
    %v1008 = vpack.c.b16 %v700, %v696
    %v1009 = vpack.c.b16 %v701, %v697
    %v1010 = vpack.c.b16 %v706, %v702
    %v1011 = vpack.c.b16 %v707, %v703
    %v1012 = vpack.c.b16 %v708, %v704
    %v1013 = vpack.c.b16 %v709, %v705
    %v1014 = vpack.c.b16 %v714, %v710
    %v1015 = vpack.c.b16 %v715, %v711
    %v1016 = vpack.c.b16 %v716, %v712
    %v1017 = vpack.c.b16 %v717, %v713
    %v1018 = vpack.c.b16 %v722, %v718
    %v1019 = vpack.c.b16 %v723, %v719
    %v1020 = vpack.c.b16 %v724, %v720
    %v1021 = vpack.c.b16 %v725, %v721
    %v1022 = vpack.c.b16 %v730, %v726
    %v1023 = vpack.c.b16 %v731, %v727
    %v1024 = vpack.c.b16 %v732, %v728
    %v1025 = vpack.c.b16 %v733, %v729
    %v1026 = vpack.c.b16 %v738, %v734
    %v1027 = vpack.c.b16 %v739, %v735
    %v1028 = vpack.c.b16 %v740, %v736
    %v1029 = vpack.c.b16 %v741, %v737
    %v1030 = vpack.c.b16 %v746, %v742
    %v1031 = vpack.c.b16 %v747, %v743
    %v1032 = vpack.c.b16 %v748, %v744
    %v1033 = vpack.c.b16 %v749, %v745
    %v1034 = vpack.c.b16 %v754, %v750
    %v1035 = vpack.c.b16 %v755, %v751
    %v1036 = vpack.c.b16 %v756, %v752
    %v1037 = vpack.c.b16 %v757, %v753
    %v1038 = vpack.c.b16 %v762, %v758
    %v1039 = vpack.c.b16 %v763, %v759
    %v1040 = vpack.c.b16 %v764, %v760
    %v1041 = vpack.c.b16 %v765, %v761
    %v1042 = vpack.c.b16 %v770, %v766
    %v1043 = vpack.c.b16 %v771, %v767
    %v1044 = vpack.c.b16 %v772, %v768
    %v1045 = vpack.c.b16 %v773, %v769
    %v1046 = vpack.c.b16 %v778, %v774
    %v1047 = vpack.c.b16 %v779, %v775
    %v1048 = vpack.c.b16 %v780, %v776
    %v1049 = vpack.c.b16 %v781, %v777
    %v1050 = vpack.c.b16 %v786, %v782
    %v1051 = vpack.c.b16 %v787, %v783
    %v1052 = vpack.c.b16 %v788, %v784
    %v1053 = vpack.c.b16 %v789, %v785
    %v1054 = vpack.c.b16 %v794, %v790
    %v1055 = vpack.c.b16 %v795, %v791
    %v1056 = vpack.c.b16 %v796, %v792
    %v1057 = vpack.c.b16 %v797, %v793
    %v1058 = vpack.c.b16 %v802, %v798
    %v1059 = vpack.c.b16 %v803, %v799
    %v1060 = vpack.c.b16 %v804, %v800
    %v1061 = vpack.c.b16 %v805, %v801
    %v1062 = vpack.c.b16 %v810, %v806
    %v1063 = vpack.c.b16 %v811, %v807
    %v1064 = vpack.c.b16 %v812, %v808
    %v1065 = vpack.c.b16 %v813, %v809
    %v1066 = vpack.c.b16 %v818, %v814
    %v1067 = vpack.c.b16 %v819, %v815
    %v1068 = vpack.c.b16 %v820, %v816
    %v1069 = vpack.c.b16 %v821, %v817
    %v1070 = vpack.c.b16 %v826, %v822
    %v1071 = vpack.c.b16 %v827, %v823
    %v1072 = vpack.c.b16 %v828, %v824
    %v1073 = vpack.c.b16 %v829, %v825
    %v1074 = vpack.c.b16 %v834, %v830
    %v1075 = vpack.c.b16 %v835, %v831
    %v1076 = vpack.c.b16 %v836, %v832
    %v1077 = vpack.c.b16 %v837, %v833
    %v1078 = vpack.c.b16 %v842, %v838
    %v1079 = vpack.c.b16 %v843, %v839
    %v1080 = vpack.c.b16 %v844, %v840
    %v1081 = vpack.c.b16 %v845, %v841
    %v1082 = vpack.c.b16 %v850, %v846
    %v1083 = vpack.c.b16 %v851, %v847
    %v1084 = vpack.c.b16 %v852, %v848
    %v1085 = vpack.c.b16 %v853, %v849
    %v1086 = vpack.c.b16 %v858, %v854
    %v1087 = vpack.c.b16 %v859, %v855
    %v1088 = vpack.c.b16 %v860, %v856
    %v1089 = vpack.c.b16 %v861, %v857
    %v1090 = vpack.c.b16 %v866, %v862
    %v1091 = vpack.c.b16 %v867, %v863
    %v1092 = vpack.c.b16 %v868, %v864
    %v1093 = vpack.c.b16 %v869, %v865
    %v1094 = vpack.c.b16 %v874, %v870
    %v1095 = vpack.c.b16 %v875, %v871
    %v1096 = vpack.c.b16 %v876, %v872
    %v1097 = vpack.c.b16 %v877, %v873
    %v1098 = vpack.c.b16 %v882, %v878
    %v1099 = vpack.c.b16 %v883, %v879
    %v1100 = vpack.c.b16 %v884, %v880
    %v1101 = vpack.c.b16 %v885, %v881
    %v1102 = vpack.c.b16 %v890, %v886
    %v1103 = vpack.c.b16 %v891, %v887
    %v1104 = vpack.c.b16 %v892, %v888
    %v1105 = vpack.c.b16 %v893, %v889
    %v1106 = vpack.c.b16 %v898, %v894
    %v1107 = vpack.c.b16 %v899, %v895
    %v1108 = vpack.c.b16 %v900, %v896
    %v1109 = vpack.c.b16 %v901, %v897
    %v1110 = vpack.c.b16 %v906, %v902
    %v1111 = vpack.c.b16 %v907, %v903
    %v1112 = vpack.c.b16 %v908, %v904
    %v1113 = vpack.c.b16 %v909, %v905
    %v1114 = vpack.c.b16 %v914, %v910
    %v1115 = vpack.c.b16 %v915, %v911
    %v1116 = vpack.c.b16 %v916, %v912
    %v1117 = vpack.c.b16 %v917, %v913
    %v1118 = vpack.c.b16 %v922, %v918
    %v1119 = vpack.c.b16 %v923, %v919
    %v1120 = vpack.c.b16 %v924, %v920
    %v1121 = vpack.c.b16 %v925, %v921
    %vm1318 = vcmask 130048
    %v1320 = vsel %vm1318, %v119, 0
    %1322 = vmatprep.subr.bf16.mxu0 %v955
    %1323 = vmatpush1.bf16.msra.mxu0 %v954
    %1324 = vmatprep.subr.bf16.mxu0 %v951
    %1325 = vmatpush1.bf16.msra.mxu0 %v950
    %1326 = vmatprep.subr.bf16.mxu0 %v947
    %1327 = vmatpush1.bf16.msra.mxu0 %v946
    %1328 = vmatprep.subr.bf16.mxu0 %v943
    %1329 = vmatpush1.bf16.msra.mxu0 %v942
    %1330 = vmatprep.subr.bf16.mxu0 %v939
    %1331 = vmatpush1.bf16.msra.mxu0 %v938
    %1332 = vmatprep.subr.bf16.mxu0 %v935
    %1333 = vmatpush1.bf16.msra.mxu0 %v934
    %1334 = vmatprep.subr.bf16.mxu0 %v931
    %1335 = vmatpush1.bf16.msra.mxu0 %v930
    %1336 = vmatprep.subr.bf16.mxu0 %v927
    %1337 = vmatpush1.bf16.msra.mxu0 %v926
    %1338 = vmatprep.subr.bf16.mxu0 %v987
    %1339 = vmatpush2.bf16.msra.mxu0 %v986
    %1340 = vmatprep.subr.bf16.mxu0 %v983
    %1341 = vmatpush2.bf16.msra.mxu0 %v982
    %1342 = vmatprep.subr.bf16.mxu0 %v979
    %1343 = vmatpush2.bf16.msra.mxu0 %v978
    %1344 = vmatprep.subr.bf16.mxu0 %v975
    %1345 = vmatpush2.bf16.msra.mxu0 %v974
    %1346 = vmatprep.subr.bf16.mxu0 %v971
    %1347 = vmatpush2.bf16.msra.mxu0 %v970
    %1348 = vmatprep.subr.bf16.mxu0 %v967
    %1349 = vmatpush2.bf16.msra.mxu0 %v966
    %1350 = vmatprep.subr.bf16.mxu0 %v963
    %1351 = vmatpush2.bf16.msra.mxu0 %v962
    %1352 = vmatprep.subr.bf16.mxu0 %v959
    %1353 = vmatpush2.bf16.msra.mxu0 %v958
    %1354 = vmatprep.mubr.bf16.mxu0 %v114
    %1355 = vmatmul.mubr.bf16.gmra.mxu0 %v113
    %v1356 = vpop.f32.mrf.mxu0
    %v1357 = vadd.f32 %v321, %v1356
    %v1358 = vpop.f32.mrf.mxu0
    %v1359 = vadd.f32 %v325, %v1358
    %v1360 = vpop.f32.mrf.mxu0
    %v1361 = vpop.f32.mrf.mxu0
    %1362 = vdwg.mxu0
    %1363 = vmatprep.subr.bf16.mxu0 %v1019
    %1364 = vmatpush1.bf16.msra.mxu0 %v1018
    %1365 = vmatprep.subr.bf16.mxu0 %v1015
    %1366 = vmatpush1.bf16.msra.mxu0 %v1014
    %1367 = vmatprep.subr.bf16.mxu0 %v1011
    %1368 = vmatpush1.bf16.msra.mxu0 %v1010
    %1369 = vmatprep.subr.bf16.mxu0 %v1007
    %1370 = vmatpush1.bf16.msra.mxu0 %v1006
    %1371 = vmatprep.subr.bf16.mxu0 %v1003
    %1372 = vmatpush1.bf16.msra.mxu0 %v1002
    %1373 = vmatprep.subr.bf16.mxu0 %v999
    %1374 = vmatpush1.bf16.msra.mxu0 %v998
    %1375 = vmatprep.subr.bf16.mxu0 %v995
    %1376 = vmatpush1.bf16.msra.mxu0 %v994
    %1377 = vmatprep.subr.bf16.mxu0 %v991
    %1378 = vmatpush1.bf16.msra.mxu0 %v990
    %1379 = vmatprep.subr.bf16.mxu0 %v1051
    %1380 = vmatpush2.bf16.msra.mxu0 %v1050
    %1381 = vmatprep.subr.bf16.mxu0 %v1047
    %1382 = vmatpush2.bf16.msra.mxu0 %v1046
    %1383 = vmatprep.subr.bf16.mxu0 %v1043
    %1384 = vmatpush2.bf16.msra.mxu0 %v1042
    %1385 = vmatprep.subr.bf16.mxu0 %v1039
    %1386 = vmatpush2.bf16.msra.mxu0 %v1038
    %1387 = vmatprep.subr.bf16.mxu0 %v1035
    %1388 = vmatpush2.bf16.msra.mxu0 %v1034
    %1389 = vmatprep.subr.bf16.mxu0 %v1031
    %1390 = vmatpush2.bf16.msra.mxu0 %v1030
    %1391 = vmatprep.subr.bf16.mxu0 %v1027
    %1392 = vmatpush2.bf16.msra.mxu0 %v1026
    %1393 = vmatprep.subr.bf16.mxu0 %v1023
    %1394 = vmatpush2.bf16.msra.mxu0 %v1022
    %1395 = vmatprep.mubr.bf16.mxu0 %v116
    %1396 = vmatmul.mubr.bf16.gmra.mxu0 %v115
    %v1397 = vpop.f32.mrf.mxu0
    %v1398 = vadd.f32 %v1357, %v1397
    %v1399 = vpop.f32.mrf.mxu0
    %v1400 = vadd.f32 %v1359, %v1399
    %v1401 = vpop.f32.mrf.mxu0
    %v1402 = vpop.f32.mrf.mxu0
    %1403 = vdwg.mxu0
    %1404 = vmatprep.subr.bf16.mxu0 %v1083
    %1405 = vmatpush1.bf16.msra.mxu0 %v1082
    %1406 = vmatprep.subr.bf16.mxu0 %v1079
    %1407 = vmatpush1.bf16.msra.mxu0 %v1078
    %1408 = vmatprep.subr.bf16.mxu0 %v1075
    %1409 = vmatpush1.bf16.msra.mxu0 %v1074
    %1410 = vmatprep.subr.bf16.mxu0 %v1071
    %1411 = vmatpush1.bf16.msra.mxu0 %v1070
    %1412 = vmatprep.subr.bf16.mxu0 %v1067
    %1413 = vmatpush1.bf16.msra.mxu0 %v1066
    %1414 = vmatprep.subr.bf16.mxu0 %v1063
    %1415 = vmatpush1.bf16.msra.mxu0 %v1062
    %1416 = vmatprep.subr.bf16.mxu0 %v1059
    %1417 = vmatpush1.bf16.msra.mxu0 %v1058
    %1418 = vmatprep.subr.bf16.mxu0 %v1055
    %1419 = vmatpush1.bf16.msra.mxu0 %v1054
    %1420 = vmatprep.subr.bf16.mxu0 %v1115
    %1421 = vmatpush2.bf16.msra.mxu0 %v1114
    %1422 = vmatprep.subr.bf16.mxu0 %v1111
    %1423 = vmatpush2.bf16.msra.mxu0 %v1110
    %1424 = vmatprep.subr.bf16.mxu0 %v1107
    %1425 = vmatpush2.bf16.msra.mxu0 %v1106
    %1426 = vmatprep.subr.bf16.mxu0 %v1103
    %1427 = vmatpush2.bf16.msra.mxu0 %v1102
    %1428 = vmatprep.subr.bf16.mxu0 %v1099
    %1429 = vmatpush2.bf16.msra.mxu0 %v1098
    %1430 = vmatprep.subr.bf16.mxu0 %v1095
    %1431 = vmatpush2.bf16.msra.mxu0 %v1094
    %1432 = vmatprep.subr.bf16.mxu0 %v1091
    %1433 = vmatpush2.bf16.msra.mxu0 %v1090
    %1434 = vmatprep.subr.bf16.mxu0 %v1087
    %1435 = vmatpush2.bf16.msra.mxu0 %v1086
    %1436 = vmatprep.mubr.bf16.mxu0 %v118
    %1437 = vmatmul.mubr.bf16.gmra.mxu0 %v117
    %v1438 = vpop.f32.mrf.mxu0
    %v1439 = vadd.f32 %v1398, %v1438
    %v1440 = vpop.f32.mrf.mxu0
    %v1441 = vadd.f32 %v1400, %v1440
    %v1442 = vpop.f32.mrf.mxu0
    %v1443 = vpop.f32.mrf.mxu0
    %1444 = vdwg.mxu0
    %1445 = vmatprep.subr.bf16.mxu0 0
    %1446 = vmatpush1.bf16.msra.mxu0 0
    %1447 = vmatprep.subr.bf16.mxu0 0
    %1448 = vmatpush1.bf16.msra.mxu0 0
    %1449 = vmatprep.subr.bf16.mxu0 0
    %1450 = vmatpush1.bf16.msra.mxu0 0
    %1451 = vmatprep.subr.bf16.mxu0 0
    %1452 = vmatpush1.bf16.msra.mxu0 0
    %1453 = vmatprep.subr.bf16.mxu0 0
    %1454 = vmatpush1.bf16.msra.mxu0 0
    %1455 = vmatprep.subr.bf16.mxu0 0
    %1456 = vmatpush1.bf16.msra.mxu0 0
    %1457 = vmatprep.subr.bf16.mxu0 0
    %1458 = vmatpush1.bf16.msra.mxu0 0
    %1459 = vmatprep.subr.bf16.mxu0 %v1119
    %1460 = vmatpush1.bf16.msra.mxu0 %v1118
    %1461 = vmatprep.subr.bf16.mxu0 0
    %1462 = vmatpush2.bf16.msra.mxu0 0
    %1463 = vmatprep.subr.bf16.mxu0 0
    %1464 = vmatpush2.bf16.msra.mxu0 0
    %1465 = vmatprep.subr.bf16.mxu0 0
    %1466 = vmatpush2.bf16.msra.mxu0 0
    %1467 = vmatprep.subr.bf16.mxu0 0
    %1468 = vmatpush2.bf16.msra.mxu0 0
    %1469 = vmatprep.subr.bf16.mxu0 0
    %1470 = vmatpush2.bf16.msra.mxu0 0
    %1471 = vmatprep.subr.bf16.mxu0 0
    %1472 = vmatpush2.bf16.msra.mxu0 0
    %1473 = vmatprep.subr.bf16.mxu0 0
    %1474 = vmatpush2.bf16.msra.mxu0 0
    %1475 = vmatprep.subr.bf16.mxu0 0
    %1476 = vmatpush2.bf16.msra.mxu0 0
    %1477 = vmatprep.mubr.bf16.mxu0 0
    %1478 = vmatmul.mubr.bf16.gmra.mxu0 %v1320
    %v1479 = vpop.f32.mrf.mxu0
    %v1480 = vadd.f32 %v1439, %v1479
    %v1481 = vpop.f32.mrf.mxu0
    %v1482 = vadd.f32 %v1441, %v1481
    %v1483 = vpop.f32.mrf.mxu0
    %v1484 = vpop.f32.mrf.mxu0
    %1485 = vdwg.mxu0
    %1486 = vmatprep.subr.bf16.mxu0 %v957
    %1487 = vmatpush1.bf16.msra.mxu0 %v956
    %1488 = vmatprep.subr.bf16.mxu0 %v953
    %1489 = vmatpush1.bf16.msra.mxu0 %v952
    %1490 = vmatprep.subr.bf16.mxu0 %v949
    %1491 = vmatpush1.bf16.msra.mxu0 %v948
    %1492 = vmatprep.subr.bf16.mxu0 %v945
    %1493 = vmatpush1.bf16.msra.mxu0 %v944
    %1494 = vmatprep.subr.bf16.mxu0 %v941
    %1495 = vmatpush1.bf16.msra.mxu0 %v940
    %1496 = vmatprep.subr.bf16.mxu0 %v937
    %1497 = vmatpush1.bf16.msra.mxu0 %v936
    %1498 = vmatprep.subr.bf16.mxu0 %v933
    %1499 = vmatpush1.bf16.msra.mxu0 %v932
    %1500 = vmatprep.subr.bf16.mxu0 %v929
    %1501 = vmatpush1.bf16.msra.mxu0 %v928
    %1502 = vmatprep.subr.bf16.mxu0 %v989
    %1503 = vmatpush2.bf16.msra.mxu0 %v988
    %1504 = vmatprep.subr.bf16.mxu0 %v985
    %1505 = vmatpush2.bf16.msra.mxu0 %v984
    %1506 = vmatprep.subr.bf16.mxu0 %v981
    %1507 = vmatpush2.bf16.msra.mxu0 %v980
    %1508 = vmatprep.subr.bf16.mxu0 %v977
    %1509 = vmatpush2.bf16.msra.mxu0 %v976
    %1510 = vmatprep.subr.bf16.mxu0 %v973
    %1511 = vmatpush2.bf16.msra.mxu0 %v972
    %1512 = vmatprep.subr.bf16.mxu0 %v969
    %1513 = vmatpush2.bf16.msra.mxu0 %v968
    %1514 = vmatprep.subr.bf16.mxu0 %v965
    %1515 = vmatpush2.bf16.msra.mxu0 %v964
    %1516 = vmatprep.subr.bf16.mxu0 %v961
    %1517 = vmatpush2.bf16.msra.mxu0 %v960
    %1518 = vmatprep.mubr.bf16.mxu0 %v114
    %1519 = vmatmul.mubr.bf16.gmra.mxu0 %v113
    %v1520 = vpop.f32.mrf.mxu0
    %v1521 = vadd.f32 %v329, %v1520
    %v1522 = vpop.f32.mrf.mxu0
    %v1523 = vadd.f32 %v333, %v1522
    %v1524 = vpop.f32.mrf.mxu0
    %v1525 = vpop.f32.mrf.mxu0
    %1526 = vdwg.mxu0
    %1527 = vmatprep.subr.bf16.mxu0 %v1021
    %1528 = vmatpush1.bf16.msra.mxu0 %v1020
    %1529 = vmatprep.subr.bf16.mxu0 %v1017
    %1530 = vmatpush1.bf16.msra.mxu0 %v1016
    %1531 = vmatprep.subr.bf16.mxu0 %v1013
    %1532 = vmatpush1.bf16.msra.mxu0 %v1012
    %1533 = vmatprep.subr.bf16.mxu0 %v1009
    %1534 = vmatpush1.bf16.msra.mxu0 %v1008
    %1535 = vmatprep.subr.bf16.mxu0 %v1005
    %1536 = vmatpush1.bf16.msra.mxu0 %v1004
    %1537 = vmatprep.subr.bf16.mxu0 %v1001
    %1538 = vmatpush1.bf16.msra.mxu0 %v1000
    %1539 = vmatprep.subr.bf16.mxu0 %v997
    %1540 = vmatpush1.bf16.msra.mxu0 %v996
    %1541 = vmatprep.subr.bf16.mxu0 %v993
    %1542 = vmatpush1.bf16.msra.mxu0 %v992
    %1543 = vmatprep.subr.bf16.mxu0 %v1053
    %1544 = vmatpush2.bf16.msra.mxu0 %v1052
    %1545 = vmatprep.subr.bf16.mxu0 %v1049
    %1546 = vmatpush2.bf16.msra.mxu0 %v1048
    %1547 = vmatprep.subr.bf16.mxu0 %v1045
    %1548 = vmatpush2.bf16.msra.mxu0 %v1044
    %1549 = vmatprep.subr.bf16.mxu0 %v1041
    %1550 = vmatpush2.bf16.msra.mxu0 %v1040
    %1551 = vmatprep.subr.bf16.mxu0 %v1037
    %1552 = vmatpush2.bf16.msra.mxu0 %v1036
    %1553 = vmatprep.subr.bf16.mxu0 %v1033
    %1554 = vmatpush2.bf16.msra.mxu0 %v1032
    %1555 = vmatprep.subr.bf16.mxu0 %v1029
    %1556 = vmatpush2.bf16.msra.mxu0 %v1028
    %1557 = vmatprep.subr.bf16.mxu0 %v1025
    %1558 = vmatpush2.bf16.msra.mxu0 %v1024
    %1559 = vmatprep.mubr.bf16.mxu0 %v116
    %1560 = vmatmul.mubr.bf16.gmra.mxu0 %v115
    %v1561 = vpop.f32.mrf.mxu0
    %v1562 = vadd.f32 %v1521, %v1561
    %v1563 = vpop.f32.mrf.mxu0
    %v1564 = vadd.f32 %v1523, %v1563
    %v1565 = vpop.f32.mrf.mxu0
    %v1566 = vpop.f32.mrf.mxu0
    %1567 = vdwg.mxu0
    %1568 = vmatprep.subr.bf16.mxu0 %v1085
    %1569 = vmatpush1.bf16.msra.mxu0 %v1084
    %1570 = vmatprep.subr.bf16.mxu0 %v1081
    %1571 = vmatpush1.bf16.msra.mxu0 %v1080
    %1572 = vmatprep.subr.bf16.mxu0 %v1077
    %1573 = vmatpush1.bf16.msra.mxu0 %v1076
    %1574 = vmatprep.subr.bf16.mxu0 %v1073
    %1575 = vmatpush1.bf16.msra.mxu0 %v1072
    %1576 = vmatprep.subr.bf16.mxu0 %v1069
    %1577 = vmatpush1.bf16.msra.mxu0 %v1068
    %1578 = vmatprep.subr.bf16.mxu0 %v1065
    %1579 = vmatpush1.bf16.msra.mxu0 %v1064
    %1580 = vmatprep.subr.bf16.mxu0 %v1061
    %1581 = vmatpush1.bf16.msra.mxu0 %v1060
    %1582 = vmatprep.subr.bf16.mxu0 %v1057
    %1583 = vmatpush1.bf16.msra.mxu0 %v1056
    %1584 = vmatprep.subr.bf16.mxu0 %v1117
    %1585 = vmatpush2.bf16.msra.mxu0 %v1116
    %1586 = vmatprep.subr.bf16.mxu0 %v1113
    %1587 = vmatpush2.bf16.msra.mxu0 %v1112
    %1588 = vmatprep.subr.bf16.mxu0 %v1109
    %1589 = vmatpush2.bf16.msra.mxu0 %v1108
    %1590 = vmatprep.subr.bf16.mxu0 %v1105
    %1591 = vmatpush2.bf16.msra.mxu0 %v1104
    %1592 = vmatprep.subr.bf16.mxu0 %v1101
    %1593 = vmatpush2.bf16.msra.mxu0 %v1100
    %1594 = vmatprep.subr.bf16.mxu0 %v1097
    %1595 = vmatpush2.bf16.msra.mxu0 %v1096
    %1596 = vmatprep.subr.bf16.mxu0 %v1093
    %1597 = vmatpush2.bf16.msra.mxu0 %v1092
    %1598 = vmatprep.subr.bf16.mxu0 %v1089
    %1599 = vmatpush2.bf16.msra.mxu0 %v1088
    %1600 = vmatprep.mubr.bf16.mxu0 %v118
    %1601 = vmatmul.mubr.bf16.gmra.mxu0 %v117
    %v1602 = vpop.f32.mrf.mxu0
    %v1603 = vadd.f32 %v1562, %v1602
    %v1604 = vpop.f32.mrf.mxu0
    %v1605 = vadd.f32 %v1564, %v1604
    %v1606 = vpop.f32.mrf.mxu0
    %v1607 = vpop.f32.mrf.mxu0
    %1608 = vdwg.mxu0
    %1609 = vmatprep.subr.bf16.mxu0 0
    %1610 = vmatpush1.bf16.msra.mxu0 0
    %1611 = vmatprep.subr.bf16.mxu0 0
    %1612 = vmatpush1.bf16.msra.mxu0 0
    %1613 = vmatprep.subr.bf16.mxu0 0
    %1614 = vmatpush1.bf16.msra.mxu0 0
    %1615 = vmatprep.subr.bf16.mxu0 0
    %1616 = vmatpush1.bf16.msra.mxu0 0
    %1617 = vmatprep.subr.bf16.mxu0 0
    %1618 = vmatpush1.bf16.msra.mxu0 0
    %1619 = vmatprep.subr.bf16.mxu0 0
    %1620 = vmatpush1.bf16.msra.mxu0 0
    %1621 = vmatprep.subr.bf16.mxu0 0
    %1622 = vmatpush1.bf16.msra.mxu0 0
    %1623 = vmatprep.subr.bf16.mxu0 %v1121
    %1624 = vmatpush1.bf16.msra.mxu0 %v1120
    %1625 = vmatprep.subr.bf16.mxu0 0
    %1626 = vmatpush2.bf16.msra.mxu0 0
    %1627 = vmatprep.subr.bf16.mxu0 0
    %1628 = vmatpush2.bf16.msra.mxu0 0
    %1629 = vmatprep.subr.bf16.mxu0 0
    %1630 = vmatpush2.bf16.msra.mxu0 0
    %1631 = vmatprep.subr.bf16.mxu0 0
    %1632 = vmatpush2.bf16.msra.mxu0 0
    %1633 = vmatprep.subr.bf16.mxu0 0
    %1634 = vmatpush2.bf16.msra.mxu0 0
    %1635 = vmatprep.subr.bf16.mxu0 0
    %1636 = vmatpush2.bf16.msra.mxu0 0
    %1637 = vmatprep.subr.bf16.mxu0 0
    %1638 = vmatpush2.bf16.msra.mxu0 0
    %1639 = vmatprep.subr.bf16.mxu0 0
    %1640 = vmatpush2.bf16.msra.mxu0 0
    %1641 = vmatprep.mubr.bf16.mxu0 0
    %1642 = vmatmul.mubr.bf16.gmra.mxu0 %v1320
    %v1643 = vpop.f32.mrf.mxu0
    %v1644 = vadd.f32 %v1603, %v1643
    %v1645 = vpop.f32.mrf.mxu0
    %v1646 = vadd.f32 %v1605, %v1645
    %v1647 = vpop.f32.mrf.mxu0
    %v1648 = vpop.f32.mrf.mxu0
    %1649 = vdwg.mxu0
    %v1650 = vmax.f32 %v1480, 0.0
    %v1651 = vmax.f32 %v1482, 0.0
    %v1652 = vmax.f32 %v1644, 0.0
    %v1653 = vmax.f32 %v1646, 0.0
    %v1654 = vpack.c.bf16 %v1650, %v1650
    %v1655 = vpack.c.bf16 %v1651, %v1651
    %v1656 = vpack.c.bf16 %v1652, %v1652
    %v1657 = vpack.c.bf16 %v1653, %v1653
    %v1658 = vld [vmem:[#allocation8] sm:$0xff]
    %v1659 = vld [vmem:[#allocation8 + $0x8] sm:$0xf]
    %v1660 = vld [vmem:[#allocation8 + $0xc] sm:$0xff]
    %v1661 = vld [vmem:[#allocation8 + $0x14] sm:$0xf]
    %v1662 = vld [vmem:[#allocation8 + $0x18] sm:$0xff]
    %v1663 = vld [vmem:[#allocation8 + $0x20] sm:$0xf]
    %v1664 = vld [vmem:[#allocation8 + $0x24] sm:$0xff]
    %v1665 = vld [vmem:[#allocation8 + $0x2c] sm:$0xf]
    %v1666 = vld [vmem:[#allocation8 + $0x30] sm:$0xff]
    %v1667 = vld [vmem:[#allocation8 + $0x38] sm:$0xf]
    %v1668 = vld [vmem:[#allocation8 + $0x3c] sm:$0xff]
    %v1669 = vld [vmem:[#allocation8 + $0x44] sm:$0xf]
    %v1670 = vld [vmem:[#allocation8 + $0x48] sm:$0xff]
    %v1671 = vld [vmem:[#allocation8 + $0x50] sm:$0xf]
    %v1672 = vld [vmem:[#allocation8 + $0x54] sm:$0xff]
    %v1673 = vld [vmem:[#allocation8 + $0x5c] sm:$0xf]
    %v1674 = vld [vmem:[#allocation8 + $0x60] sm:$0xff]
    %v1675 = vld [vmem:[#allocation8 + $0x68] sm:$0xf]
    %v1676 = vld [vmem:[#allocation8 + $0x6c] sm:$0xff]
    %v1677 = vld [vmem:[#allocation8 + $0x74] sm:$0xf]
    %v1678 = vld [vmem:[#allocation8 + $0x78] sm:$0xff]
    %v1679 = vld [vmem:[#allocation8 + $0x80] sm:$0xf]
    %v1680 = vld [vmem:[#allocation8 + $0x84] sm:$0xff]
    %v1681 = vld [vmem:[#allocation8 + $0x8c] sm:$0xf]
    %v1682 = vld [vmem:[#allocation8 + $0x90] sm:$0xff]
    %v1683 = vld [vmem:[#allocation8 + $0x98] sm:$0xf]
    %v1684 = vld [vmem:[#allocation8 + $0x9c] sm:$0xff]
    %v1685 = vld [vmem:[#allocation8 + $0xa4] sm:$0xf]
    %v1686 = vld [vmem:[#allocation8 + $0xa8] sm:$0xff]
    %v1687 = vld [vmem:[#allocation8 + $0xb0] sm:$0xf]
    %v1688 = vld [vmem:[#allocation8 + $0xb4] sm:$0xff]
    %v1689 = vld [vmem:[#allocation8 + $0xbc] sm:$0xf]
    %v1690 = vld [vmem:[#allocation8 + $0xc0] sm:$0xff]
    %v1691 = vld [vmem:[#allocation8 + $0xc8] sm:$0xf]
    %v1692 = vld [vmem:[#allocation8 + $0xcc] sm:$0xff]
    %v1693 = vld [vmem:[#allocation8 + $0xd4] sm:$0xf]
    %v1694 = vld [vmem:[#allocation8 + $0xd8] sm:$0xff]
    %v1695 = vld [vmem:[#allocation8 + $0xe0] sm:$0xf]
    %v1696 = vld [vmem:[#allocation8 + $0xe4] sm:$0xff]
    %v1697 = vld [vmem:[#allocation8 + $0xec] sm:$0xf]
    %v1698 = vld [vmem:[#allocation8 + $0xf0] sm:$0xff]
    %v1699 = vld [vmem:[#allocation8 + $0xf8] sm:$0xf]
    %v1700 = vld [vmem:[#allocation8 + $0xfc] sm:$0xff]
    %v1701 = vld [vmem:[#allocation8 + $0x104] sm:$0xf]
    %v1702 = vld [vmem:[#allocation8 + $0x108] sm:$0xff]
    %v1703 = vld [vmem:[#allocation8 + $0x110] sm:$0xf]
    %v1704 = vld [vmem:[#allocation8 + $0x114] sm:$0xff]
    %v1705 = vld [vmem:[#allocation8 + $0x11c] sm:$0xf]
    %v1706 = vld [vmem:[#allocation8 + $0x120] sm:$0xff]
    %v1707 = vld [vmem:[#allocation8 + $0x128] sm:$0xf]
    %v1708 = vld [vmem:[#allocation8 + $0x12c] sm:$0xff]
    %v1709 = vld [vmem:[#allocation8 + $0x134] sm:$0xf]
    %v1710 = vld [vmem:[#allocation8 + $0x138] sm:$0xff]
    %v1711 = vld [vmem:[#allocation8 + $0x140] sm:$0xf]
    %v1712 = vld [vmem:[#allocation8 + $0x144] sm:$0xff]
    %v1713 = vld [vmem:[#allocation8 + $0x14c] sm:$0xf]
    %v1714 = vld [vmem:[#allocation8 + $0x150] sm:$0xff]
    %v1715 = vld [vmem:[#allocation8 + $0x158] sm:$0xf]
    %v1716 = vld [vmem:[#allocation8 + $0x15c] sm:$0xff]
    %v1717 = vld [vmem:[#allocation8 + $0x164] sm:$0xf]
    %v1718 = vld [vmem:[#allocation8 + $0x168] sm:$0xff]
    %v1719 = vld [vmem:[#allocation8 + $0x170] sm:$0xf]
    %v1720 = vld [vmem:[#allocation8 + $0x174] sm:$0xff]
    %v1721 = vld [vmem:[#allocation8 + $0x17c] sm:$0xf]
    %v1722 = vld [vmem:[#allocation8 + $0x180] sm:$0xff]
    %v1723 = vld [vmem:[#allocation8 + $0x188] sm:$0xf]
    %v1724 = vld [vmem:[#allocation8 + $0x18c] sm:$0xff]
    %v1725 = vld [vmem:[#allocation8 + $0x194] sm:$0xf]
    %v1726 = vld [vmem:[#allocation8 + $0x198] sm:$0xff]
    %v1727 = vld [vmem:[#allocation8 + $0x1a0] sm:$0xf]
    %v1728 = vld [vmem:[#allocation8 + $0x1a4] sm:$0xff]
    %v1729 = vld [vmem:[#allocation8 + $0x1ac] sm:$0xf]
    %v1730 = vld [vmem:[#allocation8 + $0x1b0] sm:$0xff]
    %v1731 = vld [vmem:[#allocation8 + $0x1b8] sm:$0xf]
    %v1732 = vld [vmem:[#allocation8 + $0x1bc] sm:$0xff]
    %v1733 = vld [vmem:[#allocation8 + $0x1c4] sm:$0xf]
    %v1734 = vld [vmem:[#allocation8 + $0x1c8] sm:$0xff]
    %v1735 = vld [vmem:[#allocation8 + $0x1d0] sm:$0xf]
    %v1736 = vld [vmem:[#allocation8 + $0x1d4] sm:$0xff]
    %v1737 = vld [vmem:[#allocation8 + $0x1dc] sm:$0xf]
    %v1738 = vld [vmem:[#allocation8 + $0x1e0] sm:$0xff]
    %v1739 = vld [vmem:[#allocation8 + $0x1e8] sm:$0xf]
    %v1740 = vld [vmem:[#allocation8 + $0x1ec] sm:$0xff]
    %v1741 = vld [vmem:[#allocation8 + $0x1f4] sm:$0xf]
    %v1742 = vld [vmem:[#allocation8 + $0x1f8] sm:$0xff]
    %v1743 = vld [vmem:[#allocation8 + $0x200] sm:$0xf]
    %v1744 = vld [vmem:[#allocation8 + $0x204] sm:$0xff]
    %v1745 = vld [vmem:[#allocation8 + $0x20c] sm:$0xf]
    %v1746 = vld [vmem:[#allocation8 + $0x210] sm:$0xff]
    %v1747 = vld [vmem:[#allocation8 + $0x218] sm:$0xf]
    %v1748 = vld [vmem:[#allocation8 + $0x21c] sm:$0xff]
    %v1749 = vld [vmem:[#allocation8 + $0x224] sm:$0xf]
    %v1750 = vld [vmem:[#allocation8 + $0x228] sm:$0xff]
    %v1751 = vld [vmem:[#allocation8 + $0x230] sm:$0xf]
    %v1752 = vld [vmem:[#allocation8 + $0x234] sm:$0xff]
    %v1753 = vld [vmem:[#allocation8 + $0x23c] sm:$0xf]
    %v1754 = vld [vmem:[#allocation8 + $0x240] sm:$0xff]
    %v1755 = vld [vmem:[#allocation8 + $0x248] sm:$0xf]
    %v1756 = vld [vmem:[#allocation8 + $0x24c] sm:$0xff]
    %v1757 = vld [vmem:[#allocation8 + $0x254] sm:$0xf]
    %v1758 = vld [vmem:[#allocation8 + $0x258] sm:$0xff]
    %v1759 = vld [vmem:[#allocation8 + $0x260] sm:$0xf]
    %v1760 = vld [vmem:[#allocation8 + $0x264] sm:$0xff]
    %v1761 = vld [vmem:[#allocation8 + $0x26c] sm:$0xf]
    %v1762 = vld [vmem:[#allocation8 + $0x270] sm:$0xff]
    %v1763 = vld [vmem:[#allocation8 + $0x278] sm:$0xf]
    %v1764 = vld [vmem:[#allocation8 + $0x27c] sm:$0xff]
    %v1765 = vld [vmem:[#allocation8 + $0x284] sm:$0xf]
    %v1766 = vld [vmem:[#allocation8 + $0x288] sm:$0xff]
    %v1767 = vld [vmem:[#allocation8 + $0x290] sm:$0xf]
    %v1768 = vld [vmem:[#allocation8 + $0x294] sm:$0xff]
    %v1769 = vld [vmem:[#allocation8 + $0x29c] sm:$0xf]
    %v1770 = vld [vmem:[#allocation8 + $0x2a0] sm:$0xff]
    %v1771 = vld [vmem:[#allocation8 + $0x2a8] sm:$0xf]
    %v1772 = vld [vmem:[#allocation8 + $0x2ac] sm:$0xff]
    %v1773 = vld [vmem:[#allocation8 + $0x2b4] sm:$0xf]
    %v1774 = vld [vmem:[#allocation8 + $0x2b8] sm:$0xff]
    %v1775 = vld [vmem:[#allocation8 + $0x2c0] sm:$0xf]
    %v1776 = vld [vmem:[#allocation8 + $0x2c4] sm:$0xff]
    %v1777 = vld [vmem:[#allocation8 + $0x2cc] sm:$0xf]
    %v1778 = vld [vmem:[#allocation8 + $0x2d0] sm:$0xff]
    %v1779 = vld [vmem:[#allocation8 + $0x2d8] sm:$0xf]
    %v1780 = vld [vmem:[#allocation8 + $0x2dc] sm:$0xff]
    %v1781 = vld [vmem:[#allocation8 + $0x2e4] sm:$0xf]
    %v1782 = vld [vmem:[#allocation8 + $0x2e8] sm:$0xff]
    %v1783 = vld [vmem:[#allocation8 + $0x2f0] sm:$0xf]
    %v1784 = vld [vmem:[#allocation8 + $0x2f4] sm:$0xff]
    %v1785 = vld [vmem:[#allocation8 + $0x2fc] sm:$0xf]
    %v1786 = vld [vmem:[%s4] sm:$0x7]
    %v1788 = vlaneseq
    %v1789 = vshrl.u32 %v1788, 7
    %v1790 = vsub.s32 0, %v1789
    %v1791 = vrot.slane %v1786, %v1790
    %v1792 = vlaneseq
    %v1793 = vshrl.u32 %v1792, 7
    %v1794 = vsub.s32 1, %v1793
    %v1795 = vrot.slane %v1786, %v1794
    %v1796 = vlaneseq
    %v1797 = vshrl.u32 %v1796, 7
    %v1798 = vsub.s32 2, %v1797
    %v1799 = vrot.slane %v1786, %v1798
    %v1931 = vunpack.c.l.b16 %v1658
    %v1932 = vunpack.c.h.b16 %v1658
    %v1933 = vunpack.c.l.b16 %v1659
    %v1934 = vunpack.c.l.b16 %v1660
    %v1935 = vunpack.c.h.b16 %v1660
    %v1936 = vunpack.c.l.b16 %v1661
    %v1937 = vunpack.c.l.b16 %v1662
    %v1938 = vunpack.c.h.b16 %v1662
    %v1939 = vunpack.c.l.b16 %v1663
    %v1940 = vunpack.c.l.b16 %v1664
    %v1941 = vunpack.c.h.b16 %v1664
    %v1942 = vunpack.c.l.b16 %v1665
    %v1943 = vunpack.c.l.b16 %v1666
    %v1944 = vunpack.c.h.b16 %v1666
    %v1945 = vunpack.c.l.b16 %v1667
    %v1946 = vunpack.c.l.b16 %v1668
    %v1947 = vunpack.c.h.b16 %v1668
    %v1948 = vunpack.c.l.b16 %v1669
    %v1949 = vunpack.c.l.b16 %v1670
    %v1950 = vunpack.c.h.b16 %v1670
    %v1951 = vunpack.c.l.b16 %v1671
    %v1952 = vunpack.c.l.b16 %v1672
    %v1953 = vunpack.c.h.b16 %v1672
    %v1954 = vunpack.c.l.b16 %v1673
    %v1955 = vunpack.c.l.b16 %v1674
    %v1956 = vunpack.c.h.b16 %v1674
    %v1957 = vunpack.c.l.b16 %v1675
    %v1958 = vunpack.c.l.b16 %v1676
    %v1959 = vunpack.c.h.b16 %v1676
    %v1960 = vunpack.c.l.b16 %v1677
    %v1961 = vunpack.c.l.b16 %v1678
    %v1962 = vunpack.c.h.b16 %v1678
    %v1963 = vunpack.c.l.b16 %v1679
    %v1964 = vunpack.c.l.b16 %v1680
    %v1965 = vunpack.c.h.b16 %v1680
    %v1966 = vunpack.c.l.b16 %v1681
    %v1967 = vunpack.c.l.b16 %v1682
    %v1968 = vunpack.c.h.b16 %v1682
    %v1969 = vunpack.c.l.b16 %v1683
    %v1970 = vunpack.c.l.b16 %v1684
    %v1971 = vunpack.c.h.b16 %v1684
    %v1972 = vunpack.c.l.b16 %v1685
    %v1973 = vunpack.c.l.b16 %v1686
    %v1974 = vunpack.c.h.b16 %v1686
    %v1975 = vunpack.c.l.b16 %v1687
    %v1976 = vunpack.c.l.b16 %v1688
    %v1977 = vunpack.c.h.b16 %v1688
    %v1978 = vunpack.c.l.b16 %v1689
    %v1979 = vunpack.c.l.b16 %v1690
    %v1980 = vunpack.c.h.b16 %v1690
    %v1981 = vunpack.c.l.b16 %v1691
    %v1982 = vunpack.c.l.b16 %v1692
    %v1983 = vunpack.c.h.b16 %v1692
    %v1984 = vunpack.c.l.b16 %v1693
    %v1985 = vunpack.c.l.b16 %v1694
    %v1986 = vunpack.c.h.b16 %v1694
    %v1987 = vunpack.c.l.b16 %v1695
    %v1988 = vunpack.c.l.b16 %v1696
    %v1989 = vunpack.c.h.b16 %v1696
    %v1990 = vunpack.c.l.b16 %v1697
    %v1991 = vunpack.c.l.b16 %v1698
    %v1992 = vunpack.c.h.b16 %v1698
    %v1993 = vunpack.c.l.b16 %v1699
    %v1994 = vunpack.c.l.b16 %v1700
    %v1995 = vunpack.c.h.b16 %v1700
    %v1996 = vunpack.c.l.b16 %v1701
    %v1997 = vunpack.c.l.b16 %v1702
    %v1998 = vunpack.c.h.b16 %v1702
    %v1999 = vunpack.c.l.b16 %v1703
    %v2000 = vunpack.c.l.b16 %v1704
    %v2001 = vunpack.c.h.b16 %v1704
    %v2002 = vunpack.c.l.b16 %v1705
    %v2003 = vunpack.c.l.b16 %v1706
    %v2004 = vunpack.c.h.b16 %v1706
    %v2005 = vunpack.c.l.b16 %v1707
    %v2006 = vunpack.c.l.b16 %v1708
    %v2007 = vunpack.c.h.b16 %v1708
    %v2008 = vunpack.c.l.b16 %v1709
    %v2009 = vunpack.c.l.b16 %v1710
    %v2010 = vunpack.c.h.b16 %v1710
    %v2011 = vunpack.c.l.b16 %v1711
    %v2012 = vunpack.c.l.b16 %v1712
    %v2013 = vunpack.c.h.b16 %v1712
    %v2014 = vunpack.c.l.b16 %v1713
    %v2015 = vunpack.c.l.b16 %v1714
    %v2016 = vunpack.c.h.b16 %v1714
    %v2017 = vunpack.c.l.b16 %v1715
    %v2018 = vunpack.c.l.b16 %v1716
    %v2019 = vunpack.c.h.b16 %v1716
    %v2020 = vunpack.c.l.b16 %v1717
    %v2021 = vunpack.c.l.b16 %v1718
    %v2022 = vunpack.c.h.b16 %v1718
    %v2023 = vunpack.c.l.b16 %v1719
    %v2024 = vunpack.c.l.b16 %v1720
    %v2025 = vunpack.c.h.b16 %v1720
    %v2026 = vunpack.c.l.b16 %v1721
    %v2027 = vunpack.c.l.b16 %v1722
    %v2028 = vunpack.c.h.b16 %v1722
    %v2029 = vunpack.c.l.b16 %v1723
    %v2030 = vunpack.c.l.b16 %v1724
    %v2031 = vunpack.c.h.b16 %v1724
    %v2032 = vunpack.c.l.b16 %v1725
    %v2033 = vunpack.c.l.b16 %v1726
    %v2034 = vunpack.c.h.b16 %v1726
    %v2035 = vunpack.c.l.b16 %v1727
    %v2036 = vunpack.c.l.b16 %v1728
    %v2037 = vunpack.c.h.b16 %v1728
    %v2038 = vunpack.c.l.b16 %v1729
    %v2039 = vunpack.c.l.b16 %v1730
    %v2040 = vunpack.c.h.b16 %v1730
    %v2041 = vunpack.c.l.b16 %v1731
    %v2042 = vunpack.c.l.b16 %v1732
    %v2043 = vunpack.c.h.b16 %v1732
    %v2044 = vunpack.c.l.b16 %v1733
    %v2045 = vunpack.c.l.b16 %v1734
    %v2046 = vunpack.c.h.b16 %v1734
    %v2047 = vunpack.c.l.b16 %v1735
    %v2048 = vunpack.c.l.b16 %v1736
    %v2049 = vunpack.c.h.b16 %v1736
    %v2050 = vunpack.c.l.b16 %v1737
    %v2051 = vunpack.c.l.b16 %v1738
    %v2052 = vunpack.c.h.b16 %v1738
    %v2053 = vunpack.c.l.b16 %v1739
    %v2054 = vunpack.c.l.b16 %v1740
    %v2055 = vunpack.c.h.b16 %v1740
    %v2056 = vunpack.c.l.b16 %v1741
    %v2057 = vunpack.c.l.b16 %v1742
    %v2058 = vunpack.c.h.b16 %v1742
    %v2059 = vunpack.c.l.b16 %v1743
    %v2060 = vunpack.c.l.b16 %v1744
    %v2061 = vunpack.c.h.b16 %v1744
    %v2062 = vunpack.c.l.b16 %v1745
    %v2063 = vunpack.c.l.b16 %v1746
    %v2064 = vunpack.c.h.b16 %v1746
    %v2065 = vunpack.c.l.b16 %v1747
    %v2066 = vunpack.c.l.b16 %v1748
    %v2067 = vunpack.c.h.b16 %v1748
    %v2068 = vunpack.c.l.b16 %v1749
    %v2069 = vunpack.c.l.b16 %v1750
    %v2070 = vunpack.c.h.b16 %v1750
    %v2071 = vunpack.c.l.b16 %v1751
    %v2072 = vunpack.c.l.b16 %v1752
    %v2073 = vunpack.c.h.b16 %v1752
    %v2074 = vunpack.c.l.b16 %v1753
    %v2075 = vunpack.c.l.b16 %v1754
    %v2076 = vunpack.c.h.b16 %v1754
    %v2077 = vunpack.c.l.b16 %v1755
    %v2078 = vunpack.c.l.b16 %v1756
    %v2079 = vunpack.c.h.b16 %v1756
    %v2080 = vunpack.c.l.b16 %v1757
    %v2081 = vunpack.c.l.b16 %v1758
    %v2082 = vunpack.c.h.b16 %v1758
    %v2083 = vunpack.c.l.b16 %v1759
    %v2084 = vunpack.c.l.b16 %v1760
    %v2085 = vunpack.c.h.b16 %v1760
    %v2086 = vunpack.c.l.b16 %v1761
    %v2087 = vunpack.c.l.b16 %v1762
    %v2088 = vunpack.c.h.b16 %v1762
    %v2089 = vunpack.c.l.b16 %v1763
    %v2090 = vunpack.c.l.b16 %v1764
    %v2091 = vunpack.c.h.b16 %v1764
    %v2092 = vunpack.c.l.b16 %v1765
    %v2093 = vunpack.c.l.b16 %v1766
    %v2094 = vunpack.c.h.b16 %v1766
    %v2095 = vunpack.c.l.b16 %v1767
    %v2096 = vunpack.c.l.b16 %v1768
    %v2097 = vunpack.c.h.b16 %v1768
    %v2098 = vunpack.c.l.b16 %v1769
    %v2099 = vunpack.c.l.b16 %v1770
    %v2100 = vunpack.c.h.b16 %v1770
    %v2101 = vunpack.c.l.b16 %v1771
    %v2102 = vunpack.c.l.b16 %v1772
    %v2103 = vunpack.c.h.b16 %v1772
    %v2104 = vunpack.c.l.b16 %v1773
    %v2105 = vunpack.c.l.b16 %v1774
    %v2106 = vunpack.c.h.b16 %v1774
    %v2107 = vunpack.c.l.b16 %v1775
    %v2108 = vunpack.c.l.b16 %v1776
    %v2109 = vunpack.c.h.b16 %v1776
    %v2110 = vunpack.c.l.b16 %v1777
    %v2111 = vunpack.c.l.b16 %v1778
    %v2112 = vunpack.c.h.b16 %v1778
    %v2113 = vunpack.c.l.b16 %v1779
    %v2114 = vunpack.c.l.b16 %v1780
    %v2115 = vunpack.c.h.b16 %v1780
    %v2116 = vunpack.c.l.b16 %v1781
    %v2117 = vunpack.c.l.b16 %v1782
    %v2118 = vunpack.c.h.b16 %v1782
    %v2119 = vunpack.c.l.b16 %v1783
    %v2120 = vunpack.c.l.b16 %v1784
    %v2121 = vunpack.c.h.b16 %v1784
    %v2122 = vunpack.c.l.b16 %v1785
    %v2123 = vpack.c.b16 %v1934, %v1931
    %v2124 = vpack.c.b16 %v1935, %v1932
    %v2125 = vpack.c.b16 %v1936, %v1933
    %v2126 = vpack.c.b16 %v1940, %v1937
    %v2127 = vpack.c.b16 %v1941, %v1938
    %v2128 = vpack.c.b16 %v1942, %v1939
    %v2129 = vpack.c.b16 %v1946, %v1943
    %v2130 = vpack.c.b16 %v1947, %v1944
    %v2131 = vpack.c.b16 %v1948, %v1945
    %v2132 = vpack.c.b16 %v1952, %v1949
    %v2133 = vpack.c.b16 %v1953, %v1950
    %v2134 = vpack.c.b16 %v1954, %v1951
    %v2135 = vpack.c.b16 %v1958, %v1955
    %v2136 = vpack.c.b16 %v1959, %v1956
    %v2137 = vpack.c.b16 %v1960, %v1957
    %v2138 = vpack.c.b16 %v1964, %v1961
    %v2139 = vpack.c.b16 %v1965, %v1962
    %v2140 = vpack.c.b16 %v1966, %v1963
    %v2141 = vpack.c.b16 %v1970, %v1967
    %v2142 = vpack.c.b16 %v1971, %v1968
    %v2143 = vpack.c.b16 %v1972, %v1969
    %v2144 = vpack.c.b16 %v1976, %v1973
    %v2145 = vpack.c.b16 %v1977, %v1974
    %v2146 = vpack.c.b16 %v1978, %v1975
    %v2147 = vpack.c.b16 %v1982, %v1979
    %v2148 = vpack.c.b16 %v1983, %v1980
    %v2149 = vpack.c.b16 %v1984, %v1981
    %v2150 = vpack.c.b16 %v1988, %v1985
    %v2151 = vpack.c.b16 %v1989, %v1986
    %v2152 = vpack.c.b16 %v1990, %v1987
    %v2153 = vpack.c.b16 %v1994, %v1991
    %v2154 = vpack.c.b16 %v1995, %v1992
    %v2155 = vpack.c.b16 %v1996, %v1993
    %v2156 = vpack.c.b16 %v2000, %v1997
    %v2157 = vpack.c.b16 %v2001, %v1998
    %v2158 = vpack.c.b16 %v2002, %v1999
    %v2159 = vpack.c.b16 %v2006, %v2003
    %v2160 = vpack.c.b16 %v2007, %v2004
    %v2161 = vpack.c.b16 %v2008, %v2005
    %v2162 = vpack.c.b16 %v2012, %v2009
    %v2163 = vpack.c.b16 %v2013, %v2010
    %v2164 = vpack.c.b16 %v2014, %v2011
    %v2165 = vpack.c.b16 %v2018, %v2015
    %v2166 = vpack.c.b16 %v2019, %v2016
    %v2167 = vpack.c.b16 %v2020, %v2017
    %v2168 = vpack.c.b16 %v2024, %v2021
    %v2169 = vpack.c.b16 %v2025, %v2022
    %v2170 = vpack.c.b16 %v2026, %v2023
    %v2171 = vpack.c.b16 %v2030, %v2027
    %v2172 = vpack.c.b16 %v2031, %v2028
    %v2173 = vpack.c.b16 %v2032, %v2029
    %v2174 = vpack.c.b16 %v2036, %v2033
    %v2175 = vpack.c.b16 %v2037, %v2034
    %v2176 = vpack.c.b16 %v2038, %v2035
    %v2177 = vpack.c.b16 %v2042, %v2039
    %v2178 = vpack.c.b16 %v2043, %v2040
    %v2179 = vpack.c.b16 %v2044, %v2041
    %v2180 = vpack.c.b16 %v2048, %v2045
    %v2181 = vpack.c.b16 %v2049, %v2046
    %v2182 = vpack.c.b16 %v2050, %v2047
    %v2183 = vpack.c.b16 %v2054, %v2051
    %v2184 = vpack.c.b16 %v2055, %v2052
    %v2185 = vpack.c.b16 %v2056, %v2053
    %v2186 = vpack.c.b16 %v2060, %v2057
    %v2187 = vpack.c.b16 %v2061, %v2058
    %v2188 = vpack.c.b16 %v2062, %v2059
    %v2189 = vpack.c.b16 %v2066, %v2063
    %v2190 = vpack.c.b16 %v2067, %v2064
    %v2191 = vpack.c.b16 %v2068, %v2065
    %v2192 = vpack.c.b16 %v2072, %v2069
    %v2193 = vpack.c.b16 %v2073, %v2070
    %v2194 = vpack.c.b16 %v2074, %v2071
    %v2195 = vpack.c.b16 %v2078, %v2075
    %v2196 = vpack.c.b16 %v2079, %v2076
    %v2197 = vpack.c.b16 %v2080, %v2077
    %v2198 = vpack.c.b16 %v2084, %v2081
    %v2199 = vpack.c.b16 %v2085, %v2082
    %v2200 = vpack.c.b16 %v2086, %v2083
    %v2201 = vpack.c.b16 %v2090, %v2087
    %v2202 = vpack.c.b16 %v2091, %v2088
    %v2203 = vpack.c.b16 %v2092, %v2089
    %v2204 = vpack.c.b16 %v2096, %v2093
    %v2205 = vpack.c.b16 %v2097, %v2094
    %v2206 = vpack.c.b16 %v2098, %v2095
    %v2207 = vpack.c.b16 %v2102, %v2099
    %v2208 = vpack.c.b16 %v2103, %v2100
    %v2209 = vpack.c.b16 %v2104, %v2101
    %v2210 = vpack.c.b16 %v2108, %v2105
    %v2211 = vpack.c.b16 %v2109, %v2106
    %v2212 = vpack.c.b16 %v2110, %v2107
    %v2213 = vpack.c.b16 %v2114, %v2111
    %v2214 = vpack.c.b16 %v2115, %v2112
    %v2215 = vpack.c.b16 %v2116, %v2113
    %v2216 = vpack.c.b16 %v2120, %v2117
    %v2217 = vpack.c.b16 %v2121, %v2118
    %v2218 = vpack.c.b16 %v2122, %v2119
    %2315 = vmatprep.subr.bf16.mxu0 %v2145
    %2316 = vmatpush1.bf16.msra.mxu0 %v2144
    %2317 = vmatprep.subr.bf16.mxu0 %v2142
    %2318 = vmatpush1.bf16.msra.mxu0 %v2141
    %2319 = vmatprep.subr.bf16.mxu0 %v2139
    %2320 = vmatpush1.bf16.msra.mxu0 %v2138
    %2321 = vmatprep.subr.bf16.mxu0 %v2136
    %2322 = vmatpush1.bf16.msra.mxu0 %v2135
    %2323 = vmatprep.subr.bf16.mxu0 %v2133
    %2324 = vmatpush1.bf16.msra.mxu0 %v2132
    %2325 = vmatprep.subr.bf16.mxu0 %v2130
    %2326 = vmatpush1.bf16.msra.mxu0 %v2129
    %2327 = vmatprep.subr.bf16.mxu0 %v2127
    %2328 = vmatpush1.bf16.msra.mxu0 %v2126
    %2329 = vmatprep.subr.bf16.mxu0 %v2124
    %2330 = vmatpush1.bf16.msra.mxu0 %v2123
    %2331 = vmatprep.subr.bf16.mxu0 %v2169
    %2332 = vmatpush2.bf16.msra.mxu0 %v2168
    %2333 = vmatprep.subr.bf16.mxu0 %v2166
    %2334 = vmatpush2.bf16.msra.mxu0 %v2165
    %2335 = vmatprep.subr.bf16.mxu0 %v2163
    %2336 = vmatpush2.bf16.msra.mxu0 %v2162
    %2337 = vmatprep.subr.bf16.mxu0 %v2160
    %2338 = vmatpush2.bf16.msra.mxu0 %v2159
    %2339 = vmatprep.subr.bf16.mxu0 %v2157
    %2340 = vmatpush2.bf16.msra.mxu0 %v2156
    %2341 = vmatprep.subr.bf16.mxu0 %v2154
    %2342 = vmatpush2.bf16.msra.mxu0 %v2153
    %2343 = vmatprep.subr.bf16.mxu0 %v2151
    %2344 = vmatpush2.bf16.msra.mxu0 %v2150
    %2345 = vmatprep.subr.bf16.mxu0 %v2148
    %2346 = vmatpush2.bf16.msra.mxu0 %v2147
    %2347 = vmatprep.mubr.bf16.mxu0 %v1655
    %2348 = vmatmul.mubr.bf16.gmra.mxu0 %v1654
    %v2349 = vpop.f32.mrf.mxu0
    %v2350 = vadd.f32 %v1791, %v2349
    %v2351 = vpop.f32.mrf.mxu0
    %v2352 = vadd.f32 %v1795, %v2351
    %v2353 = vpop.f32.mrf.mxu0
    %v2354 = vpop.f32.mrf.mxu0
    %2355 = vdwg.mxu0
    %2356 = vmatprep.subr.bf16.mxu0 %v2193
    %2357 = vmatpush1.bf16.msra.mxu0 %v2192
    %2358 = vmatprep.subr.bf16.mxu0 %v2190
    %2359 = vmatpush1.bf16.msra.mxu0 %v2189
    %2360 = vmatprep.subr.bf16.mxu0 %v2187
    %2361 = vmatpush1.bf16.msra.mxu0 %v2186
    %2362 = vmatprep.subr.bf16.mxu0 %v2184
    %2363 = vmatpush1.bf16.msra.mxu0 %v2183
    %2364 = vmatprep.subr.bf16.mxu0 %v2181
    %2365 = vmatpush1.bf16.msra.mxu0 %v2180
    %2366 = vmatprep.subr.bf16.mxu0 %v2178
    %2367 = vmatpush1.bf16.msra.mxu0 %v2177
    %2368 = vmatprep.subr.bf16.mxu0 %v2175
    %2369 = vmatpush1.bf16.msra.mxu0 %v2174
    %2370 = vmatprep.subr.bf16.mxu0 %v2172
    %2371 = vmatpush1.bf16.msra.mxu0 %v2171
    %2372 = vmatprep.subr.bf16.mxu0 %v2217
    %2373 = vmatpush2.bf16.msra.mxu0 %v2216
    %2374 = vmatprep.subr.bf16.mxu0 %v2214
    %2375 = vmatpush2.bf16.msra.mxu0 %v2213
    %2376 = vmatprep.subr.bf16.mxu0 %v2211
    %2377 = vmatpush2.bf16.msra.mxu0 %v2210
    %2378 = vmatprep.subr.bf16.mxu0 %v2208
    %2379 = vmatpush2.bf16.msra.mxu0 %v2207
    %2380 = vmatprep.subr.bf16.mxu0 %v2205
    %2381 = vmatpush2.bf16.msra.mxu0 %v2204
    %2382 = vmatprep.subr.bf16.mxu0 %v2202
    %2383 = vmatpush2.bf16.msra.mxu0 %v2201
    %2384 = vmatprep.subr.bf16.mxu0 %v2199
    %2385 = vmatpush2.bf16.msra.mxu0 %v2198
    %2386 = vmatprep.subr.bf16.mxu0 %v2196
    %2387 = vmatpush2.bf16.msra.mxu0 %v2195
    %2388 = vmatprep.mubr.bf16.mxu0 %v1657
    %2389 = vmatmul.mubr.bf16.gmra.mxu0 %v1656
    %v2390 = vpop.f32.mrf.mxu0
    %v2391 = vadd.f32 %v2350, %v2390
    %v2392 = vpop.f32.mrf.mxu0
    %v2393 = vadd.f32 %v2352, %v2392
    %v2394 = vpop.f32.mrf.mxu0
    %v2395 = vpop.f32.mrf.mxu0
    %2396 = vdwg.mxu0
    %2397 = vmatprep.subr.bf16.mxu0 0
    %2398 = vmatpush1.bf16.msra.mxu0 %v2146
    %2399 = vmatprep.subr.bf16.mxu0 0
    %2400 = vmatpush1.bf16.msra.mxu0 %v2143
    %2401 = vmatprep.subr.bf16.mxu0 0
    %2402 = vmatpush1.bf16.msra.mxu0 %v2140
    %2403 = vmatprep.subr.bf16.mxu0 0
    %2404 = vmatpush1.bf16.msra.mxu0 %v2137
    %2405 = vmatprep.subr.bf16.mxu0 0
    %2406 = vmatpush1.bf16.msra.mxu0 %v2134
    %2407 = vmatprep.subr.bf16.mxu0 0
    %2408 = vmatpush1.bf16.msra.mxu0 %v2131
    %2409 = vmatprep.subr.bf16.mxu0 0
    %2410 = vmatpush1.bf16.msra.mxu0 %v2128
    %2411 = vmatprep.subr.bf16.mxu0 0
    %2412 = vmatpush1.bf16.msra.mxu0 %v2125
    %2413 = vmatprep.subr.bf16.mxu0 0
    %2414 = vmatpush2.bf16.msra.mxu0 %v2170
    %2415 = vmatprep.subr.bf16.mxu0 0
    %2416 = vmatpush2.bf16.msra.mxu0 %v2167
    %2417 = vmatprep.subr.bf16.mxu0 0
    %2418 = vmatpush2.bf16.msra.mxu0 %v2164
    %2419 = vmatprep.subr.bf16.mxu0 0
    %2420 = vmatpush2.bf16.msra.mxu0 %v2161
    %2421 = vmatprep.subr.bf16.mxu0 0
    %2422 = vmatpush2.bf16.msra.mxu0 %v2158
    %2423 = vmatprep.subr.bf16.mxu0 0
    %2424 = vmatpush2.bf16.msra.mxu0 %v2155
    %2425 = vmatprep.subr.bf16.mxu0 0
    %2426 = vmatpush2.bf16.msra.mxu0 %v2152
    %2427 = vmatprep.subr.bf16.mxu0 0
    %2428 = vmatpush2.bf16.msra.mxu0 %v2149
    %2429 = vmatprep.mubr.bf16.mxu0 %v1655
    %2430 = vmatmul.mubr.bf16.gmra.mxu0 %v1654
    %v2431 = vpop.f32.mrf.mxu0
    %v2432 = vadd.f32 %v1799, %v2431
    %v2433 = vpop.f32.mrf.mxu0
    %v2434 = vpop.f32.mrf.mxu0
    %v2435 = vpop.f32.mrf.mxu0
    %2436 = vdwg.mxu0
    %2437 = vmatprep.subr.bf16.mxu0 0
    %2438 = vmatpush1.bf16.msra.mxu0 %v2194
    %2439 = vmatprep.subr.bf16.mxu0 0
    %2440 = vmatpush1.bf16.msra.mxu0 %v2191
    %2441 = vmatprep.subr.bf16.mxu0 0
    %2442 = vmatpush1.bf16.msra.mxu0 %v2188
    %2443 = vmatprep.subr.bf16.mxu0 0
    %2444 = vmatpush1.bf16.msra.mxu0 %v2185
    %2445 = vmatprep.subr.bf16.mxu0 0
    %2446 = vmatpush1.bf16.msra.mxu0 %v2182
    %2447 = vmatprep.subr.bf16.mxu0 0
    %2448 = vmatpush1.bf16.msra.mxu0 %v2179
    %2449 = vmatprep.subr.bf16.mxu0 0
    %2450 = vmatpush1.bf16.msra.mxu0 %v2176
    %2451 = vmatprep.subr.bf16.mxu0 0
    %2452 = vmatpush1.bf16.msra.mxu0 %v2173
    %2453 = vmatprep.subr.bf16.mxu0 0
    %2454 = vmatpush2.bf16.msra.mxu0 %v2218
    %2455 = vmatprep.subr.bf16.mxu0 0
    %2456 = vmatpush2.bf16.msra.mxu0 %v2215
    %2457 = vmatprep.subr.bf16.mxu0 0
    %2458 = vmatpush2.bf16.msra.mxu0 %v2212
    %2459 = vmatprep.subr.bf16.mxu0 0
    %2460 = vmatpush2.bf16.msra.mxu0 %v2209
    %2461 = vmatprep.subr.bf16.mxu0 0
    %2462 = vmatpush2.bf16.msra.mxu0 %v2206
    %2463 = vmatprep.subr.bf16.mxu0 0
    %2464 = vmatpush2.bf16.msra.mxu0 %v2203
    %2465 = vmatprep.subr.bf16.mxu0 0
    %2466 = vmatpush2.bf16.msra.mxu0 %v2200
    %2467 = vmatprep.subr.bf16.mxu0 0
    %2468 = vmatpush2.bf16.msra.mxu0 %v2197
    %2469 = vmatprep.mubr.bf16.mxu0 %v1657
    %2470 = vmatmul.mubr.bf16.gmra.mxu0 %v1656
    %v2471 = vpop.f32.mrf.mxu0
    %v2472 = vadd.f32 %v2432, %v2471
    %v2473 = vpop.f32.mrf.mxu0
    %v2474 = vpop.f32.mrf.mxu0
    %v2475 = vpop.f32.mrf.mxu0
    %2476 = vdwg.mxu0
    %v2477 = vtanh.pop %v2391
    %v2478 = vtanh.pop %v2393
    %v2479 = vtanh.pop %v2472
    %v2480 = vmul.f32 %v2477, 0.1505806
    %v2481 = vmul.f32 %v2478, 0.1505806
    %v2482 = vmul.f32 %v2479, 0.1505806
    %v2483 = vadd.f32 %v2480, 1.4202154
    %v2484 = vadd.f32 %v2481, 1.4202154
    %v2485 = vadd.f32 %v2482, 1.4202154
    %v2486 = vand.u32 2147483647, %v2483
    %vm2487 = vcmp.le.f32.partialorder %v2486, 0.7853982
    %vm2488 = vcmp.lt.s32.totalorder %v2483, 0
    %v2489 = vand.u32 %v2483, 2139095040
    %v2490 = vshrl.u32 %v2489, 23
    %v2491 = vsub.s32 %v2490, 127
    %v2492 = vand.u32 2147483647, %v2483
    %v2493 = vand.u32 %v2492, 8388607
    %v2494 = vor.u32 %v2493, 8388608
    %v2495 = vsub.s32 0, %v2494
    %v2496 = vadd.s32 %v2491, 1
    %vm2497 = vcmp.gt.s32.totalorder %v2496, 0
    %v2498 = vsel %vm2497, %v2496, 0
    %v2499 = vshrl.u32 %v2498, 5
    %v2500 = vand.u32 %v2498, 31
    %v2501 = vsub.s32 32, %v2500
    %v2502 = vshrl.u32 683565275, %v2501
    %v2503 = vshll.u32 683565275, %v2500
    %v2504 = vshrl.u32 2475754826, %v2501
    %v2505 = vor.u32 %v2503, %v2504
    %v2506 = vshll.u32 2475754826, %v2500
    %v2507 = vshrl.u32 2131351028, %v2501
    %v2508 = vor.u32 %v2506, %v2507
    %v2509 = vshll.u32 2131351028, %v2500
    %v2510 = vshrl.u32 2102212464, %v2501
    %v2511 = vor.u32 %v2509, %v2510
    %v2512 = vshll.u32 2102212464, %v2500
    %v2513 = vshrl.u32 920167782, %v2501
    %v2514 = vor.u32 %v2512, %v2513
    %v2515 = vshll.u32 920167782, %v2500
    %v2516 = vshrl.u32 1326507024, %v2501
    %v2517 = vor.u32 %v2515, %v2516
    %vm2518 = vcmp.lt.s32.totalorder %v2499, 1
    %vm2519 = vcmp.lt.s32.totalorder %v2499, 2
    %vm2520 = vcmp.lt.s32.totalorder %v2499, 3
    %vm2521 = vcmp.lt.s32.totalorder %v2499, 4
    %v2522 = vsel %vm2518, %v2502, %v2505
    %v2523 = vsel %vm2521, %v2511, 2102212464
    %v2524 = vsel %vm2520, %v2508, %v2523
    %v2525 = vsel %vm2519, %v2522, %v2524
    %v2526 = vsel %vm2518, %v2505, %v2508
    %v2527 = vsel %vm2521, %v2514, 920167782
    %v2528 = vsel %vm2520, %v2511, %v2527
    %v2529 = vsel %vm2519, %v2526, %v2528
    %v2530 = vsel %vm2518, %v2508, %v2511
    %v2531 = vsel %vm2521, %v2517, 1326507024
    %v2532 = vsel %vm2520, %v2514, %v2531
    %v2533 = vsel %vm2519, %v2530, %v2532
    %v2534 = vshll.u32 %v2494, 8
    %v2535 = vmul.u32.u64.compose %v2534, %v2533
    %v2536 = vextract.low.u32 %v2535
    %v2537 = vextract.high.u32 %v2535
    %v2538 = vmul.u32.u64.compose %v2534, %v2529
    %v2539 = vextract.low.u32 %v2538
    %v2540 = vextract.high.u32 %v2538
    %v2541 = vmul.u32 %v2534, %v2525
    %v2542 = vadd.s32 %v2537, %v2539
    %vm2543 = vc.u32 %v2537, %v2539
    %v2544 = vadd.s32 %v2540, 1
    %v2545 = vsel %vm2543, %v2544, %v2540
    %v2546 = vadd.s32 %v2541, %v2545
    %v2547 = vadd.s32 %v2546, 536870912
    %v2548 = vshrl.u32 %v2547, 30
    %v2549 = vshll.u32 %v2548, 30
    %v2550 = vsub.s32 %v2546, %v2549
    %vm2551 = vcmp.lt.s32.totalorder %v2550, 0
    %v2552 = vsub.s32 0, %v2550
    %v2553 = vsel %vm2551, %v2552, %v2550
    %v2554 = vclz %v2553
    %v2555 = vsub.s32 %v2554, 2
    %vm2556 = vcmp.gt.s32.totalorder 0, %v2555
    %v2557 = vsel %vm2556, 0, %v2555
    %v2558 = vsub.s32 32, %v2557
    %v2559 = vshll.u32 %v2550, %v2557
    %v2560 = vshrl.u32 %v2542, %v2558
    %v2561 = vor.u32 %v2559, %v2560
    %v2562 = vsub.s32 4294967266, %v2557
    %v2563 = vadd.s32 %v2562, 127
    %v2564 = vshll.u32 %v2563, 23
    %v2565 = vor.u32 4788187, %v2564
    %v2566 = vand.u32 2147483647, %v2565
    %v2568 = vcvt.s32.f32 %v2561
    %v2569 = vmul.f32 %v2568, %v2566
    %v2570 = vxor.u32 %v2569, 2147483648
    %v2571 = vsel %vm2488, %v2570, %v2569
    %v2572 = vsub.s32 4, %v2548
    %v2573 = vsel %vm2488, %v2572, %v2548
    %v2574 = vsel %vm2487, %v2483, %v2571
    %v2575 = vsel %vm2487, 0, %v2573
    %v2576 = vcosq.f32.pop %v2574
    %v2577 = vsinq.f32.pop %v2574
    %vm2578 = vweird.f32 %v2483
    %v2579 = vadd.s32 %v2575, 3
    %v2580 = vand.u32 %v2579, 3
    %vm2581 = vcmp.lt.s32.totalorder %v2580, 2
    %vm2582 = vcmp.eq.s32.totalorder %v2580, 0
    %v2583 = vxor.u32 %v2577, 2147483648
    %v2584 = vsel %vm2582, %v2576, %v2583
    %vm2585 = vcmp.eq.s32.totalorder %v2580, 2
    %v2586 = vxor.u32 %v2576, 2147483648
    %v2587 = vsel %vm2585, %v2586, %v2577
    %v2588 = vsel %vm2581, %v2584, %v2587
    %v2589 = vsel %vm2578, nan, %v2588
    %v2590 = vand.u32 2147483647, %v2484
    %vm2591 = vcmp.le.f32.partialorder %v2590, 0.7853982
    %vm2592 = vcmp.lt.s32.totalorder %v2484, 0
    %v2593 = vand.u32 %v2484, 2139095040
    %v2594 = vshrl.u32 %v2593, 23
    %v2595 = vsub.s32 %v2594, 127
    %v2596 = vand.u32 2147483647, %v2484
    %v2597 = vand.u32 %v2596, 8388607
    %v2598 = vor.u32 %v2597, 8388608
    %v2599 = vsub.s32 0, %v2598
    %v2600 = vadd.s32 %v2595, 1
    %vm2601 = vcmp.gt.s32.totalorder %v2600, 0
    %v2602 = vsel %vm2601, %v2600, 0
    %v2603 = vshrl.u32 %v2602, 5
    %v2604 = vand.u32 %v2602, 31
    %v2605 = vsub.s32 32, %v2604
    %v2606 = vshrl.u32 683565275, %v2605
    %v2607 = vshll.u32 683565275, %v2604
    %v2608 = vshrl.u32 2475754826, %v2605
    %v2609 = vor.u32 %v2607, %v2608
    %v2610 = vshll.u32 2475754826, %v2604
    %v2611 = vshrl.u32 2131351028, %v2605
    %v2612 = vor.u32 %v2610, %v2611
    %v2613 = vshll.u32 2131351028, %v2604
    %v2614 = vshrl.u32 2102212464, %v2605
    %v2615 = vor.u32 %v2613, %v2614
    %v2616 = vshll.u32 2102212464, %v2604
    %v2617 = vshrl.u32 920167782, %v2605
    %v2618 = vor.u32 %v2616, %v2617
    %v2619 = vshll.u32 920167782, %v2604
    %v2620 = vshrl.u32 1326507024, %v2605
    %v2621 = vor.u32 %v2619, %v2620
    %vm2622 = vcmp.lt.s32.totalorder %v2603, 1
    %vm2623 = vcmp.lt.s32.totalorder %v2603, 2
    %vm2624 = vcmp.lt.s32.totalorder %v2603, 3
    %vm2625 = vcmp.lt.s32.totalorder %v2603, 4
    %v2626 = vsel %vm2622, %v2606, %v2609
    %v2627 = vsel %vm2625, %v2615, 2102212464
    %v2628 = vsel %vm2624, %v2612, %v2627
    %v2629 = vsel %vm2623, %v2626, %v2628
    %v2630 = vsel %vm2622, %v2609, %v2612
    %v2631 = vsel %vm2625, %v2618, 920167782
    %v2632 = vsel %vm2624, %v2615, %v2631
    %v2633 = vsel %vm2623, %v2630, %v2632
    %v2634 = vsel %vm2622, %v2612, %v2615
    %v2635 = vsel %vm2625, %v2621, 1326507024
    %v2636 = vsel %vm2624, %v2618, %v2635
    %v2637 = vsel %vm2623, %v2634, %v2636
    %v2638 = vshll.u32 %v2598, 8
    %v2639 = vmul.u32.u64.compose %v2638, %v2637
    %v2640 = vextract.low.u32 %v2639
    %v2641 = vextract.high.u32 %v2639
    %v2642 = vmul.u32.u64.compose %v2638, %v2633
    %v2643 = vextract.low.u32 %v2642
    %v2644 = vextract.high.u32 %v2642
    %v2645 = vmul.u32 %v2638, %v2629
    %v2646 = vadd.s32 %v2641, %v2643
    %vm2647 = vc.u32 %v2641, %v2643
    %v2648 = vadd.s32 %v2644, 1
    %v2649 = vsel %vm2647, %v2648, %v2644
    %v2650 = vadd.s32 %v2645, %v2649
    %v2651 = vadd.s32 %v2650, 536870912
    %v2652 = vshrl.u32 %v2651, 30
    %v2653 = vshll.u32 %v2652, 30
    %v2654 = vsub.s32 %v2650, %v2653
    %vm2655 = vcmp.lt.s32.totalorder %v2654, 0
    %v2656 = vsub.s32 0, %v2654
    %v2657 = vsel %vm2655, %v2656, %v2654
    %v2658 = vclz %v2657
    %v2659 = vsub.s32 %v2658, 2
    %vm2660 = vcmp.gt.s32.totalorder 0, %v2659
    %v2661 = vsel %vm2660, 0, %v2659
    %v2662 = vsub.s32 32, %v2661
    %v2663 = vshll.u32 %v2654, %v2661
    %v2664 = vshrl.u32 %v2646, %v2662
    %v2665 = vor.u32 %v2663, %v2664
    %v2666 = vsub.s32 4294967266, %v2661
    %v2667 = vadd.s32 %v2666, 127
    %v2668 = vshll.u32 %v2667, 23
    %v2669 = vor.u32 4788187, %v2668
    %v2670 = vand.u32 2147483647, %v2669
    %v2672 = vcvt.s32.f32 %v2665
    %v2673 = vmul.f32 %v2672, %v2670
    %v2674 = vxor.u32 %v2673, 2147483648
    %v2675 = vsel %vm2592, %v2674, %v2673
    %v2676 = vsub.s32 4, %v2652
    %v2677 = vsel %vm2592, %v2676, %v2652
    %v2678 = vsel %vm2591, %v2484, %v2675
    %v2679 = vsel %vm2591, 0, %v2677
    %v2680 = vcosq.f32.pop %v2678
    %v2681 = vsinq.f32.pop %v2678
    %vm2682 = vweird.f32 %v2484
    %v2683 = vadd.s32 %v2679, 3
    %v2684 = vand.u32 %v2683, 3
    %vm2685 = vcmp.lt.s32.totalorder %v2684, 2
    %vm2686 = vcmp.eq.s32.totalorder %v2684, 0
    %v2687 = vxor.u32 %v2681, 2147483648
    %v2688 = vsel %vm2686, %v2680, %v2687
    %vm2689 = vcmp.eq.s32.totalorder %v2684, 2
    %v2690 = vxor.u32 %v2680, 2147483648
    %v2691 = vsel %vm2689, %v2690, %v2681
    %v2692 = vsel %vm2685, %v2688, %v2691
    %v2693 = vsel %vm2682, nan, %v2692
    %v2694 = vand.u32 2147483647, %v2485
    %vm2695 = vcmp.le.f32.partialorder %v2694, 0.7853982
    %vm2696 = vcmp.lt.s32.totalorder %v2485, 0
    %v2697 = vand.u32 %v2485, 2139095040
    %v2698 = vshrl.u32 %v2697, 23
    %v2699 = vsub.s32 %v2698, 127
    %v2700 = vand.u32 2147483647, %v2485
    %v2701 = vand.u32 %v2700, 8388607
    %v2702 = vor.u32 %v2701, 8388608
    %v2703 = vsub.s32 0, %v2702
    %v2704 = vadd.s32 %v2699, 1
    %vm2705 = vcmp.gt.s32.totalorder %v2704, 0
    %v2706 = vsel %vm2705, %v2704, 0
    %v2707 = vshrl.u32 %v2706, 5
    %v2708 = vand.u32 %v2706, 31
    %v2709 = vsub.s32 32, %v2708
    %v2710 = vshrl.u32 683565275, %v2709
    %v2711 = vshll.u32 683565275, %v2708
    %v2712 = vshrl.u32 2475754826, %v2709
    %v2713 = vor.u32 %v2711, %v2712
    %v2714 = vshll.u32 2475754826, %v2708
    %v2715 = vshrl.u32 2131351028, %v2709
    %v2716 = vor.u32 %v2714, %v2715
    %v2717 = vshll.u32 2131351028, %v2708
    %v2718 = vshrl.u32 2102212464, %v2709
    %v2719 = vor.u32 %v2717, %v2718
    %v2720 = vshll.u32 2102212464, %v2708
    %v2721 = vshrl.u32 920167782, %v2709
    %v2722 = vor.u32 %v2720, %v2721
    %v2723 = vshll.u32 920167782, %v2708
    %v2724 = vshrl.u32 1326507024, %v2709
    %v2725 = vor.u32 %v2723, %v2724
    %vm2726 = vcmp.lt.s32.totalorder %v2707, 1
    %vm2727 = vcmp.lt.s32.totalorder %v2707, 2
    %vm2728 = vcmp.lt.s32.totalorder %v2707, 3
    %vm2729 = vcmp.lt.s32.totalorder %v2707, 4
    %v2730 = vsel %vm2726, %v2710, %v2713
    %v2731 = vsel %vm2729, %v2719, 2102212464
    %v2732 = vsel %vm2728, %v2716, %v2731
    %v2733 = vsel %vm2727, %v2730, %v2732
    %v2734 = vsel %vm2726, %v2713, %v2716
    %v2735 = vsel %vm2729, %v2722, 920167782
    %v2736 = vsel %vm2728, %v2719, %v2735
    %v2737 = vsel %vm2727, %v2734, %v2736
    %v2738 = vsel %vm2726, %v2716, %v2719
    %v2739 = vsel %vm2729, %v2725, 1326507024
    %v2740 = vsel %vm2728, %v2722, %v2739
    %v2741 = vsel %vm2727, %v2738, %v2740
    %v2742 = vshll.u32 %v2702, 8
    %v2743 = vmul.u32.u64.compose %v2742, %v2741
    %v2744 = vextract.low.u32 %v2743
    %v2745 = vextract.high.u32 %v2743
    %v2746 = vmul.u32.u64.compose %v2742, %v2737
    %v2747 = vextract.low.u32 %v2746
    %v2748 = vextract.high.u32 %v2746
    %v2749 = vmul.u32 %v2742, %v2733
    %v2750 = vadd.s32 %v2745, %v2747
    %vm2751 = vc.u32 %v2745, %v2747
    %v2752 = vadd.s32 %v2748, 1
    %v2753 = vsel %vm2751, %v2752, %v2748
    %v2754 = vadd.s32 %v2749, %v2753
    %v2755 = vadd.s32 %v2754, 536870912
    %v2756 = vshrl.u32 %v2755, 30
    %v2757 = vshll.u32 %v2756, 30
    %v2758 = vsub.s32 %v2754, %v2757
    %vm2759 = vcmp.lt.s32.totalorder %v2758, 0
    %v2760 = vsub.s32 0, %v2758
    %v2761 = vsel %vm2759, %v2760, %v2758
    %v2762 = vclz %v2761
    %v2763 = vsub.s32 %v2762, 2
    %vm2764 = vcmp.gt.s32.totalorder 0, %v2763
    %v2765 = vsel %vm2764, 0, %v2763
    %v2766 = vsub.s32 32, %v2765
    %v2767 = vshll.u32 %v2758, %v2765
    %v2768 = vshrl.u32 %v2750, %v2766
    %v2769 = vor.u32 %v2767, %v2768
    %v2770 = vsub.s32 4294967266, %v2765
    %v2771 = vadd.s32 %v2770, 127
    %v2772 = vshll.u32 %v2771, 23
    %v2773 = vor.u32 4788187, %v2772
    %v2774 = vand.u32 2147483647, %v2773
    %v2776 = vcvt.s32.f32 %v2769
    %v2777 = vmul.f32 %v2776, %v2774
    %v2778 = vxor.u32 %v2777, 2147483648
    %v2779 = vsel %vm2696, %v2778, %v2777
    %v2780 = vsub.s32 4, %v2756
    %v2781 = vsel %vm2696, %v2780, %v2756
    %v2782 = vsel %vm2695, %v2485, %v2779
    %v2783 = vsel %vm2695, 0, %v2781
    %v2784 = vcosq.f32.pop %v2782
    %v2785 = vsinq.f32.pop %v2782
    %vm2786 = vweird.f32 %v2485
    %v2787 = vadd.s32 %v2783, 3
    %v2788 = vand.u32 %v2787, 3
    %vm2789 = vcmp.lt.s32.totalorder %v2788, 2
    %vm2790 = vcmp.eq.s32.totalorder %v2788, 0
    %v2791 = vxor.u32 %v2785, 2147483648
    %v2792 = vsel %vm2790, %v2784, %v2791
    %vm2793 = vcmp.eq.s32.totalorder %v2788, 2
    %v2794 = vxor.u32 %v2784, 2147483648
    %v2795 = vsel %vm2793, %v2794, %v2785
    %v2796 = vsel %vm2789, %v2792, %v2795
    %v2797 = vsel %vm2786, nan, %v2796
    %v2798 = vand.u32 2147483647, %v2589
    %v2799 = vand.u32 2147483647, %v2693
    %v2800 = vand.u32 2147483647, %v2797
    %v2801 = vadd.f32 %v2798, 1e-06
    %v2802 = vadd.f32 %v2799, 1e-06
    %v2803 = vadd.f32 %v2800, 1e-06
    %v2804 = vlog2.pop %v2801
    %v2805 = vmul.f32 %v2804, 0.6931472
    %v2806 = vlog2.pop %v2802
    %v2807 = vmul.f32 %v2806, 0.6931472
    %v2808 = vlog2.pop %v2803
    %v2809 = vmul.f32 %v2808, 0.6931472
    %v2810 = vand.u32 2147483647, %v2483
    %vm2811 = vcmp.le.f32.partialorder %v2810, 0.7853982
    %vm2812 = vcmp.lt.s32.totalorder %v2483, 0
    %v2813 = vand.u32 %v2483, 2139095040
    %v2814 = vshrl.u32 %v2813, 23
    %v2815 = vsub.s32 %v2814, 127
    %v2816 = vand.u32 2147483647, %v2483
    %v2817 = vand.u32 %v2816, 8388607
    %v2818 = vor.u32 %v2817, 8388608
    %v2819 = vsub.s32 0, %v2818
    %v2820 = vadd.s32 %v2815, 1
    %vm2821 = vcmp.gt.s32.totalorder %v2820, 0
    %v2822 = vsel %vm2821, %v2820, 0
    %v2823 = vshrl.u32 %v2822, 5
    %v2824 = vand.u32 %v2822, 31
    %v2825 = vsub.s32 32, %v2824
    %v2826 = vshrl.u32 683565275, %v2825
    %v2827 = vshll.u32 683565275, %v2824
    %v2828 = vshrl.u32 2475754826, %v2825
    %v2829 = vor.u32 %v2827, %v2828
    %v2830 = vshll.u32 2475754826, %v2824
    %v2831 = vshrl.u32 2131351028, %v2825
    %v2832 = vor.u32 %v2830, %v2831
    %v2833 = vshll.u32 2131351028, %v2824
    %v2834 = vshrl.u32 2102212464, %v2825
    %v2835 = vor.u32 %v2833, %v2834
    %v2836 = vshll.u32 2102212464, %v2824
    %v2837 = vshrl.u32 920167782, %v2825
    %v2838 = vor.u32 %v2836, %v2837
    %v2839 = vshll.u32 920167782, %v2824
    %v2840 = vshrl.u32 1326507024, %v2825
    %v2841 = vor.u32 %v2839, %v2840
    %vm2842 = vcmp.lt.s32.totalorder %v2823, 1
    %vm2843 = vcmp.lt.s32.totalorder %v2823, 2
    %vm2844 = vcmp.lt.s32.totalorder %v2823, 3
    %vm2845 = vcmp.lt.s32.totalorder %v2823, 4
    %v2846 = vsel %vm2842, %v2826, %v2829
    %v2847 = vsel %vm2845, %v2835, 2102212464
    %v2848 = vsel %vm2844, %v2832, %v2847
    %v2849 = vsel %vm2843, %v2846, %v2848
    %v2850 = vsel %vm2842, %v2829, %v2832
    %v2851 = vsel %vm2845, %v2838, 920167782
    %v2852 = vsel %vm2844, %v2835, %v2851
    %v2853 = vsel %vm2843, %v2850, %v2852
    %v2854 = vsel %vm2842, %v2832, %v2835
    %v2855 = vsel %vm2845, %v2841, 1326507024
    %v2856 = vsel %vm2844, %v2838, %v2855
    %v2857 = vsel %vm2843, %v2854, %v2856
    %v2858 = vshll.u32 %v2818, 8
    %v2859 = vmul.u32.u64.compose %v2858, %v2857
    %v2860 = vextract.low.u32 %v2859
    %v2861 = vextract.high.u32 %v2859
    %v2862 = vmul.u32.u64.compose %v2858, %v2853
    %v2863 = vextract.low.u32 %v2862
    %v2864 = vextract.high.u32 %v2862
    %v2865 = vmul.u32 %v2858, %v2849
    %v2866 = vadd.s32 %v2861, %v2863
    %vm2867 = vc.u32 %v2861, %v2863
    %v2868 = vadd.s32 %v2864, 1
    %v2869 = vsel %vm2867, %v2868, %v2864
    %v2870 = vadd.s32 %v2865, %v2869
    %v2871 = vadd.s32 %v2870, 536870912
    %v2872 = vshrl.u32 %v2871, 30
    %v2873 = vshll.u32 %v2872, 30
    %v2874 = vsub.s32 %v2870, %v2873
    %vm2875 = vcmp.lt.s32.totalorder %v2874, 0
    %v2876 = vsub.s32 0, %v2874
    %v2877 = vsel %vm2875, %v2876, %v2874
    %v2878 = vclz %v2877
    %v2879 = vsub.s32 %v2878, 2
    %vm2880 = vcmp.gt.s32.totalorder 0, %v2879
    %v2881 = vsel %vm2880, 0, %v2879
    %v2882 = vsub.s32 32, %v2881
    %v2883 = vshll.u32 %v2874, %v2881
    %v2884 = vshrl.u32 %v2866, %v2882
    %v2885 = vor.u32 %v2883, %v2884
    %v2886 = vsub.s32 4294967266, %v2881
    %v2887 = vadd.s32 %v2886, 127
    %v2888 = vshll.u32 %v2887, 23
    %v2889 = vor.u32 4788187, %v2888
    %v2890 = vand.u32 2147483647, %v2889
    %v2892 = vcvt.s32.f32 %v2885
    %v2893 = vmul.f32 %v2892, %v2890
    %v2894 = vxor.u32 %v2893, 2147483648
    %v2895 = vsel %vm2812, %v2894, %v2893
    %v2896 = vsub.s32 4, %v2872
    %v2897 = vsel %vm2812, %v2896, %v2872
    %v2898 = vsel %vm2811, %v2483, %v2895
    %v2899 = vsel %vm2811, 0, %v2897
    %v2900 = vcosq.f32.pop %v2898
    %v2901 = vsinq.f32.pop %v2898
    %vm2902 = vweird.f32 %v2483
    %v2903 = vand.u32 %v2899, 3
    %vm2904 = vcmp.lt.s32.totalorder %v2903, 2
    %vm2905 = vcmp.eq.s32.totalorder %v2903, 0
    %v2906 = vxor.u32 %v2901, 2147483648
    %v2907 = vsel %vm2905, %v2900, %v2906
    %vm2908 = vcmp.eq.s32.totalorder %v2903, 2
    %v2909 = vxor.u32 %v2900, 2147483648
    %v2910 = vsel %vm2908, %v2909, %v2901
    %v2911 = vsel %vm2904, %v2907, %v2910
    %v2912 = vsel %vm2902, nan, %v2911
    %v2913 = vand.u32 2147483647, %v2484
    %vm2914 = vcmp.le.f32.partialorder %v2913, 0.7853982
    %vm2915 = vcmp.lt.s32.totalorder %v2484, 0
    %v2916 = vand.u32 %v2484, 2139095040
    %v2917 = vshrl.u32 %v2916, 23
    %v2918 = vsub.s32 %v2917, 127
    %v2919 = vand.u32 2147483647, %v2484
    %v2920 = vand.u32 %v2919, 8388607
    %v2921 = vor.u32 %v2920, 8388608
    %v2922 = vsub.s32 0, %v2921
    %v2923 = vadd.s32 %v2918, 1
    %vm2924 = vcmp.gt.s32.totalorder %v2923, 0
    %v2925 = vsel %vm2924, %v2923, 0
    %v2926 = vshrl.u32 %v2925, 5
    %v2927 = vand.u32 %v2925, 31
    %v2928 = vsub.s32 32, %v2927
    %v2929 = vshrl.u32 683565275, %v2928
    %v2930 = vshll.u32 683565275, %v2927
    %v2931 = vshrl.u32 2475754826, %v2928
    %v2932 = vor.u32 %v2930, %v2931
    %v2933 = vshll.u32 2475754826, %v2927
    %v2934 = vshrl.u32 2131351028, %v2928
    %v2935 = vor.u32 %v2933, %v2934
    %v2936 = vshll.u32 2131351028, %v2927
    %v2937 = vshrl.u32 2102212464, %v2928
    %v2938 = vor.u32 %v2936, %v2937
    %v2939 = vshll.u32 2102212464, %v2927
    %v2940 = vshrl.u32 920167782, %v2928
    %v2941 = vor.u32 %v2939, %v2940
    %v2942 = vshll.u32 920167782, %v2927
    %v2943 = vshrl.u32 1326507024, %v2928
    %v2944 = vor.u32 %v2942, %v2943
    %vm2945 = vcmp.lt.s32.totalorder %v2926, 1
    %vm2946 = vcmp.lt.s32.totalorder %v2926, 2
    %vm2947 = vcmp.lt.s32.totalorder %v2926, 3
    %vm2948 = vcmp.lt.s32.totalorder %v2926, 4
    %v2949 = vsel %vm2945, %v2929, %v2932
    %v2950 = vsel %vm2948, %v2938, 2102212464
    %v2951 = vsel %vm2947, %v2935, %v2950
    %v2952 = vsel %vm2946, %v2949, %v2951
    %v2953 = vsel %vm2945, %v2932, %v2935
    %v2954 = vsel %vm2948, %v2941, 920167782
    %v2955 = vsel %vm2947, %v2938, %v2954
    %v2956 = vsel %vm2946, %v2953, %v2955
    %v2957 = vsel %vm2945, %v2935, %v2938
    %v2958 = vsel %vm2948, %v2944, 1326507024
    %v2959 = vsel %vm2947, %v2941, %v2958
    %v2960 = vsel %vm2946, %v2957, %v2959
    %v2961 = vshll.u32 %v2921, 8
    %v2962 = vmul.u32.u64.compose %v2961, %v2960
    %v2963 = vextract.low.u32 %v2962
    %v2964 = vextract.high.u32 %v2962
    %v2965 = vmul.u32.u64.compose %v2961, %v2956
    %v2966 = vextract.low.u32 %v2965
    %v2967 = vextract.high.u32 %v2965
    %v2968 = vmul.u32 %v2961, %v2952
    %v2969 = vadd.s32 %v2964, %v2966
    %vm2970 = vc.u32 %v2964, %v2966
    %v2971 = vadd.s32 %v2967, 1
    %v2972 = vsel %vm2970, %v2971, %v2967
    %v2973 = vadd.s32 %v2968, %v2972
    %v2974 = vadd.s32 %v2973, 536870912
    %v2975 = vshrl.u32 %v2974, 30
    %v2976 = vshll.u32 %v2975, 30
    %v2977 = vsub.s32 %v2973, %v2976
    %vm2978 = vcmp.lt.s32.totalorder %v2977, 0
    %v2979 = vsub.s32 0, %v2977
    %v2980 = vsel %vm2978, %v2979, %v2977
    %v2981 = vclz %v2980
    %v2982 = vsub.s32 %v2981, 2
    %vm2983 = vcmp.gt.s32.totalorder 0, %v2982
    %v2984 = vsel %vm2983, 0, %v2982
    %v2985 = vsub.s32 32, %v2984
    %v2986 = vshll.u32 %v2977, %v2984
    %v2987 = vshrl.u32 %v2969, %v2985
    %v2988 = vor.u32 %v2986, %v2987
    %v2989 = vsub.s32 4294967266, %v2984
    %v2990 = vadd.s32 %v2989, 127
    %v2991 = vshll.u32 %v2990, 23
    %v2992 = vor.u32 4788187, %v2991
    %v2993 = vand.u32 2147483647, %v2992
    %v2995 = vcvt.s32.f32 %v2988
    %v2996 = vmul.f32 %v2995, %v2993
    %v2997 = vxor.u32 %v2996, 2147483648
    %v2998 = vsel %vm2915, %v2997, %v2996
    %v2999 = vsub.s32 4, %v2975
    %v3000 = vsel %vm2915, %v2999, %v2975
    %v3001 = vsel %vm2914, %v2484, %v2998
    %v3002 = vsel %vm2914, 0, %v3000
    %v3003 = vcosq.f32.pop %v3001
    %v3004 = vsinq.f32.pop %v3001
    %vm3005 = vweird.f32 %v2484
    %v3006 = vand.u32 %v3002, 3
    %vm3007 = vcmp.lt.s32.totalorder %v3006, 2
    %vm3008 = vcmp.eq.s32.totalorder %v3006, 0
    %v3009 = vxor.u32 %v3004, 2147483648
    %v3010 = vsel %vm3008, %v3003, %v3009
    %vm3011 = vcmp.eq.s32.totalorder %v3006, 2
    %v3012 = vxor.u32 %v3003, 2147483648
    %v3013 = vsel %vm3011, %v3012, %v3004
    %v3014 = vsel %vm3007, %v3010, %v3013
    %v3015 = vsel %vm3005, nan, %v3014
    %v3016 = vand.u32 2147483647, %v2485
    %vm3017 = vcmp.le.f32.partialorder %v3016, 0.7853982
    %vm3018 = vcmp.lt.s32.totalorder %v2485, 0
    %v3019 = vand.u32 %v2485, 2139095040
    %v3020 = vshrl.u32 %v3019, 23
    %v3021 = vsub.s32 %v3020, 127
    %v3022 = vand.u32 2147483647, %v2485
    %v3023 = vand.u32 %v3022, 8388607
    %v3024 = vor.u32 %v3023, 8388608
    %v3025 = vsub.s32 0, %v3024
    %v3026 = vadd.s32 %v3021, 1
    %vm3027 = vcmp.gt.s32.totalorder %v3026, 0
    %v3028 = vsel %vm3027, %v3026, 0
    %v3029 = vshrl.u32 %v3028, 5
    %v3030 = vand.u32 %v3028, 31
    %v3031 = vsub.s32 32, %v3030
    %v3032 = vshrl.u32 683565275, %v3031
    %v3033 = vshll.u32 683565275, %v3030
    %v3034 = vshrl.u32 2475754826, %v3031
    %v3035 = vor.u32 %v3033, %v3034
    %v3036 = vshll.u32 2475754826, %v3030
    %v3037 = vshrl.u32 2131351028, %v3031
    %v3038 = vor.u32 %v3036, %v3037
    %v3039 = vshll.u32 2131351028, %v3030
    %v3040 = vshrl.u32 2102212464, %v3031
    %v3041 = vor.u32 %v3039, %v3040
    %v3042 = vshll.u32 2102212464, %v3030
    %v3043 = vshrl.u32 920167782, %v3031
    %v3044 = vor.u32 %v3042, %v3043
    %v3045 = vshll.u32 920167782, %v3030
    %v3046 = vshrl.u32 1326507024, %v3031
    %v3047 = vor.u32 %v3045, %v3046
    %vm3048 = vcmp.lt.s32.totalorder %v3029, 1
    %vm3049 = vcmp.lt.s32.totalorder %v3029, 2
    %vm3050 = vcmp.lt.s32.totalorder %v3029, 3
    %vm3051 = vcmp.lt.s32.totalorder %v3029, 4
    %v3052 = vsel %vm3048, %v3032, %v3035
    %v3053 = vsel %vm3051, %v3041, 2102212464
    %v3054 = vsel %vm3050, %v3038, %v3053
    %v3055 = vsel %vm3049, %v3052, %v3054
    %v3056 = vsel %vm3048, %v3035, %v3038
    %v3057 = vsel %vm3051, %v3044, 920167782
    %v3058 = vsel %vm3050, %v3041, %v3057
    %v3059 = vsel %vm3049, %v3056, %v3058
    %v3060 = vsel %vm3048, %v3038, %v3041
    %v3061 = vsel %vm3051, %v3047, 1326507024
    %v3062 = vsel %vm3050, %v3044, %v3061
    %v3063 = vsel %vm3049, %v3060, %v3062
    %v3064 = vshll.u32 %v3024, 8
    %v3065 = vmul.u32.u64.compose %v3064, %v3063
    %v3066 = vextract.low.u32 %v3065
    %v3067 = vextract.high.u32 %v3065
    %v3068 = vmul.u32.u64.compose %v3064, %v3059
    %v3069 = vextract.low.u32 %v3068
    %v3070 = vextract.high.u32 %v3068
    %v3071 = vmul.u32 %v3064, %v3055
    %v3072 = vadd.s32 %v3067, %v3069
    %vm3073 = vc.u32 %v3067, %v3069
    %v3074 = vadd.s32 %v3070, 1
    %v3075 = vsel %vm3073, %v3074, %v3070
    %v3076 = vadd.s32 %v3071, %v3075
    %v3077 = vadd.s32 %v3076, 536870912
    %v3078 = vshrl.u32 %v3077, 30
    %v3079 = vshll.u32 %v3078, 30
    %v3080 = vsub.s32 %v3076, %v3079
    %vm3081 = vcmp.lt.s32.totalorder %v3080, 0
    %v3082 = vsub.s32 0, %v3080
    %v3083 = vsel %vm3081, %v3082, %v3080
    %v3084 = vclz %v3083
    %v3085 = vsub.s32 %v3084, 2
    %vm3086 = vcmp.gt.s32.totalorder 0, %v3085
    %v3087 = vsel %vm3086, 0, %v3085
    %v3088 = vsub.s32 32, %v3087
    %v3089 = vshll.u32 %v3080, %v3087
    %v3090 = vshrl.u32 %v3072, %v3088
    %v3091 = vor.u32 %v3089, %v3090
    %v3092 = vsub.s32 4294967266, %v3087
    %v3093 = vadd.s32 %v3092, 127
    %v3094 = vshll.u32 %v3093, 23
    %v3095 = vor.u32 4788187, %v3094
    %v3096 = vand.u32 2147483647, %v3095
    %v3098 = vcvt.s32.f32 %v3091
    %v3099 = vmul.f32 %v3098, %v3096
    %v3100 = vxor.u32 %v3099, 2147483648
    %v3101 = vsel %vm3018, %v3100, %v3099
    %v3102 = vsub.s32 4, %v3078
    %v3103 = vsel %vm3018, %v3102, %v3078
    %v3104 = vsel %vm3017, %v2485, %v3101
    %v3105 = vsel %vm3017, 0, %v3103
    %v3106 = vcosq.f32.pop %v3104
    %v3107 = vsinq.f32.pop %v3104
    %vm3108 = vweird.f32 %v2485
    %v3109 = vand.u32 %v3105, 3
    %vm3110 = vcmp.lt.s32.totalorder %v3109, 2
    %vm3111 = vcmp.eq.s32.totalorder %v3109, 0
    %v3112 = vxor.u32 %v3107, 2147483648
    %v3113 = vsel %vm3111, %v3106, %v3112
    %vm3114 = vcmp.eq.s32.totalorder %v3109, 2
    %v3115 = vxor.u32 %v3106, 2147483648
    %v3116 = vsel %vm3114, %v3115, %v3107
    %v3117 = vsel %vm3110, %v3113, %v3116
    %v3118 = vsel %vm3108, nan, %v3117
    %v3119 = vand.u32 2147483647, %v2912
    %v3120 = vand.u32 2147483647, %v3015
    %v3121 = vand.u32 2147483647, %v3118
    %v3122 = vadd.f32 %v3119, 1e-06
    %v3123 = vadd.f32 %v3120, 1e-06
    %v3124 = vadd.f32 %v3121, 1e-06
    %v3125 = vlog2.pop %v3122
    %v3126 = vmul.f32 %v3125, 0.6931472
    %v3127 = vlog2.pop %v3123
    %v3128 = vmul.f32 %v3127, 0.6931472
    %v3129 = vlog2.pop %v3124
    %v3130 = vmul.f32 %v3129, 0.6931472
    %v3131 = vlaneseq
    %v3132 = vand.u32 %v3131, 127
    %v3133 = vadd.s32 %v3132, 128
    %v3134 = vadd.s32 %v3132, 256
    %vm3135 = vcmp.eq.s32.totalorder %v3132, 300
    %vm3136 = vcmp.eq.s32.totalorder %v3133, 300
    %vm3137 = vcmp.eq.s32.totalorder %v3134, 300
    %v3138 = vsel %vm3135, 0.0, %v3126
    %v3139 = vsel %vm3136, 0.0, %v3128
    %v3140 = vsel %vm3137, 0.0, %v3130
    %v3141 = vld [vmem:[#allocation10] sm:$0xff]
    %v3142 = vld [vmem:[#allocation10 + $0x8] sm:$0xf]
    %v3143 = vld [vmem:[#allocation10 + $0xc] sm:$0xff]
    %v3144 = vld [vmem:[#allocation10 + $0x14] sm:$0xf]
    %v3145 = vld [vmem:[#allocation10 + $0x18] sm:$0xff]
    %v3146 = vld [vmem:[#allocation10 + $0x20] sm:$0xf]
    %v3147 = vld [vmem:[#allocation10 + $0x24] sm:$0xff]
    %v3148 = vld [vmem:[#allocation10 + $0x2c] sm:$0xf]
    %v3149 = vld [vmem:[#allocation10 + $0x30] sm:$0xff]
    %v3150 = vld [vmem:[#allocation10 + $0x38] sm:$0xf]
    %v3151 = vld [vmem:[#allocation10 + $0x3c] sm:$0xff]
    %v3152 = vld [vmem:[#allocation10 + $0x44] sm:$0xf]
    %v3153 = vld [vmem:[#allocation10 + $0x48] sm:$0xff]
    %v3154 = vld [vmem:[#allocation10 + $0x50] sm:$0xf]
    %v3155 = vld [vmem:[#allocation10 + $0x54] sm:$0xff]
    %v3156 = vld [vmem:[#allocation10 + $0x5c] sm:$0xf]
    %v3157 = vld [vmem:[#allocation10 + $0x60] sm:$0xff]
    %v3158 = vld [vmem:[#allocation10 + $0x68] sm:$0xf]
    %v3159 = vld [vmem:[#allocation10 + $0x6c] sm:$0xff]
    %v3160 = vld [vmem:[#allocation10 + $0x74] sm:$0xf]
    %v3161 = vld [vmem:[#allocation10 + $0x78] sm:$0xff]
    %v3162 = vld [vmem:[#allocation10 + $0x80] sm:$0xf]
    %v3163 = vld [vmem:[#allocation10 + $0x84] sm:$0xff]
    %v3164 = vld [vmem:[#allocation10 + $0x8c] sm:$0xf]
    %v3165 = vld [vmem:[#allocation10 + $0x90] sm:$0xff]
    %v3166 = vld [vmem:[#allocation10 + $0x98] sm:$0xf]
    %v3167 = vld [vmem:[#allocation10 + $0x9c] sm:$0xff]
    %v3168 = vld [vmem:[#allocation10 + $0xa4] sm:$0xf]
    %v3169 = vld [vmem:[#allocation10 + $0xa8] sm:$0xff]
    %v3170 = vld [vmem:[#allocation10 + $0xb0] sm:$0xf]
    %v3171 = vld [vmem:[#allocation10 + $0xb4] sm:$0xff]
    %v3172 = vld [vmem:[#allocation10 + $0xbc] sm:$0xf]
    %v3173 = vld [vmem:[#allocation10 + $0xc0] sm:$0xff]
    %v3174 = vld [vmem:[#allocation10 + $0xc8] sm:$0xf]
    %v3175 = vld [vmem:[#allocation10 + $0xcc] sm:$0xff]
    %v3176 = vld [vmem:[#allocation10 + $0xd4] sm:$0xf]
    %v3177 = vld [vmem:[#allocation10 + $0xd8] sm:$0xff]
    %v3178 = vld [vmem:[#allocation10 + $0xe0] sm:$0xf]
    %v3179 = vld [vmem:[#allocation10 + $0xe4] sm:$0xff]
    %v3180 = vld [vmem:[#allocation10 + $0xec] sm:$0xf]
    %v3181 = vld [vmem:[#allocation10 + $0xf0] sm:$0xff]
    %v3182 = vld [vmem:[#allocation10 + $0xf8] sm:$0xf]
    %v3183 = vld [vmem:[#allocation10 + $0xfc] sm:$0xff]
    %v3184 = vld [vmem:[#allocation10 + $0x104] sm:$0xf]
    %v3185 = vld [vmem:[#allocation10 + $0x108] sm:$0xff]
    %v3186 = vld [vmem:[#allocation10 + $0x110] sm:$0xf]
    %v3187 = vld [vmem:[#allocation10 + $0x114] sm:$0xff]
    %v3188 = vld [vmem:[#allocation10 + $0x11c] sm:$0xf]
    %v3189 = vld [vmem:[#allocation10 + $0x120] sm:$0xff]
    %v3190 = vld [vmem:[#allocation10 + $0x128] sm:$0xf]
    %v3191 = vld [vmem:[#allocation10 + $0x12c] sm:$0xff]
    %v3192 = vld [vmem:[#allocation10 + $0x134] sm:$0xf]
    %v3193 = vld [vmem:[#allocation10 + $0x138] sm:$0xff]
    %v3194 = vld [vmem:[#allocation10 + $0x140] sm:$0xf]
    %v3195 = vld [vmem:[#allocation10 + $0x144] sm:$0xff]
    %v3196 = vld [vmem:[#allocation10 + $0x14c] sm:$0xf]
    %v3197 = vld [vmem:[#allocation10 + $0x150] sm:$0xff]
    %v3198 = vld [vmem:[#allocation10 + $0x158] sm:$0xf]
    %v3199 = vld [vmem:[#allocation10 + $0x15c] sm:$0xff]
    %v3200 = vld [vmem:[#allocation10 + $0x164] sm:$0xf]
    %v3201 = vld [vmem:[#allocation10 + $0x168] sm:$0xff]
    %v3202 = vld [vmem:[#allocation10 + $0x170] sm:$0xf]
    %v3203 = vld [vmem:[#allocation10 + $0x174] sm:$0xff]
    %v3204 = vld [vmem:[#allocation10 + $0x17c] sm:$0xf]
    %v3205 = vld [vmem:[#allocation10 + $0x180] sm:$0xff]
    %v3206 = vld [vmem:[#allocation10 + $0x188] sm:$0xf]
    %v3207 = vld [vmem:[#allocation10 + $0x18c] sm:$0xff]
    %v3208 = vld [vmem:[#allocation10 + $0x194] sm:$0xf]
    %v3209 = vld [vmem:[#allocation10 + $0x198] sm:$0xff]
    %v3210 = vld [vmem:[#allocation10 + $0x1a0] sm:$0xf]
    %v3211 = vld [vmem:[#allocation10 + $0x1a4] sm:$0xff]
    %v3212 = vld [vmem:[#allocation10 + $0x1ac] sm:$0xf]
    %v3213 = vld [vmem:[#allocation10 + $0x1b0] sm:$0xff]
    %v3214 = vld [vmem:[#allocation10 + $0x1b8] sm:$0xf]
    %v3215 = vld [vmem:[#allocation10 + $0x1bc] sm:$0xff]
    %v3216 = vld [vmem:[#allocation10 + $0x1c4] sm:$0xf]
    %v3217 = vld [vmem:[#allocation10 + $0x1c8] sm:$0xff]
    %v3218 = vld [vmem:[#allocation10 + $0x1d0] sm:$0xf]
    %v3219 = vld [vmem:[#allocation10 + $0x1d4] sm:$0xff]
    %v3220 = vld [vmem:[#allocation10 + $0x1dc] sm:$0xf]
    %v3221 = vld [vmem:[#allocation10 + $0x1e0] sm:$0xff]
    %v3222 = vld [vmem:[#allocation10 + $0x1e8] sm:$0xf]
    %v3223 = vld [vmem:[#allocation10 + $0x1ec] sm:$0xff]
    %v3224 = vld [vmem:[#allocation10 + $0x1f4] sm:$0xf]
    %v3225 = vld [vmem:[#allocation10 + $0x1f8] sm:$0xff]
    %v3226 = vld [vmem:[#allocation10 + $0x200] sm:$0xf]
    %v3227 = vld [vmem:[#allocation10 + $0x204] sm:$0xff]
    %v3228 = vld [vmem:[#allocation10 + $0x20c] sm:$0xf]
    %v3229 = vld [vmem:[#allocation10 + $0x210] sm:$0xff]
    %v3230 = vld [vmem:[#allocation10 + $0x218] sm:$0xf]
    %v3231 = vld [vmem:[#allocation10 + $0x21c] sm:$0xff]
    %v3232 = vld [vmem:[#allocation10 + $0x224] sm:$0xf]
    %v3233 = vld [vmem:[#allocation10 + $0x228] sm:$0xff]
    %v3234 = vld [vmem:[#allocation10 + $0x230] sm:$0xf]
    %v3235 = vld [vmem:[#allocation10 + $0x234] sm:$0xff]
    %v3236 = vld [vmem:[#allocation10 + $0x23c] sm:$0xf]
    %v3237 = vpack.c.bf16 %v2805, %v2805
    %v3238 = vpack.c.bf16 %v2807, %v2807
    %v3239 = vpack.c.bf16 %v2809, %v2809
    %v3240 = vunpack.c.l.bf16 %v3237
    %v3241 = vunpack.c.l.bf16 %v3238
    %v3242 = vunpack.c.l.bf16 %v3239
    %v3243 = vsub.f32 %v2805, %v3240
    %v3244 = vsub.f32 %v2807, %v3241
    %v3245 = vsub.f32 %v2809, %v3242
    %v3246 = vpack.c.bf16 %v3243, %v3243
    %v3247 = vpack.c.bf16 %v3244, %v3244
    %v3248 = vpack.c.bf16 %v3245, %v3245
    %v3345 = vunpack.c.l.b16 %v3141
    %v3346 = vunpack.c.h.b16 %v3141
    %v3347 = vunpack.c.l.b16 %v3142
    %v3348 = vunpack.c.l.b16 %v3143
    %v3349 = vunpack.c.h.b16 %v3143
    %v3350 = vunpack.c.l.b16 %v3144
    %v3351 = vunpack.c.l.b16 %v3145
    %v3352 = vunpack.c.h.b16 %v3145
    %v3353 = vunpack.c.l.b16 %v3146
    %v3354 = vunpack.c.l.b16 %v3147
    %v3355 = vunpack.c.h.b16 %v3147
    %v3356 = vunpack.c.l.b16 %v3148
    %v3357 = vunpack.c.l.b16 %v3149
    %v3358 = vunpack.c.h.b16 %v3149
    %v3359 = vunpack.c.l.b16 %v3150
    %v3360 = vunpack.c.l.b16 %v3151
    %v3361 = vunpack.c.h.b16 %v3151
    %v3362 = vunpack.c.l.b16 %v3152
    %v3363 = vunpack.c.l.b16 %v3153
    %v3364 = vunpack.c.h.b16 %v3153
    %v3365 = vunpack.c.l.b16 %v3154
    %v3366 = vunpack.c.l.b16 %v3155
    %v3367 = vunpack.c.h.b16 %v3155
    %v3368 = vunpack.c.l.b16 %v3156
    %v3369 = vunpack.c.l.b16 %v3157
    %v3370 = vunpack.c.h.b16 %v3157
    %v3371 = vunpack.c.l.b16 %v3158
    %v3372 = vunpack.c.l.b16 %v3159
    %v3373 = vunpack.c.h.b16 %v3159
    %v3374 = vunpack.c.l.b16 %v3160
    %v3375 = vunpack.c.l.b16 %v3161
    %v3376 = vunpack.c.h.b16 %v3161
    %v3377 = vunpack.c.l.b16 %v3162
    %v3378 = vunpack.c.l.b16 %v3163
    %v3379 = vunpack.c.h.b16 %v3163
    %v3380 = vunpack.c.l.b16 %v3164
    %v3381 = vunpack.c.l.b16 %v3165
    %v3382 = vunpack.c.h.b16 %v3165
    %v3383 = vunpack.c.l.b16 %v3166
    %v3384 = vunpack.c.l.b16 %v3167
    %v3385 = vunpack.c.h.b16 %v3167
    %v3386 = vunpack.c.l.b16 %v3168
    %v3387 = vunpack.c.l.b16 %v3169
    %v3388 = vunpack.c.h.b16 %v3169
    %v3389 = vunpack.c.l.b16 %v3170
    %v3390 = vunpack.c.l.b16 %v3171
    %v3391 = vunpack.c.h.b16 %v3171
    %v3392 = vunpack.c.l.b16 %v3172
    %v3393 = vunpack.c.l.b16 %v3173
    %v3394 = vunpack.c.h.b16 %v3173
    %v3395 = vunpack.c.l.b16 %v3174
    %v3396 = vunpack.c.l.b16 %v3175
    %v3397 = vunpack.c.h.b16 %v3175
    %v3398 = vunpack.c.l.b16 %v3176
    %v3399 = vunpack.c.l.b16 %v3177
    %v3400 = vunpack.c.h.b16 %v3177
    %v3401 = vunpack.c.l.b16 %v3178
    %v3402 = vunpack.c.l.b16 %v3179
    %v3403 = vunpack.c.h.b16 %v3179
    %v3404 = vunpack.c.l.b16 %v3180
    %v3405 = vunpack.c.l.b16 %v3181
    %v3406 = vunpack.c.h.b16 %v3181
    %v3407 = vunpack.c.l.b16 %v3182
    %v3408 = vunpack.c.l.b16 %v3183
    %v3409 = vunpack.c.h.b16 %v3183
    %v3410 = vunpack.c.l.b16 %v3184
    %v3411 = vunpack.c.l.b16 %v3185
    %v3412 = vunpack.c.h.b16 %v3185
    %v3413 = vunpack.c.l.b16 %v3186
    %v3414 = vunpack.c.l.b16 %v3187
    %v3415 = vunpack.c.h.b16 %v3187
    %v3416 = vunpack.c.l.b16 %v3188
    %v3417 = vunpack.c.l.b16 %v3189
    %v3418 = vunpack.c.h.b16 %v3189
    %v3419 = vunpack.c.l.b16 %v3190
    %v3420 = vunpack.c.l.b16 %v3191
    %v3421 = vunpack.c.h.b16 %v3191
    %v3422 = vunpack.c.l.b16 %v3192
    %v3423 = vunpack.c.l.b16 %v3193
    %v3424 = vunpack.c.h.b16 %v3193
    %v3425 = vunpack.c.l.b16 %v3194
    %v3426 = vunpack.c.l.b16 %v3195
    %v3427 = vunpack.c.h.b16 %v3195
    %v3428 = vunpack.c.l.b16 %v3196
    %v3429 = vunpack.c.l.b16 %v3197
    %v3430 = vunpack.c.h.b16 %v3197
    %v3431 = vunpack.c.l.b16 %v3198
    %v3432 = vunpack.c.l.b16 %v3199
    %v3433 = vunpack.c.h.b16 %v3199
    %v3434 = vunpack.c.l.b16 %v3200
    %v3435 = vunpack.c.l.b16 %v3201
    %v3436 = vunpack.c.h.b16 %v3201
    %v3437 = vunpack.c.l.b16 %v3202
    %v3438 = vunpack.c.l.b16 %v3203
    %v3439 = vunpack.c.h.b16 %v3203
    %v3440 = vunpack.c.l.b16 %v3204
    %v3441 = vunpack.c.l.b16 %v3205
    %v3442 = vunpack.c.h.b16 %v3205
    %v3443 = vunpack.c.l.b16 %v3206
    %v3444 = vunpack.c.l.b16 %v3207
    %v3445 = vunpack.c.h.b16 %v3207
    %v3446 = vunpack.c.l.b16 %v3208
    %v3447 = vunpack.c.l.b16 %v3209
    %v3448 = vunpack.c.h.b16 %v3209
    %v3449 = vunpack.c.l.b16 %v3210
    %v3450 = vunpack.c.l.b16 %v3211
    %v3451 = vunpack.c.h.b16 %v3211
    %v3452 = vunpack.c.l.b16 %v3212
    %v3453 = vunpack.c.l.b16 %v3213
    %v3454 = vunpack.c.h.b16 %v3213
    %v3455 = vunpack.c.l.b16 %v3214
    %v3456 = vunpack.c.l.b16 %v3215
    %v3457 = vunpack.c.h.b16 %v3215
    %v3458 = vunpack.c.l.b16 %v3216
    %v3459 = vunpack.c.l.b16 %v3217
    %v3460 = vunpack.c.h.b16 %v3217
    %v3461 = vunpack.c.l.b16 %v3218
    %v3462 = vunpack.c.l.b16 %v3219
    %v3463 = vunpack.c.h.b16 %v3219
    %v3464 = vunpack.c.l.b16 %v3220
    %v3465 = vunpack.c.l.b16 %v3221
    %v3466 = vunpack.c.h.b16 %v3221
    %v3467 = vunpack.c.l.b16 %v3222
    %v3468 = vunpack.c.l.b16 %v3223
    %v3469 = vunpack.c.h.b16 %v3223
    %v3470 = vunpack.c.l.b16 %v3224
    %v3471 = vunpack.c.l.b16 %v3225
    %v3472 = vunpack.c.h.b16 %v3225
    %v3473 = vunpack.c.l.b16 %v3226
    %v3474 = vunpack.c.l.b16 %v3227
    %v3475 = vunpack.c.h.b16 %v3227
    %v3476 = vunpack.c.l.b16 %v3228
    %v3477 = vunpack.c.l.b16 %v3229
    %v3478 = vunpack.c.h.b16 %v3229
    %v3479 = vunpack.c.l.b16 %v3230
    %v3480 = vunpack.c.l.b16 %v3231
    %v3481 = vunpack.c.h.b16 %v3231
    %v3482 = vunpack.c.l.b16 %v3232
    %v3483 = vunpack.c.l.b16 %v3233
    %v3484 = vunpack.c.h.b16 %v3233
    %v3485 = vunpack.c.l.b16 %v3234
    %v3486 = vunpack.c.l.b16 %v3235
    %v3487 = vunpack.c.h.b16 %v3235
    %v3488 = vunpack.c.l.b16 %v3236
    %v3489 = vpack.c.b16 %v3348, %v3345
    %v3490 = vpack.c.b16 %v3349, %v3346
    %v3491 = vpack.c.b16 %v3350, %v3347
    %v3492 = vpack.c.b16 %v3354, %v3351
    %v3493 = vpack.c.b16 %v3355, %v3352
    %v3494 = vpack.c.b16 %v3356, %v3353
    %v3495 = vpack.c.b16 %v3360, %v3357
    %v3496 = vpack.c.b16 %v3361, %v3358
    %v3497 = vpack.c.b16 %v3362, %v3359
    %v3498 = vpack.c.b16 %v3366, %v3363
    %v3499 = vpack.c.b16 %v3367, %v3364
    %v3500 = vpack.c.b16 %v3368, %v3365
    %v3501 = vpack.c.b16 %v3372, %v3369
    %v3502 = vpack.c.b16 %v3373, %v3370
    %v3503 = vpack.c.b16 %v3374, %v3371
    %v3504 = vpack.c.b16 %v3378, %v3375
    %v3505 = vpack.c.b16 %v3379, %v3376
    %v3506 = vpack.c.b16 %v3380, %v3377
    %v3507 = vpack.c.b16 %v3384, %v3381
    %v3508 = vpack.c.b16 %v3385, %v3382
    %v3509 = vpack.c.b16 %v3386, %v3383
    %v3510 = vpack.c.b16 %v3390, %v3387
    %v3511 = vpack.c.b16 %v3391, %v3388
    %v3512 = vpack.c.b16 %v3392, %v3389
    %v3513 = vpack.c.b16 %v3396, %v3393
    %v3514 = vpack.c.b16 %v3397, %v3394
    %v3515 = vpack.c.b16 %v3398, %v3395
    %v3516 = vpack.c.b16 %v3402, %v3399
    %v3517 = vpack.c.b16 %v3403, %v3400
    %v3518 = vpack.c.b16 %v3404, %v3401
    %v3519 = vpack.c.b16 %v3408, %v3405
    %v3520 = vpack.c.b16 %v3409, %v3406
    %v3521 = vpack.c.b16 %v3410, %v3407
    %v3522 = vpack.c.b16 %v3414, %v3411
    %v3523 = vpack.c.b16 %v3415, %v3412
    %v3524 = vpack.c.b16 %v3416, %v3413
    %v3525 = vpack.c.b16 %v3420, %v3417
    %v3526 = vpack.c.b16 %v3421, %v3418
    %v3527 = vpack.c.b16 %v3422, %v3419
    %v3528 = vpack.c.b16 %v3426, %v3423
    %v3529 = vpack.c.b16 %v3427, %v3424
    %v3530 = vpack.c.b16 %v3428, %v3425
    %v3531 = vpack.c.b16 %v3432, %v3429
    %v3532 = vpack.c.b16 %v3433, %v3430
    %v3533 = vpack.c.b16 %v3434, %v3431
    %v3534 = vpack.c.b16 %v3438, %v3435
    %v3535 = vpack.c.b16 %v3439, %v3436
    %v3536 = vpack.c.b16 %v3440, %v3437
    %v3537 = vpack.c.b16 %v3444, %v3441
    %v3538 = vpack.c.b16 %v3445, %v3442
    %v3539 = vpack.c.b16 %v3446, %v3443
    %v3540 = vpack.c.b16 %v3450, %v3447
    %v3541 = vpack.c.b16 %v3451, %v3448
    %v3542 = vpack.c.b16 %v3452, %v3449
    %v3543 = vpack.c.b16 %v3456, %v3453
    %v3544 = vpack.c.b16 %v3457, %v3454
    %v3545 = vpack.c.b16 %v3458, %v3455
    %v3546 = vpack.c.b16 %v3462, %v3459
    %v3547 = vpack.c.b16 %v3463, %v3460
    %v3548 = vpack.c.b16 %v3464, %v3461
    %v3549 = vpack.c.b16 %v3468, %v3465
    %v3550 = vpack.c.b16 %v3469, %v3466
    %v3551 = vpack.c.b16 %v3470, %v3467
    %v3552 = vpack.c.b16 %v3474, %v3471
    %v3553 = vpack.c.b16 %v3475, %v3472
    %v3554 = vpack.c.b16 %v3476, %v3473
    %v3555 = vpack.c.b16 %v3480, %v3477
    %v3556 = vpack.c.b16 %v3481, %v3478
    %v3557 = vpack.c.b16 %v3482, %v3479
    %v3558 = vpack.c.b16 %v3486, %v3483
    %v3559 = vpack.c.b16 %v3487, %v3484
    %v3560 = vpack.c.b16 %v3488, %v3485
    %3633 = vmatprep.subr.bf16.mxu0 %v3511
    %3634 = vmatpush1.bf16.msra.mxu0 %v3510
    %3635 = vmatprep.subr.bf16.mxu0 %v3508
    %3636 = vmatpush1.bf16.msra.mxu0 %v3507
    %3637 = vmatprep.subr.bf16.mxu0 %v3505
    %3638 = vmatpush1.bf16.msra.mxu0 %v3504
    %3639 = vmatprep.subr.bf16.mxu0 %v3502
    %3640 = vmatpush1.bf16.msra.mxu0 %v3501
    %3641 = vmatprep.subr.bf16.mxu0 %v3499
    %3642 = vmatpush1.bf16.msra.mxu0 %v3498
    %3643 = vmatprep.subr.bf16.mxu0 %v3496
    %3644 = vmatpush1.bf16.msra.mxu0 %v3495
    %3645 = vmatprep.subr.bf16.mxu0 %v3493
    %3646 = vmatpush1.bf16.msra.mxu0 %v3492
    %3647 = vmatprep.subr.bf16.mxu0 %v3490
    %3648 = vmatpush1.bf16.msra.mxu0 %v3489
    %3649 = vmatprep.subr.bf16.mxu0 %v3535
    %3650 = vmatpush2.bf16.msra.mxu0 %v3534
    %3651 = vmatprep.subr.bf16.mxu0 %v3532
    %3652 = vmatpush2.bf16.msra.mxu0 %v3531
    %3653 = vmatprep.subr.bf16.mxu0 %v3529
    %3654 = vmatpush2.bf16.msra.mxu0 %v3528
    %3655 = vmatprep.subr.bf16.mxu0 %v3526
    %3656 = vmatpush2.bf16.msra.mxu0 %v3525
    %3657 = vmatprep.subr.bf16.mxu0 %v3523
    %3658 = vmatpush2.bf16.msra.mxu0 %v3522
    %3659 = vmatprep.subr.bf16.mxu0 %v3520
    %3660 = vmatpush2.bf16.msra.mxu0 %v3519
    %3661 = vmatprep.subr.bf16.mxu0 %v3517
    %3662 = vmatpush2.bf16.msra.mxu0 %v3516
    %3663 = vmatprep.subr.bf16.mxu0 %v3514
    %3664 = vmatpush2.bf16.msra.mxu0 %v3513
    %3665 = vmatprep.mubr.bf16.mxu0 %v3247
    %3666 = vmatmul.mubr.bf16.gmra.mxu0 %v3246
    %v3667 = vpop.f32.mrf.mxu0
    %v3668 = vadd.f32 0.0, %v3667
    %v3669 = vpop.f32.mrf.mxu0
    %v3670 = vadd.f32 0.0, %v3669
    %v3671 = vpop.f32.mrf.mxu0
    %v3672 = vpop.f32.mrf.mxu0
    %3673 = vdwg.mxu0
    %3674 = vmatprep.subr.bf16.mxu0 %v3559
    %3675 = vmatpush1.bf16.msra.mxu0 %v3558
    %3676 = vmatprep.subr.bf16.mxu0 %v3556
    %3677 = vmatpush1.bf16.msra.mxu0 %v3555
    %3678 = vmatprep.subr.bf16.mxu0 %v3553
    %3679 = vmatpush1.bf16.msra.mxu0 %v3552
    %3680 = vmatprep.subr.bf16.mxu0 %v3550
    %3681 = vmatpush1.bf16.msra.mxu0 %v3549
    %3682 = vmatprep.subr.bf16.mxu0 %v3547
    %3683 = vmatpush1.bf16.msra.mxu0 %v3546
    %3684 = vmatprep.subr.bf16.mxu0 %v3544
    %3685 = vmatpush1.bf16.msra.mxu0 %v3543
    %3686 = vmatprep.subr.bf16.mxu0 %v3541
    %3687 = vmatpush1.bf16.msra.mxu0 %v3540
    %3688 = vmatprep.subr.bf16.mxu0 %v3538
    %3689 = vmatpush1.bf16.msra.mxu0 %v3537
    %3690 = vmatprep.subr.bf16.mxu0 0
    %3691 = vmatpush2.bf16.msra.mxu0 0
    %3692 = vmatprep.subr.bf16.mxu0 0
    %3693 = vmatpush2.bf16.msra.mxu0 0
    %3694 = vmatprep.subr.bf16.mxu0 0
    %3695 = vmatpush2.bf16.msra.mxu0 0
    %3696 = vmatprep.subr.bf16.mxu0 0
    %3697 = vmatpush2.bf16.msra.mxu0 0
    %3698 = vmatprep.subr.bf16.mxu0 0
    %3699 = vmatpush2.bf16.msra.mxu0 0
    %3700 = vmatprep.subr.bf16.mxu0 0
    %3701 = vmatpush2.bf16.msra.mxu0 0
    %3702 = vmatprep.subr.bf16.mxu0 0
    %3703 = vmatpush2.bf16.msra.mxu0 0
    %3704 = vmatprep.subr.bf16.mxu0 0
    %3705 = vmatpush2.bf16.msra.mxu0 0
    %3706 = vmatprep.mubr.bf16.mxu0 0
    %3707 = vmatmul.mubr.bf16.gmra.mxu0 %v3248
    %v3708 = vpop.f32.mrf.mxu0
    %v3709 = vadd.f32 %v3668, %v3708
    %v3710 = vpop.f32.mrf.mxu0
    %v3711 = vadd.f32 %v3670, %v3710
    %v3712 = vpop.f32.mrf.mxu0
    %v3713 = vpop.f32.mrf.mxu0
    %3714 = vdwg.mxu0
    %3715 = vmatprep.subr.bf16.mxu0 0
    %3716 = vmatpush1.bf16.msra.mxu0 %v3512
    %3717 = vmatprep.subr.bf16.mxu0 0
    %3718 = vmatpush1.bf16.msra.mxu0 %v3509
    %3719 = vmatprep.subr.bf16.mxu0 0
    %3720 = vmatpush1.bf16.msra.mxu0 %v3506
    %3721 = vmatprep.subr.bf16.mxu0 0
    %3722 = vmatpush1.bf16.msra.mxu0 %v3503
    %3723 = vmatprep.subr.bf16.mxu0 0
    %3724 = vmatpush1.bf16.msra.mxu0 %v3500
    %3725 = vmatprep.subr.bf16.mxu0 0
    %3726 = vmatpush1.bf16.msra.mxu0 %v3497
    %3727 = vmatprep.subr.bf16.mxu0 0
    %3728 = vmatpush1.bf16.msra.mxu0 %v3494
    %3729 = vmatprep.subr.bf16.mxu0 0
    %3730 = vmatpush1.bf16.msra.mxu0 %v3491
    %3731 = vmatprep.subr.bf16.mxu0 0
    %3732 = vmatpush2.bf16.msra.mxu0 %v3536
    %3733 = vmatprep.subr.bf16.mxu0 0
    %3734 = vmatpush2.bf16.msra.mxu0 %v3533
    %3735 = vmatprep.subr.bf16.mxu0 0
    %3736 = vmatpush2.bf16.msra.mxu0 %v3530
    %3737 = vmatprep.subr.bf16.mxu0 0
    %3738 = vmatpush2.bf16.msra.mxu0 %v3527
    %3739 = vmatprep.subr.bf16.mxu0 0
    %3740 = vmatpush2.bf16.msra.mxu0 %v3524
    %3741 = vmatprep.subr.bf16.mxu0 0
    %3742 = vmatpush2.bf16.msra.mxu0 %v3521
    %3743 = vmatprep.subr.bf16.mxu0 0
    %3744 = vmatpush2.bf16.msra.mxu0 %v3518
    %3745 = vmatprep.subr.bf16.mxu0 0
    %3746 = vmatpush2.bf16.msra.mxu0 %v3515
    %3747 = vmatprep.mubr.bf16.mxu0 %v3247
    %3748 = vmatmul.mubr.bf16.gmra.mxu0 %v3246
    %v3749 = vpop.f32.mrf.mxu0
    %v3750 = vadd.f32 0.0, %v3749
    %v3751 = vpop.f32.mrf.mxu0
    %v3752 = vpop.f32.mrf.mxu0
    %v3753 = vpop.f32.mrf.mxu0
    %3754 = vdwg.mxu0
    %3755 = vmatprep.subr.bf16.mxu0 0
    %3756 = vmatpush1.bf16.msra.mxu0 %v3560
    %3757 = vmatprep.subr.bf16.mxu0 0
    %3758 = vmatpush1.bf16.msra.mxu0 %v3557
    %3759 = vmatprep.subr.bf16.mxu0 0
    %3760 = vmatpush1.bf16.msra.mxu0 %v3554
    %3761 = vmatprep.subr.bf16.mxu0 0
    %3762 = vmatpush1.bf16.msra.mxu0 %v3551
    %3763 = vmatprep.subr.bf16.mxu0 0
    %3764 = vmatpush1.bf16.msra.mxu0 %v3548
    %3765 = vmatprep.subr.bf16.mxu0 0
    %3766 = vmatpush1.bf16.msra.mxu0 %v3545
    %3767 = vmatprep.subr.bf16.mxu0 0
    %3768 = vmatpush1.bf16.msra.mxu0 %v3542
    %3769 = vmatprep.subr.bf16.mxu0 0
    %3770 = vmatpush1.bf16.msra.mxu0 %v3539
    %3771 = vmatprep.subr.bf16.mxu0 0
    %3772 = vmatpush2.bf16.msra.mxu0 0
    %3773 = vmatprep.subr.bf16.mxu0 0
    %3774 = vmatpush2.bf16.msra.mxu0 0
    %3775 = vmatprep.subr.bf16.mxu0 0
    %3776 = vmatpush2.bf16.msra.mxu0 0
    %3777 = vmatprep.subr.bf16.mxu0 0
    %3778 = vmatpush2.bf16.msra.mxu0 0
    %3779 = vmatprep.subr.bf16.mxu0 0
    %3780 = vmatpush2.bf16.msra.mxu0 0
    %3781 = vmatprep.subr.bf16.mxu0 0
    %3782 = vmatpush2.bf16.msra.mxu0 0
    %3783 = vmatprep.subr.bf16.mxu0 0
    %3784 = vmatpush2.bf16.msra.mxu0 0
    %3785 = vmatprep.subr.bf16.mxu0 0
    %3786 = vmatpush2.bf16.msra.mxu0 0
    %3787 = vmatprep.mubr.bf16.mxu0 0
    %3788 = vmatmul.mubr.bf16.gmra.mxu0 %v3248
    %v3789 = vpop.f32.mrf.mxu0
    %v3790 = vadd.f32 %v3750, %v3789
    %v3791 = vpop.f32.mrf.mxu0
    %v3792 = vpop.f32.mrf.mxu0
    %v3793 = vpop.f32.mrf.mxu0
    %3794 = vdwg.mxu0
    %3795 = vmatprep.subr.bf16.mxu0 %v3511
    %3796 = vmatpush1.bf16.msra.mxu0 %v3510
    %3797 = vmatprep.subr.bf16.mxu0 %v3508
    %3798 = vmatpush1.bf16.msra.mxu0 %v3507
    %3799 = vmatprep.subr.bf16.mxu0 %v3505
    %3800 = vmatpush1.bf16.msra.mxu0 %v3504
    %3801 = vmatprep.subr.bf16.mxu0 %v3502
    %3802 = vmatpush1.bf16.msra.mxu0 %v3501
    %3803 = vmatprep.subr.bf16.mxu0 %v3499
    %3804 = vmatpush1.bf16.msra.mxu0 %v3498
    %3805 = vmatprep.subr.bf16.mxu0 %v3496
    %3806 = vmatpush1.bf16.msra.mxu0 %v3495
    %3807 = vmatprep.subr.bf16.mxu0 %v3493
    %3808 = vmatpush1.bf16.msra.mxu0 %v3492
    %3809 = vmatprep.subr.bf16.mxu0 %v3490
    %3810 = vmatpush1.bf16.msra.mxu0 %v3489
    %3811 = vmatprep.subr.bf16.mxu0 %v3535
    %3812 = vmatpush2.bf16.msra.mxu0 %v3534
    %3813 = vmatprep.subr.bf16.mxu0 %v3532
    %3814 = vmatpush2.bf16.msra.mxu0 %v3531
    %3815 = vmatprep.subr.bf16.mxu0 %v3529
    %3816 = vmatpush2.bf16.msra.mxu0 %v3528
    %3817 = vmatprep.subr.bf16.mxu0 %v3526
    %3818 = vmatpush2.bf16.msra.mxu0 %v3525
    %3819 = vmatprep.subr.bf16.mxu0 %v3523
    %3820 = vmatpush2.bf16.msra.mxu0 %v3522
    %3821 = vmatprep.subr.bf16.mxu0 %v3520
    %3822 = vmatpush2.bf16.msra.mxu0 %v3519
    %3823 = vmatprep.subr.bf16.mxu0 %v3517
    %3824 = vmatpush2.bf16.msra.mxu0 %v3516
    %3825 = vmatprep.subr.bf16.mxu0 %v3514
    %3826 = vmatpush2.bf16.msra.mxu0 %v3513
    %3827 = vmatprep.mubr.bf16.mxu0 %v3238
    %3828 = vmatmul.mubr.bf16.gmra.mxu0 %v3237
    %v3829 = vpop.f32.mrf.mxu0
    %v3830 = vadd.f32 %v3709, %v3829
    %v3831 = vpop.f32.mrf.mxu0
    %v3832 = vadd.f32 %v3711, %v3831
    %v3833 = vpop.f32.mrf.mxu0
    %v3834 = vpop.f32.mrf.mxu0
    %3835 = vdwg.mxu0
    %3836 = vmatprep.subr.bf16.mxu0 %v3559
    %3837 = vmatpush1.bf16.msra.mxu0 %v3558
    %3838 = vmatprep.subr.bf16.mxu0 %v3556
    %3839 = vmatpush1.bf16.msra.mxu0 %v3555
    %3840 = vmatprep.subr.bf16.mxu0 %v3553
    %3841 = vmatpush1.bf16.msra.mxu0 %v3552
    %3842 = vmatprep.subr.bf16.mxu0 %v3550
    %3843 = vmatpush1.bf16.msra.mxu0 %v3549
    %3844 = vmatprep.subr.bf16.mxu0 %v3547
    %3845 = vmatpush1.bf16.msra.mxu0 %v3546
    %3846 = vmatprep.subr.bf16.mxu0 %v3544
    %3847 = vmatpush1.bf16.msra.mxu0 %v3543
    %3848 = vmatprep.subr.bf16.mxu0 %v3541
    %3849 = vmatpush1.bf16.msra.mxu0 %v3540
    %3850 = vmatprep.subr.bf16.mxu0 %v3538
    %3851 = vmatpush1.bf16.msra.mxu0 %v3537
    %3852 = vmatprep.subr.bf16.mxu0 0
    %3853 = vmatpush2.bf16.msra.mxu0 0
    %3854 = vmatprep.subr.bf16.mxu0 0
    %3855 = vmatpush2.bf16.msra.mxu0 0
    %3856 = vmatprep.subr.bf16.mxu0 0
    %3857 = vmatpush2.bf16.msra.mxu0 0
    %3858 = vmatprep.subr.bf16.mxu0 0
    %3859 = vmatpush2.bf16.msra.mxu0 0
    %3860 = vmatprep.subr.bf16.mxu0 0
    %3861 = vmatpush2.bf16.msra.mxu0 0
    %3862 = vmatprep.subr.bf16.mxu0 0
    %3863 = vmatpush2.bf16.msra.mxu0 0
    %3864 = vmatprep.subr.bf16.mxu0 0
    %3865 = vmatpush2.bf16.msra.mxu0 0
    %3866 = vmatprep.subr.bf16.mxu0 0
    %3867 = vmatpush2.bf16.msra.mxu0 0
    %3868 = vmatprep.mubr.bf16.mxu0 0
    %3869 = vmatmul.mubr.bf16.gmra.mxu0 %v3239
    %v3870 = vpop.f32.mrf.mxu0
    %v3871 = vadd.f32 %v3830, %v3870
    %v3872 = vpop.f32.mrf.mxu0
    %v3873 = vadd.f32 %v3832, %v3872
    %v3874 = vpop.f32.mrf.mxu0
    %v3875 = vpop.f32.mrf.mxu0
    %3876 = vdwg.mxu0
    %3877 = vmatprep.subr.bf16.mxu0 0
    %3878 = vmatpush1.bf16.msra.mxu0 %v3512
    %3879 = vmatprep.subr.bf16.mxu0 0
    %3880 = vmatpush1.bf16.msra.mxu0 %v3509
    %3881 = vmatprep.subr.bf16.mxu0 0
    %3882 = vmatpush1.bf16.msra.mxu0 %v3506
    %3883 = vmatprep.subr.bf16.mxu0 0
    %3884 = vmatpush1.bf16.msra.mxu0 %v3503
    %3885 = vmatprep.subr.bf16.mxu0 0
    %3886 = vmatpush1.bf16.msra.mxu0 %v3500
    %3887 = vmatprep.subr.bf16.mxu0 0
    %3888 = vmatpush1.bf16.msra.mxu0 %v3497
    %3889 = vmatprep.subr.bf16.mxu0 0
    %3890 = vmatpush1.bf16.msra.mxu0 %v3494
    %3891 = vmatprep.subr.bf16.mxu0 0
    %3892 = vmatpush1.bf16.msra.mxu0 %v3491
    %3893 = vmatprep.subr.bf16.mxu0 0
    %3894 = vmatpush2.bf16.msra.mxu0 %v3536
    %3895 = vmatprep.subr.bf16.mxu0 0
    %3896 = vmatpush2.bf16.msra.mxu0 %v3533
    %3897 = vmatprep.subr.bf16.mxu0 0
    %3898 = vmatpush2.bf16.msra.mxu0 %v3530
    %3899 = vmatprep.subr.bf16.mxu0 0
    %3900 = vmatpush2.bf16.msra.mxu0 %v3527
    %3901 = vmatprep.subr.bf16.mxu0 0
    %3902 = vmatpush2.bf16.msra.mxu0 %v3524
    %3903 = vmatprep.subr.bf16.mxu0 0
    %3904 = vmatpush2.bf16.msra.mxu0 %v3521
    %3905 = vmatprep.subr.bf16.mxu0 0
    %3906 = vmatpush2.bf16.msra.mxu0 %v3518
    %3907 = vmatprep.subr.bf16.mxu0 0
    %3908 = vmatpush2.bf16.msra.mxu0 %v3515
    %3909 = vmatprep.mubr.bf16.mxu0 %v3238
    %3910 = vmatmul.mubr.bf16.gmra.mxu0 %v3237
    %v3911 = vpop.f32.mrf.mxu0
    %v3912 = vadd.f32 %v3790, %v3911
    %v3913 = vpop.f32.mrf.mxu0
    %v3914 = vpop.f32.mrf.mxu0
    %v3915 = vpop.f32.mrf.mxu0
    %3916 = vdwg.mxu0
    %3917 = vmatprep.subr.bf16.mxu0 0
    %3918 = vmatpush1.bf16.msra.mxu0 %v3560
    %3919 = vmatprep.subr.bf16.mxu0 0
    %3920 = vmatpush1.bf16.msra.mxu0 %v3557
    %3921 = vmatprep.subr.bf16.mxu0 0
    %3922 = vmatpush1.bf16.msra.mxu0 %v3554
    %3923 = vmatprep.subr.bf16.mxu0 0
    %3924 = vmatpush1.bf16.msra.mxu0 %v3551
    %3925 = vmatprep.subr.bf16.mxu0 0
    %3926 = vmatpush1.bf16.msra.mxu0 %v3548
    %3927 = vmatprep.subr.bf16.mxu0 0
    %3928 = vmatpush1.bf16.msra.mxu0 %v3545
    %3929 = vmatprep.subr.bf16.mxu0 0
    %3930 = vmatpush1.bf16.msra.mxu0 %v3542
    %3931 = vmatprep.subr.bf16.mxu0 0
    %3932 = vmatpush1.bf16.msra.mxu0 %v3539
    %3933 = vmatprep.subr.bf16.mxu0 0
    %3934 = vmatpush2.bf16.msra.mxu0 0
    %3935 = vmatprep.subr.bf16.mxu0 0
    %3936 = vmatpush2.bf16.msra.mxu0 0
    %3937 = vmatprep.subr.bf16.mxu0 0
    %3938 = vmatpush2.bf16.msra.mxu0 0
    %3939 = vmatprep.subr.bf16.mxu0 0
    %3940 = vmatpush2.bf16.msra.mxu0 0
    %3941 = vmatprep.subr.bf16.mxu0 0
    %3942 = vmatpush2.bf16.msra.mxu0 0
    %3943 = vmatprep.subr.bf16.mxu0 0
    %3944 = vmatpush2.bf16.msra.mxu0 0
    %3945 = vmatprep.subr.bf16.mxu0 0
    %3946 = vmatpush2.bf16.msra.mxu0 0
    %3947 = vmatprep.subr.bf16.mxu0 0
    %3948 = vmatpush2.bf16.msra.mxu0 0
    %3949 = vmatprep.mubr.bf16.mxu0 0
    %3950 = vmatmul.mubr.bf16.gmra.mxu0 %v3239
    %v3951 = vpop.f32.mrf.mxu0
    %v3952 = vadd.f32 %v3912, %v3951
    %v3953 = vpop.f32.mrf.mxu0
    %v3954 = vpop.f32.mrf.mxu0
    %v3955 = vpop.f32.mrf.mxu0
    %3956 = vdwg.mxu0
    %v3957 = vadd.f32 %v3871, %v3138
    %v3958 = vadd.f32 %v3873, %v3139
    %v3959 = vadd.f32 %v3952, %v3140
    %v3960 = vmul.f32 %v3957, 1.442695
    %v3961 = vpow.pop %v3960
    %v3962 = vmul.f32 %v3958, 1.442695
    %v3963 = vpow.pop %v3962
    %v3964 = vmul.f32 %v3959, 1.442695
    %v3965 = vpow.pop %v3964
    %v3966 = vpack.c.bf16 %v3961, %v3961
    %v3967 = vpack.c.bf16 %v3963, %v3963
    %v3968 = vpack.c.bf16 %v3965, %v3965
    %v3969 = vld [vmem:[#allocation11] sm:$0xf]
    %v3970 = vld [vmem:[#allocation11 + $0x4] sm:$0xf]
    %v3971 = vld [vmem:[#allocation11 + $0x8] sm:$0xf]
    %v3972 = vld [vmem:[#allocation11 + $0xc] sm:$0xf]
    %v3973 = vld [vmem:[#allocation11 + $0x10] sm:$0xf]
    %v3974 = vld [vmem:[#allocation11 + $0x14] sm:$0xf]
    %v3975 = vld [vmem:[#allocation11 + $0x18] sm:$0xf]
    %v3976 = vld [vmem:[#allocation11 + $0x1c] sm:$0xf]
    %v3977 = vld [vmem:[#allocation11 + $0x20] sm:$0xf]
    %v3978 = vld [vmem:[#allocation11 + $0x24] sm:$0xf]
    %v3979 = vld [vmem:[#allocation11 + $0x28] sm:$0xf]
    %v3980 = vld [vmem:[#allocation11 + $0x2c] sm:$0xf]
    %v3981 = vld [vmem:[#allocation11 + $0x30] sm:$0xf]
    %v3982 = vld [vmem:[#allocation11 + $0x34] sm:$0xf]
    %v3983 = vld [vmem:[#allocation11 + $0x38] sm:$0xf]
    %v3984 = vld [vmem:[#allocation11 + $0x3c] sm:$0xf]
    %v3985 = vld [vmem:[#allocation11 + $0x40] sm:$0xf]
    %v3986 = vld [vmem:[#allocation11 + $0x44] sm:$0xf]
    %v3987 = vld [vmem:[#allocation11 + $0x48] sm:$0xf]
    %v3988 = vld [vmem:[#allocation11 + $0x4c] sm:$0xf]
    %v3989 = vld [vmem:[#allocation11 + $0x50] sm:$0xf]
    %v3990 = vld [vmem:[#allocation11 + $0x54] sm:$0xf]
    %v3991 = vld [vmem:[#allocation11 + $0x58] sm:$0xf]
    %v3992 = vld [vmem:[#allocation11 + $0x5c] sm:$0xf]
    %v3993 = vld [vmem:[#allocation11 + $0x60] sm:$0xf]
    %v3994 = vld [vmem:[#allocation11 + $0x64] sm:$0xf]
    %v3995 = vld [vmem:[#allocation11 + $0x68] sm:$0xf]
    %v3996 = vld [vmem:[#allocation11 + $0x6c] sm:$0xf]
    %v3997 = vld [vmem:[#allocation11 + $0x70] sm:$0xf]
    %v3998 = vld [vmem:[#allocation11 + $0x74] sm:$0xf]
    %v3999 = vld [vmem:[#allocation11 + $0x78] sm:$0xf]
    %v4000 = vld [vmem:[#allocation11 + $0x7c] sm:$0xf]
    %v4001 = vld [vmem:[#allocation11 + $0x80] sm:$0xf]
    %v4002 = vld [vmem:[#allocation11 + $0x84] sm:$0xf]
    %v4003 = vld [vmem:[#allocation11 + $0x88] sm:$0xf]
    %v4004 = vld [vmem:[#allocation11 + $0x8c] sm:$0xf]
    %v4005 = vld [vmem:[#allocation11 + $0x90] sm:$0xf]
    %v4006 = vld [vmem:[#allocation11 + $0x94] sm:$0xf]
    %v4007 = vld [vmem:[#allocation11 + $0x98] sm:$0xf]
    %v4008 = vld [vmem:[#allocation11 + $0x9c] sm:$0xf]
    %v4009 = vld [vmem:[#allocation11 + $0xa0] sm:$0xf]
    %v4010 = vld [vmem:[#allocation11 + $0xa4] sm:$0xf]
    %v4011 = vld [vmem:[#allocation11 + $0xa8] sm:$0xf]
    %v4012 = vld [vmem:[#allocation11 + $0xac] sm:$0xf]
    %v4013 = vld [vmem:[#allocation11 + $0xb0] sm:$0xf]
    %v4014 = vld [vmem:[#allocation11 + $0xb4] sm:$0xf]
    %v4015 = vld [vmem:[#allocation11 + $0xb8] sm:$0xf]
    %v4016 = vld [vmem:[#allocation11 + $0xbc] sm:$0xf]
    %v4065 = vunpack.c.l.b16 %v3969
    %v4066 = vunpack.c.l.b16 %v3970
    %v4067 = vunpack.c.l.b16 %v3971
    %v4068 = vunpack.c.l.b16 %v3972
    %v4069 = vunpack.c.l.b16 %v3973
    %v4070 = vunpack.c.l.b16 %v3974
    %v4071 = vunpack.c.l.b16 %v3975
    %v4072 = vunpack.c.l.b16 %v3976
    %v4073 = vunpack.c.l.b16 %v3977
    %v4074 = vunpack.c.l.b16 %v3978
    %v4075 = vunpack.c.l.b16 %v3979
    %v4076 = vunpack.c.l.b16 %v3980
    %v4077 = vunpack.c.l.b16 %v3981
    %v4078 = vunpack.c.l.b16 %v3982
    %v4079 = vunpack.c.l.b16 %v3983
    %v4080 = vunpack.c.l.b16 %v3984
    %v4081 = vunpack.c.l.b16 %v3985
    %v4082 = vunpack.c.l.b16 %v3986
    %v4083 = vunpack.c.l.b16 %v3987
    %v4084 = vunpack.c.l.b16 %v3988
    %v4085 = vunpack.c.l.b16 %v3989
    %v4086 = vunpack.c.l.b16 %v3990
    %v4087 = vunpack.c.l.b16 %v3991
    %v4088 = vunpack.c.l.b16 %v3992
    %v4089 = vunpack.c.l.b16 %v3993
    %v4090 = vunpack.c.l.b16 %v3994
    %v4091 = vunpack.c.l.b16 %v3995
    %v4092 = vunpack.c.l.b16 %v3996
    %v4093 = vunpack.c.l.b16 %v3997
    %v4094 = vunpack.c.l.b16 %v3998
    %v4095 = vunpack.c.l.b16 %v3999
    %v4096 = vunpack.c.l.b16 %v4000
    %v4097 = vunpack.c.l.b16 %v4001
    %v4098 = vunpack.c.l.b16 %v4002
    %v4099 = vunpack.c.l.b16 %v4003
    %v4100 = vunpack.c.l.b16 %v4004
    %v4101 = vunpack.c.l.b16 %v4005
    %v4102 = vunpack.c.l.b16 %v4006
    %v4103 = vunpack.c.l.b16 %v4007
    %v4104 = vunpack.c.l.b16 %v4008
    %v4105 = vunpack.c.l.b16 %v4009
    %v4106 = vunpack.c.l.b16 %v4010
    %v4107 = vunpack.c.l.b16 %v4011
    %v4108 = vunpack.c.l.b16 %v4012
    %v4109 = vunpack.c.l.b16 %v4013
    %v4110 = vunpack.c.l.b16 %v4014
    %v4111 = vunpack.c.l.b16 %v4015
    %v4112 = vunpack.c.l.b16 %v4016
    %v4113 = vpack.c.b16 %v4066, %v4065
    %v4114 = vpack.c.b16 %v4068, %v4067
    %v4115 = vpack.c.b16 %v4070, %v4069
    %v4116 = vpack.c.b16 %v4072, %v4071
    %v4117 = vpack.c.b16 %v4074, %v4073
    %v4118 = vpack.c.b16 %v4076, %v4075
    %v4119 = vpack.c.b16 %v4078, %v4077
    %v4120 = vpack.c.b16 %v4080, %v4079
    %v4121 = vpack.c.b16 %v4082, %v4081
    %v4122 = vpack.c.b16 %v4084, %v4083
    %v4123 = vpack.c.b16 %v4086, %v4085
    %v4124 = vpack.c.b16 %v4088, %v4087
    %v4125 = vpack.c.b16 %v4090, %v4089
    %v4126 = vpack.c.b16 %v4092, %v4091
    %v4127 = vpack.c.b16 %v4094, %v4093
    %v4128 = vpack.c.b16 %v4096, %v4095
    %v4129 = vpack.c.b16 %v4098, %v4097
    %v4130 = vpack.c.b16 %v4100, %v4099
    %v4131 = vpack.c.b16 %v4102, %v4101
    %v4132 = vpack.c.b16 %v4104, %v4103
    %v4133 = vpack.c.b16 %v4106, %v4105
    %v4134 = vpack.c.b16 %v4108, %v4107
    %v4135 = vpack.c.b16 %v4110, %v4109
    %v4136 = vpack.c.b16 %v4112, %v4111
    %4161 = vmatprep.subr.bf16.mxu0 0
    %4162 = vmatpush1.bf16.msra.mxu0 %v4120
    %4163 = vmatprep.subr.bf16.mxu0 0
    %4164 = vmatpush1.bf16.msra.mxu0 %v4119
    %4165 = vmatprep.subr.bf16.mxu0 0
    %4166 = vmatpush1.bf16.msra.mxu0 %v4118
    %4167 = vmatprep.subr.bf16.mxu0 0
    %4168 = vmatpush1.bf16.msra.mxu0 %v4117
    %4169 = vmatprep.subr.bf16.mxu0 0
    %4170 = vmatpush1.bf16.msra.mxu0 %v4116
    %4171 = vmatprep.subr.bf16.mxu0 0
    %4172 = vmatpush1.bf16.msra.mxu0 %v4115
    %4173 = vmatprep.subr.bf16.mxu0 0
    %4174 = vmatpush1.bf16.msra.mxu0 %v4114
    %4175 = vmatprep.subr.bf16.mxu0 0
    %4176 = vmatpush1.bf16.msra.mxu0 %v4113
    %4177 = vmatprep.subr.bf16.mxu0 0
    %4178 = vmatpush2.bf16.msra.mxu0 %v4128
    %4179 = vmatprep.subr.bf16.mxu0 0
    %4180 = vmatpush2.bf16.msra.mxu0 %v4127
    %4181 = vmatprep.subr.bf16.mxu0 0
    %4182 = vmatpush2.bf16.msra.mxu0 %v4126
    %4183 = vmatprep.subr.bf16.mxu0 0
    %4184 = vmatpush2.bf16.msra.mxu0 %v4125
    %4185 = vmatprep.subr.bf16.mxu0 0
    %4186 = vmatpush2.bf16.msra.mxu0 %v4124
    %4187 = vmatprep.subr.bf16.mxu0 0
    %4188 = vmatpush2.bf16.msra.mxu0 %v4123
    %4189 = vmatprep.subr.bf16.mxu0 0
    %4190 = vmatpush2.bf16.msra.mxu0 %v4122
    %4191 = vmatprep.subr.bf16.mxu0 0
    %4192 = vmatpush2.bf16.msra.mxu0 %v4121
    %4193 = vmatprep.mubr.bf16.mxu0 %v3967
    %4194 = vmatmul.mubr.bf16.gmra.mxu0 %v3966
    %v4195 = vpop.f32.mrf.mxu0
    %v4196 = vadd.f32 0.0, %v4195
    %v4197 = vpop.f32.mrf.mxu0
    %v4198 = vpop.f32.mrf.mxu0
    %v4199 = vpop.f32.mrf.mxu0
    %4200 = vdwg.mxu0
    %4201 = vmatprep.subr.bf16.mxu0 0
    %4202 = vmatpush1.bf16.msra.mxu0 %v4136
    %4203 = vmatprep.subr.bf16.mxu0 0
    %4204 = vmatpush1.bf16.msra.mxu0 %v4135
    %4205 = vmatprep.subr.bf16.mxu0 0
    %4206 = vmatpush1.bf16.msra.mxu0 %v4134
    %4207 = vmatprep.subr.bf16.mxu0 0
    %4208 = vmatpush1.bf16.msra.mxu0 %v4133
    %4209 = vmatprep.subr.bf16.mxu0 0
    %4210 = vmatpush1.bf16.msra.mxu0 %v4132
    %4211 = vmatprep.subr.bf16.mxu0 0
    %4212 = vmatpush1.bf16.msra.mxu0 %v4131
    %4213 = vmatprep.subr.bf16.mxu0 0
    %4214 = vmatpush1.bf16.msra.mxu0 %v4130
    %4215 = vmatprep.subr.bf16.mxu0 0
    %4216 = vmatpush1.bf16.msra.mxu0 %v4129
    %4217 = vmatprep.subr.bf16.mxu0 0
    %4218 = vmatpush2.bf16.msra.mxu0 0
    %4219 = vmatprep.subr.bf16.mxu0 0
    %4220 = vmatpush2.bf16.msra.mxu0 0
    %4221 = vmatprep.subr.bf16.mxu0 0
    %4222 = vmatpush2.bf16.msra.mxu0 0
    %4223 = vmatprep.subr.bf16.mxu0 0
    %4224 = vmatpush2.bf16.msra.mxu0 0
    %4225 = vmatprep.subr.bf16.mxu0 0
    %4226 = vmatpush2.bf16.msra.mxu0 0
    %4227 = vmatprep.subr.bf16.mxu0 0
    %4228 = vmatpush2.bf16.msra.mxu0 0
    %4229 = vmatprep.subr.bf16.mxu0 0
    %4230 = vmatpush2.bf16.msra.mxu0 0
    %4231 = vmatprep.subr.bf16.mxu0 0
    %4232 = vmatpush2.bf16.msra.mxu0 0
    %4233 = vmatprep.mubr.bf16.mxu0 0
    %4234 = vmatmul.mubr.bf16.gmra.mxu0 %v3968
    %v4235 = vpop.f32.mrf.mxu0
    %v4236 = vadd.f32 %v4196, %v4235
    %v4237 = vpop.f32.mrf.mxu0
    %v4238 = vpop.f32.mrf.mxu0
    %v4239 = vpop.f32.mrf.mxu0
    %4240 = vdwg.mxu0
    %4241 = vst [vmem:[#allocation13] sm:$0xff] %v4236
    // Predicated region
    $region54: #{tpu_custom_call.1} parent=1 // pred_check
      _
    $region55: #{tpu_custom_call.1} parent=1 // pred_check_branch
      %4243 = sbr.rel (0) target = $region57
    $region56: #{tpu_custom_call.1} parent=1 // pred_region
      %s4245 = ssub.s32 128, 128
      %4246 = vsyncadd [#allocation4], %s4245
      %s4248 = sshll.u32 [#allocation13], 4
      %s4249 = int_to_ptr.vmem [resolvable:$true] %s4248
      %4251 = dma.vmem_to_hbm [thread:$0]  %s4249, 128, %s7, [#allocation4]
    $region57: #{tpu_custom_call.1} parent=1 // pred_fallthru
      _
    // Predicated region
    $region58: #{tpu_custom_call.1} parent=1 // pred_check
      _
    $region59: #{tpu_custom_call.1} parent=1 // pred_check_branch
      %4253 = sbr.rel (0) target = $region61
    $region60: #{tpu_custom_call.1} parent=1 // pred_region
      %4254 = dma.done [#allocation4], 128
    $region61: #{tpu_custom_call.1} parent=1 // pred_fallthru
      _
    %4255 = vsyncpa [#allocation3], 1
    %4256 = vsyncpa [#allocation6], 1
    %4257 = vsyncpa [#allocation9], 1
    %4258 = vsyncpa [#allocation12], 1
    %4259 = vsyncpa [#allocation4], 1

</llo_original>
